<compile_context>
chip_gen: v7x
topology: tpu7x:2x2x1
jax: 0.10.0
libtpu: 0.0.40
codegen_flags: <defaults>
</compile_context>

<pallas_src>
import functools
import numpy as np
import jax
import jax.numpy as jnp
from jax.experimental import pallas as pl
from jax.experimental.pallas import tpu as pltpu  # noqa: F401  (TPU backend)

# ----------------------------- configuration ------------------------------
EMBED_DIM = 16
IMG_SIZE = (8, 8)
PATCH_SIZE = (2, 2)
OUTPUT_DIM = 10
BLOCK_DEPTHS = [2, 2]
NUM_HEADS = [2, 4]
WINDOW_SIZE = (2, 2)
BATCH = 2

_NEG_INF = -1e9  # cross-window mask (exp underflows to exactly 0 in f32)


# --------------------------- in-kernel helpers -----------------------------
def _ln(x, g, b):
    mu = jnp.mean(x, axis=-1, keepdims=True)
    var = jnp.mean(jnp.square(x - mu), axis=-1, keepdims=True)
    return (x - mu) * jax.lax.rsqrt(var + 1e-5) * g + b


def _gelu_tanh(x):
    c = 0.7978845608028654  # sqrt(2/pi)
    return 0.5 * x * (1.0 + jnp.tanh(c * (x + 0.044715 * x * x * x)))


# ----------------------------- Pallas kernels -----------------------------
def _linear_kernel(x_ref, w_ref, b_ref, o_ref):
    acc = jnp.dot(x_ref[...], w_ref[...], preferred_element_type=jnp.float32)
    o_ref[...] = (acc + b_ref[...]).astype(o_ref.dtype)


def _merge_kernel(x_ref, g_ref, b_ref, w_ref, wb_ref, o_ref):
    # PatchMerging: LayerNorm(4C) -> Linear(4C, 2C), fused.
    xn = _ln(x_ref[...].astype(jnp.float32), g_ref[...], b_ref[...])
    acc = jnp.dot(xn, w_ref[...], preferred_element_type=jnp.float32) + wb_ref[...]
    o_ref[...] = acc.astype(o_ref.dtype)


def _tail_kernel(x_ref, g_ref, b_ref, pool_ref, hw_ref, hb_ref, o_ref):
    # Final LN -> global average pool (constant pooling matmul) -> head linear.
    xn = _ln(x_ref[...].astype(jnp.float32), g_ref[...], b_ref[...])
    pooled = jnp.dot(pool_ref[...], xn, preferred_element_type=jnp.float32)   # (B, C)
    out = jnp.dot(pooled, hw_ref[...], preferred_element_type=jnp.float32) + hb_ref[...]
    o_ref[...] = out.astype(o_ref.dtype)


def _swin_block_kernel(x_ref, ln1_g, ln1_b, wq, wk, wv, bq, bk, bv, bias_ref,
                       wproj, proj_b, ln2_g, ln2_b, fc1_w, fc1_b, fc2_w, fc2_b,
                       o_ref, *, heads, scale):
    """Whole Swin block on (M, C) tokens in window order (M = num_windows * L).

    bias_ref: (heads, M, M) static additive bias containing the relative
    position bias replicated block-diagonally, the shift mask (if any) and
    -1e9 on cross-window entries -> exact per-window softmax.
    """
    xn = _ln(x_ref[...].astype(jnp.float32), ln1_g[...], ln1_b[...])

    att = None
    for h in range(heads):  # heads is small & static -> unrolled
        q = (jnp.dot(xn, wq[h], preferred_element_type=jnp.float32) + bq[h]) * scale
        k = jnp.dot(xn, wk[h], preferred_element_type=jnp.float32) + bk[h]
        v = jnp.dot(xn, wv[h], preferred_element_type=jnp.float32) + bv[h]
        s = jnp.einsum("ld,md->lm", q, k, preferred_element_type=jnp.float32)
        s = s + bias_ref[h]
        s = s - jnp.max(s, axis=-1, keepdims=True)
        p = jnp.exp(s)
        p = p * pl.reciprocal(jnp.sum(p, axis=-1, keepdims=True), approx=True)
        o_h = jnp.einsum("lm,md->ld", p, v, preferred_element_type=jnp.float32)
        contrib = jnp.dot(o_h, wproj[h], preferred_element_type=jnp.float32)
        att = contrib if att is None else att + contrib

    # residual around norm1(x), matching the reference module exactly
    y = xn + att + proj_b[...]

    yn = _ln(y, ln2_g[...], ln2_b[...])
    h1 = _gelu_tanh(jnp.dot(yn, fc1_w[...], preferred_element_type=jnp.float32) + fc1_b[...])
    h2 = jnp.dot(h1, fc2_w[...], preferred_element_type=jnp.float32) + fc2_b[...]
    o_ref[...] = (y + h2).astype(o_ref.dtype)


# --------------------------- setup helpers (host) --------------------------
def relative_position_index(window_size):
    wh, ww = window_size
    coords = np.stack(np.meshgrid(np.arange(wh), np.arange(ww), indexing="ij"))
    cf = coords.reshape(2, -1)
    rel = cf[:, :, None] - cf[:, None, :]
    rel = rel.transpose(1, 2, 0).astype(np.int64)
    rel[:, :, 0] += wh - 1
    rel[:, :, 1] += ww - 1
    rel[:, :, 0] *= 2 * ww - 1
    return rel.sum(-1)  # (L, L)


def make_attn_mask(H, W, window_size, shift_size):
    wh, ww = window_size
    img_mask = np.zeros((1, H, W, 1), np.float32)
    h_slices = (slice(0, -wh), slice(-wh, -shift_size[0]), slice(-shift_size[0], None))
    w_slices = (slice(0, -ww), slice(-ww, -shift_size[1]), slice(-shift_size[1], None))
    cnt = 0
    for h in h_slices:
        for w in w_slices:
            img_mask[:, h, w, :] = cnt
            cnt += 1
    mw = (img_mask.reshape(1, H // wh, wh, W // ww, ww, 1)
          .transpose(0, 1, 3, 2, 4, 5).reshape(-1, wh * ww))
    mask = mw[:, None, :] - mw[:, :, None]
    return np.where(mask != 0, -100.0, 0.0).astype(np.float32)  # (nW, L, L)


def build_block_attn_bias(table_np, rpi, L, n_win_total, shift_mask):
    """Fold rel-pos bias + shift mask + cross-window masking into one static
    (heads, M, M) block-diagonal bias (M = n_win_total * L)."""
    heads = table_np.shape[1]
    rel = table_np[rpi.reshape(-1)].reshape(L, L, heads).transpose(2, 0, 1)  # (heads,L,L)
    M = n_win_total * L
    bias = np.full((heads, M, M), _NEG_INF, np.float32)
    nW = shift_mask.shape[0] if shift_mask is not None else 1
    for w in range(n_win_total):
        blk = rel if shift_mask is None else rel + shift_mask[w % nW][None, :, :]
        bias[:, w * L:(w + 1) * L, w * L:(w + 1) * L] = blk
    return jnp.asarray(bias)


def _per_head_cols(w_np, heads, hd):
    # (C, heads*hd) with head-major columns -> (heads, C, hd)
    C = w_np.shape[0]
    return jnp.asarray(w_np.reshape(C, heads, hd).transpose(1, 0, 2))


def _trunc_normal(key, shape, std=0.02):
    return (std * jax.random.truncated_normal(key, -2.0, 2.0, shape)).astype(jnp.float32)


def init_swin_params(key, batch):
    keys = iter(jax.random.split(key, 64))
    wh, ww = WINDOW_SIZE
    L = wh * ww
    rpi = relative_position_index(WINDOW_SIZE)
    C = EMBED_DIM
    patch_shape = [IMG_SIZE[0] // PATCH_SIZE[0], IMG_SIZE[1] // PATCH_SIZE[1]]
    params = {
        "patch_w": _trunc_normal(next(keys), (PATCH_SIZE[0] * PATCH_SIZE[1] * 3, C)),
        "patch_b": jnp.zeros((1, C), jnp.float32),
        "layers": [],
    }
    for idx_block, depth in enumerate(BLOCK_DEPTHS):
        if idx_block > 0:
            params["layers"].append({
                "type": "merge",
                "ln_g": jnp.ones((1, 4 * C), jnp.float32),
                "ln_b": jnp.zeros((1, 4 * C), jnp.float32),
                "red_w": _trunc_normal(next(keys), (4 * C, 2 * C)),
                "red_b": jnp.zeros((1, 2 * C), jnp.float32),
            })
            C *= 2
            patch_shape = [patch_shape[0] // 2, patch_shape[1] // 2]
        heads = NUM_HEADS[idx_block]
        hd = C // heads
        n_win_total = batch * (patch_shape[0] // wh) * (patch_shape[1] // ww)
        for n_layer in range(depth):
            shift = (wh // 2, ww // 2) if n_layer % 2 == 1 else None
            table = np.asarray(_trunc_normal(next(keys), ((2 * wh - 1) * (2 * ww - 1), heads)))
            shift_mask = (make_attn_mask(patch_shape[0], patch_shape[1], WINDOW_SIZE, shift)
                          if shift is not None else None)
            attn_bias = build_block_attn_bias(table, rpi, L, n_win_total, shift_mask)
            # nn.Linear(C, 3C) weight, pre-split per head (pure layout, no math change)
            qkv_w = np.asarray(_trunc_normal(next(keys), (C, 3 * C)))
            proj_w = np.asarray(_trunc_normal(next(keys), (C, C)))
            wq = _per_head_cols(qkv_w[:, 0 * C:1 * C], heads, hd)
            wk = _per_head_cols(qkv_w[:, 1 * C:2 * C], heads, hd)
            wv = _per_head_cols(qkv_w[:, 2 * C:3 * C], heads, hd)
            params["layers"].append({
                "type": "block", "heads": heads, "shift": shift,
                "attn_bias": attn_bias,
                "ln1_g": jnp.ones((1, C), jnp.float32), "ln1_b": jnp.zeros((1, C), jnp.float32),
                "wq": wq, "wk": wk, "wv": wv,
                "bq": jnp.zeros((heads, 1, hd), jnp.float32),
                "bk": jnp.zeros((heads, 1, hd), jnp.float32),
                "bv": jnp.zeros((heads, 1, hd), jnp.float32),
                "wproj": jnp.asarray(proj_w.reshape(heads, hd, C)),
                "proj_b": jnp.zeros((1, C), jnp.float32),
                "ln2_g": jnp.ones((1, C), jnp.float32), "ln2_b": jnp.zeros((1, C), jnp.float32),
                "fc1_w": _trunc_normal(next(keys), (C, 4 * C)),
                "fc1_b": jnp.zeros((1, 4 * C), jnp.float32),
                "fc2_w": _trunc_normal(next(keys), (4 * C, C)),
                "fc2_b": jnp.zeros((1, C), jnp.float32),
            })
    params["norm_g"] = jnp.ones((1, C), jnp.float32)
    params["norm_b"] = jnp.zeros((1, C), jnp.float32)
    params["head_w"] = _trunc_normal(next(keys), (C, OUTPUT_DIM))
    params["head_b"] = jnp.zeros((1, OUTPUT_DIM), jnp.float32)
    return params


# ------------------------------- forward pass ------------------------------
def window_partition(x, window_size):
    B, H, W, C = x.shape
    wh, ww = window_size
    x = x.reshape(B, H // wh, wh, W // ww, ww, C)
    return x.transpose(0, 1, 3, 2, 4, 5).reshape(-1, wh, ww, C)


def window_reverse(windows, window_size, H, W):
    wh, ww = window_size
    C = windows.shape[-1]
    x = windows.reshape(-1, H // wh, W // ww, wh, ww, C)
    return x.transpose(0, 1, 3, 2, 4, 5).reshape(-1, H, W, C)


def swin_block_forward(x, p):
    B, H, W, C = x.shape
    wh, ww = WINDOW_SIZE
    hd = C // p["heads"]

    # roll + window partition (pure permutation; commutes with per-token ops)
    if p["shift"] is not None:
        xs = jnp.roll(x, (-p["shift"][0], -p["shift"][1]), axis=(1, 2))
    else:
        xs = x
    xw = window_partition(xs, WINDOW_SIZE).reshape(-1, C)   # (M, C) window order
    M = xw.shape[0]

    kern = functools.partial(_swin_block_kernel, heads=p["heads"],
                             scale=float(hd) ** (-0.5))
    out = pl.pallas_call(
        kern, out_shape=jax.ShapeDtypeStruct((M, C), x.dtype),
    )(xw, p["ln1_g"], p["ln1_b"], p["wq"], p["wk"], p["wv"],
      p["bq"], p["bk"], p["bv"], p["attn_bias"],
      p["wproj"], p["proj_b"], p["ln2_g"], p["ln2_b"],
      p["fc1_w"], p["fc1_b"], p["fc2_w"], p["fc2_b"])

    out = window_reverse(out.reshape(-1, wh, ww, C), WINDOW_SIZE, H, W)
    if p["shift"] is not None:
        out = jnp.roll(out, (p["shift"][0], p["shift"][1]), axis=(1, 2))
    return out


def patch_merging_forward(x, p):
    B, H, W, C = x.shape
    xm = (x.reshape(B, H // 2, 2, W // 2, 2, C)
          .transpose(0, 1, 3, 2, 4, 5)
          .reshape(-1, 4 * C))
    out = pl.pallas_call(
        _merge_kernel,
        out_shape=jax.ShapeDtypeStruct((xm.shape[0], 2 * C), x.dtype),
    )(xm, p["ln_g"], p["ln_b"], p["red_w"], p["red_b"])
    return out.reshape(B, H // 2, W // 2, 2 * C)


def swin_transformer_forward(x, params):
    B, Hin, Win, _ = x.shape
    ph, pw = PATCH_SIZE
    Hp, Wp = Hin // ph, Win // pw

    # patch embedding: patchify + linear projection (one kernel)
    xp = (x.reshape(B, Hp, ph, Wp, pw, 3)
          .transpose(0, 1, 3, 2, 4, 5)
          .reshape(B * Hp * Wp, ph * pw * 3))
    x = pl.pallas_call(
        _linear_kernel,
        out_shape=jax.ShapeDtypeStruct((B * Hp * Wp, EMBED_DIM), x.dtype),
    )(xp, params["patch_w"], params["patch_b"]).reshape(B, Hp, Wp, EMBED_DIM)

    for p in params["layers"]:
        if p["type"] == "merge":
            x = patch_merging_forward(x, p)
        else:
            x = swin_block_forward(x, p)

    # fused tail: LN -> adaptive avg pool (1,1) -> head
    B_, H_, W_, C_ = x.shape
    HW = H_ * W_
    pool = jnp.asarray(np.kron(np.eye(B_, dtype=np.float32),
                               np.full((1, HW), 1.0 / HW, np.float32)))  # (B, B*HW)
    return pl.pallas_call(
        _tail_kernel,
        out_shape=jax.ShapeDtypeStruct((B_, OUTPUT_DIM), x.dtype),
    )(x.reshape(-1, C_), params["norm_g"], params["norm_b"], pool,
      params["head_w"], params["head_b"])


# ---------------------------------- main -----------------------------------
if __name__ == "__main__":
    key = jax.random.PRNGKey(0)
    k_inp, k_par = jax.random.split(key)
    x = jax.random.normal(k_inp, (BATCH, IMG_SIZE[0], IMG_SIZE[1], 3), jnp.float32)
    params = init_swin_params(k_par, BATCH)

    fwd = jax.jit(lambda inp: swin_transformer_forward(inp, params))
    logits = jax.block_until_ready(fwd(x))

    assert logits.shape == (BATCH, OUTPUT_DIM), logits.shape
    assert bool(jnp.all(jnp.isfinite(logits)))
    print("KERNEL_OK")
</pallas_src>

<mosaic_0001>
module attributes {stable_mosaic.version = 11 : i64} {
  func.func @_linear_kernel(%arg0: memref<32x12xf32, #tpu.memory_space<vmem>>, %arg1: memref<12x16xf32, #tpu.memory_space<vmem>>, %arg2: memref<1x16xf32, #tpu.memory_space<vmem>>, %arg3: memref<32x16xf32, #tpu.memory_space<vmem>>) attributes {dimension_semantics = [], scalar_prefetch = 0 : i64, scratch_operands = 0 : i64, tpu.core_type = #tpu.core_type<tc>} {
    %c0 = arith.constant 0 : index
    %c0_0 = arith.constant 0 : index
    %0 = vector.load %arg0[%c0, %c0_0] : memref<32x12xf32, #tpu.memory_space<vmem>>, vector<32x12xf32>
    %c0_1 = arith.constant 0 : index
    %c0_2 = arith.constant 0 : index
    %1 = vector.load %arg1[%c0_1, %c0_2] : memref<12x16xf32, #tpu.memory_space<vmem>>, vector<12x16xf32>
    %cst = arith.constant dense<0.000000e+00> : vector<32x16xf32>
    %2 = tpu.matmul %0, %1, %cst {dimension_numbers = #tpu.dot_dimension_numbers<[1], [0], [0], [1], [0, 0, 1, 1], [], []>} : vector<32x12xf32>, vector<12x16xf32>, vector<32x16xf32> -> vector<32x16xf32>
    %c0_3 = arith.constant 0 : index
    %c0_4 = arith.constant 0 : index
    %3 = vector.load %arg2[%c0_3, %c0_4] : memref<1x16xf32, #tpu.memory_space<vmem>>, vector<1x16xf32>
    %4 = vector.broadcast %3 : vector<1x16xf32> to vector<32x16xf32>
    %5 = arith.addf %2, %4 : vector<32x16xf32>
    %c0_5 = arith.constant 0 : index
    %c0_6 = arith.constant 0 : index
    %6 = vector.load %arg3[%c0_5, %c0_6] : memref<32x16xf32, #tpu.memory_space<vmem>>, vector<32x16xf32>
    tpu.vector_store %arg3[%c0_5, %c0_6], %5 {strides = array<i32>} : memref<32x16xf32, #tpu.memory_space<vmem>>, vector<32x16xf32>,
    return
  }
}

module attributes {stable_mosaic.version = 11 : i64} {
  func.func @_swin_block_kernel(%arg0: memref<32x16xf32, #tpu.memory_space<vmem>>, %arg1: memref<1x16xf32, #tpu.memory_space<vmem>>, %arg2: memref<1x16xf32, #tpu.memory_space<vmem>>, %arg3: memref<2x16x8xf32, #tpu.memory_space<vmem>>, %arg4: memref<2x16x8xf32, #tpu.memory_space<vmem>>, %arg5: memref<2x16x8xf32, #tpu.memory_space<vmem>>, %arg6: memref<2x1x8xf32, #tpu.memory_space<vmem>>, %arg7: memref<2x1x8xf32, #tpu.memory_space<vmem>>, %arg8: memref<2x1x8xf32, #tpu.memory_space<vmem>>, %arg9: memref<2x32x32xf32, #tpu.memory_space<vmem>>, %arg10: memref<2x8x16xf32, #tpu.memory_space<vmem>>, %arg11: memref<1x16xf32, #tpu.memory_space<vmem>>, %arg12: memref<1x16xf32, #tpu.memory_space<vmem>>, %arg13: memref<1x16xf32, #tpu.memory_space<vmem>>, %arg14: memref<16x64xf32, #tpu.memory_space<vmem>>, %arg15: memref<1x64xf32, #tpu.memory_space<vmem>>, %arg16: memref<64x16xf32, #tpu.memory_space<vmem>>, %arg17: memref<1x16xf32, #tpu.memory_space<vmem>>, %arg18: memref<32x16xf32, #tpu.memory_space<vmem>>) attributes {dimension_semantics = [], scalar_prefetch = 0 : i64, scratch_operands = 0 : i64, tpu.core_type = #tpu.core_type<tc>} {
    %c0 = arith.constant 0 : index
    %c0_0 = arith.constant 0 : index
    %0 = vector.load %arg0[%c0, %c0_0] : memref<32x16xf32, #tpu.memory_space<vmem>>, vector<32x16xf32>
    %c0_1 = arith.constant 0 : index
    %c0_2 = arith.constant 0 : index
    %1 = vector.load %arg1[%c0_1, %c0_2] : memref<1x16xf32, #tpu.memory_space<vmem>>, vector<1x16xf32>
    %c0_3 = arith.constant 0 : index
    %c0_4 = arith.constant 0 : index
    %2 = vector.load %arg2[%c0_3, %c0_4] : memref<1x16xf32, #tpu.memory_space<vmem>>, vector<1x16xf32>
    %cst = arith.constant dense<0.000000e+00> : vector<32xf32>
    %3 = vector.multi_reduction <add>, %0, %cst [1] : vector<32x16xf32> to vector<32xf32>
    %4 = vector.shape_cast %3 : vector<32xf32> to vector<32x1xf32>
    %cst_5 = arith.constant 1.600000e+01 : f32
    %5 = vector.broadcast %cst_5 : f32 to vector<32x1xf32>
    %6 = arith.divf %4, %5 : vector<32x1xf32>
    %7 = vector.broadcast %6 : vector<32x1xf32> to vector<32x16xf32>
    %8 = arith.subf %0, %7 : vector<32x16xf32>
    %9 = arith.mulf %8, %8 : vector<32x16xf32>
    %cst_6 = arith.constant dense<0.000000e+00> : vector<32xf32>
    %10 = vector.multi_reduction <add>, %9, %cst_6 [1] : vector<32x16xf32> to vector<32xf32>
    %11 = vector.shape_cast %10 : vector<32xf32> to vector<32x1xf32>
    %cst_7 = arith.constant 1.600000e+01 : f32
    %12 = vector.broadcast %cst_7 : f32 to vector<32x1xf32>
    %13 = arith.divf %11, %12 : vector<32x1xf32>
    %14 = vector.broadcast %6 : vector<32x1xf32> to vector<32x16xf32>
    %15 = arith.subf %0, %14 : vector<32x16xf32>
    %cst_8 = arith.constant 9.99999974E-6 : f32
    %16 = vector.broadcast %cst_8 : f32 to vector<32x1xf32>
    %17 = arith.addf %13, %16 : vector<32x1xf32>
    %18 = math.rsqrt %17 : vector<32x1xf32>
    %19 = vector.broadcast %18 : vector<32x1xf32> to vector<32x16xf32>
    %20 = arith.mulf %15, %19 : vector<32x16xf32>
    %21 = vector.broadcast %1 : vector<1x16xf32> to vector<32x16xf32>
    %22 = arith.mulf %20, %21 : vector<32x16xf32>
    %23 = vector.broadcast %2 : vector<1x16xf32> to vector<32x16xf32>
    %24 = arith.addf %22, %23 : vector<32x16xf32>
    %c0_9 = arith.constant 0 : index
    %c0_10 = arith.constant 0 : index
    %c0_11 = arith.constant 0 : index
    %25 = vector.load %arg3[%c0_9, %c0_10, %c0_11] : memref<2x16x8xf32, #tpu.memory_space<vmem>>, vector<1x16x8xf32>
    %26 = vector.shape_cast %25 : vector<1x16x8xf32> to vector<16x8xf32>
    %cst_12 = arith.constant dense<0.000000e+00> : vector<32x8xf32>
    %27 = tpu.matmul %24, %26, %cst_12 {dimension_numbers = #tpu.dot_dimension_numbers<[1], [0], [0], [1], [0, 0, 1, 1], [], []>} : vector<32x16xf32>, vector<16x8xf32>, vector<32x8xf32> -> vector<32x8xf32>
    %c0_13 = arith.constant 0 : index
    %c0_14 = arith.constant 0 : index
    %c0_15 = arith.constant 0 : index
    %28 = vector.load %arg6[%c0_13, %c0_14, %c0_15] : memref<2x1x8xf32, #tpu.memory_space<vmem>>, vector<1x1x8xf32>
    %29 = vector.shape_cast %28 : vector<1x1x8xf32> to vector<1x8xf32>
    %30 = vector.broadcast %29 : vector<1x8xf32> to vector<32x8xf32>
    %31 = arith.addf %27, %30 : vector<32x8xf32>
    %cst_16 = arith.constant 0.353553385 : f32
    %32 = vector.broadcast %cst_16 : f32 to vector<32x8xf32>
    %33 = arith.mulf %31, %32 : vector<32x8xf32>
    %c0_17 = arith.constant 0 : index
    %c0_18 = arith.constant 0 : index
    %c0_19 = arith.constant 0 : index
    %34 = vector.load %arg4[%c0_17, %c0_18, %c0_19] : memref<2x16x8xf32, #tpu.memory_space<vmem>>, vector<1x16x8xf32>
    %35 = vector.shape_cast %34 : vector<1x16x8xf32> to vector<16x8xf32>
    %cst_20 = arith.constant dense<0.000000e+00> : vector<32x8xf32>
    %36 = tpu.matmul %24, %35, %cst_20 {dimension_numbers = #tpu.dot_dimension_numbers<[1], [0], [0], [1], [0, 0, 1, 1], [], []>} : vector<32x16xf32>, vector<16x8xf32>, vector<32x8xf32> -> vector<32x8xf32>
    %c0_21 = arith.constant 0 : index
    %c0_22 = arith.constant 0 : index
    %c0_23 = arith.constant 0 : index
    %37 = vector.load %arg7[%c0_21, %c0_22, %c0_23] : memref<2x1x8xf32, #tpu.memory_space<vmem>>, vector<1x1x8xf32>
    %38 = vector.shape_cast %37 : vector<1x1x8xf32> to vector<1x8xf32>
    %39 = vector.broadcast %38 : vector<1x8xf32> to vector<32x8xf32>
    %40 = arith.addf %36, %39 : vector<32x8xf32>
    %c0_24 = arith.constant 0 : index
    %c0_25 = arith.constant 0 : index
    %c0_26 = arith.constant 0 : index
    %41 = vector.load %arg5[%c0_24, %c0_25, %c0_26] : memref<2x16x8xf32, #tpu.memory_space<vmem>>, vector<1x16x8xf32>
    %42 = vector.shape_cast %41 : vector<1x16x8xf32> to vector<16x8xf32>
    %cst_27 = arith.constant dense<0.000000e+00> : vector<32x8xf32>
    %43 = tpu.matmul %24, %42, %cst_27 {dimension_numbers = #tpu.dot_dimension_numbers<[1], [0], [0], [1], [0, 0, 1, 1], [], []>} : vector<32x16xf32>, vector<16x8xf32>, vector<32x8xf32> -> vector<32x8xf32>
    %c0_28 = arith.constant 0 : index
    %c0_29 = arith.constant 0 : index
    %c0_30 = arith.constant 0 : index
    %44 = vector.load %arg8[%c0_28, %c0_29, %c0_30] : memref<2x1x8xf32, #tpu.memory_space<vmem>>, vector<1x1x8xf32>
    %45 = vector.shape_cast %44 : vector<1x1x8xf32> to vector<1x8xf32>
    %46 = vector.broadcast %45 : vector<1x8xf32> to vector<32x8xf32>
    %47 = arith.addf %43, %46 : vector<32x8xf32>
    "tpu.trace_start"() <{level = 10 : i32, message = "ld,md->lm"}> : () -> ()
    %cst_31 = arith.constant dense<0.000000e+00> : vector<32x32xf32>
    %48 = tpu.matmul %33, %40, %cst_31 {dimension_numbers = #tpu.dot_dimension_numbers<[1], [1], [0], [0], [0, 0, 1, 0], [], []>} : vector<32x8xf32>, vector<32x8xf32>, vector<32x32xf32> -> vector<32x32xf32>
    "tpu.trace_stop"() : () -> ()
    %c0_32 = arith.constant 0 : index
    %c0_33 = arith.constant 0 : index
    %c0_34 = arith.constant 0 : index
    %49 = vector.load %arg9[%c0_32, %c0_33, %c0_34] : memref<2x32x32xf32, #tpu.memory_space<vmem>>, vector<1x32x32xf32>
    %50 = vector.shape_cast %49 : vector<1x32x32xf32> to vector<32x32xf32>
    %51 = arith.addf %48, %50 : vector<32x32xf32>
    %cst_35 = arith.constant dense<0xFF800000> : vector<32xf32>
    %52 = vector.multi_reduction <maximumf>, %51, %cst_35 [1] : vector<32x32xf32> to vector<32xf32>
    %53 = vector.shape_cast %52 : vector<32xf32> to vector<32x1xf32>
    %54 = vector.broadcast %53 : vector<32x1xf32> to vector<32x32xf32>
    %55 = arith.subf %51, %54 : vector<32x32xf32>
    %56 = math.exp %55 : vector<32x32xf32>
    %cst_36 = arith.constant dense<0.000000e+00> : vector<32xf32>
    %57 = vector.multi_reduction <add>, %56, %cst_36 [1] : vector<32x32xf32> to vector<32xf32>
    %58 = vector.shape_cast %57 : vector<32xf32> to vector<32x1xf32>
    %59 = tpu.reciprocal %58 {approx = true} : vector<32x1xf32> -> vector<32x1xf32>
    %60 = vector.broadcast %59 : vector<32x1xf32> to vector<32x32xf32>
    %61 = arith.mulf %56, %60 : vector<32x32xf32>
    "tpu.trace_start"() <{level = 10 : i32, message = "lm,md->ld"}> : () -> ()
    %cst_37 = arith.constant dense<0.000000e+00> : vector<32x8xf32>
    %62 = tpu.matmul %61, %47, %cst_37 {dimension_numbers = #tpu.dot_dimension_numbers<[1], [0], [0], [1], [0, 0, 1, 1], [], []>} : vector<32x32xf32>, vector<32x8xf32>, vector<32x8xf32> -> vector<32x8xf32>
    "tpu.trace_stop"() : () -> ()
    %c0_38 = arith.constant 0 : index
    %c0_39 = arith.constant 0 : index
    %c0_40 = arith.constant 0 : index
    %63 = vector.load %arg10[%c0_38, %c0_39, %c0_40] : memref<2x8x16xf32, #tpu.memory_space<vmem>>, vector<1x8x16xf32>
    %64 = vector.shape_cast %63 : vector<1x8x16xf32> to vector<8x16xf32>
    %cst_41 = arith.constant dense<0.000000e+00> : vector<32x16xf32>
    %65 = tpu.matmul %62, %64, %cst_41 {dimension_numbers = #tpu.dot_dimension_numbers<[1], [0], [0], [1], [0, 0, 1, 1], [], []>} : vector<32x8xf32>, vector<8x16xf32>, vector<32x16xf32> -> vector<32x16xf32>
    %c1 = arith.constant 1 : index
    %c0_42 = arith.constant 0 : index
    %c0_43 = arith.constant 0 : index
    %66 = vector.load %arg3[%c1, %c0_42, %c0_43] : memref<2x16x8xf32, #tpu.memory_space<vmem>>, vector<1x16x8xf32>
    %67 = vector.shape_cast %66 : vector<1x16x8xf32> to vector<16x8xf32>
    %cst_44 = arith.constant dense<0.000000e+00> : vector<32x8xf32>
    %68 = tpu.matmul %24, %67, %cst_44 {dimension_numbers = #tpu.dot_dimension_numbers<[1], [0], [0], [1], [0, 0, 1, 1], [], []>} : vector<32x16xf32>, vector<16x8xf32>, vector<32x8xf32> -> vector<32x8xf32>
    %c1_45 = arith.constant 1 : index
    %c0_46 = arith.constant 0 : index
    %c0_47 = arith.constant 0 : index
    %69 = vector.load %arg6[%c1_45, %c0_46, %c0_47] : memref<2x1x8xf32, #tpu.memory_space<vmem>>, vector<1x1x8xf32>
    %70 = vector.shape_cast %69 : vector<1x1x8xf32> to vector<1x8xf32>
    %71 = vector.broadcast %70 : vector<1x8xf32> to vector<32x8xf32>
    %72 = arith.addf %68, %71 : vector<32x8xf32>
    %cst_48 = arith.constant 0.353553385 : f32
    %73 = vector.broadcast %cst_48 : f32 to vector<32x8xf32>
    %74 = arith.mulf %72, %73 : vector<32x8xf32>
    %c1_49 = arith.constant 1 : index
    %c0_50 = arith.constant 0 : index
    %c0_51 = arith.constant 0 : index
    %75 = vector.load %arg4[%c1_49, %c0_50, %c0_51] : memref<2x16x8xf32, #tpu.memory_space<vmem>>, vector<1x16x8xf32>
    %76 = vector.shape_cast %75 : vector<1x16x8xf32> to vector<16x8xf32>
    %cst_52 = arith.constant dense<0.000000e+00> : vector<32x8xf32>
    %77 = tpu.matmul %24, %76, %cst_52 {dimension_numbers = #tpu.dot_dimension_numbers<[1], [0], [0], [1], [0, 0, 1, 1], [], []>} : vector<32x16xf32>, vector<16x8xf32>, vector<32x8xf32> -> vector<32x8xf32>
    %c1_53 = arith.constant 1 : index
    %c0_54 = arith.constant 0 : index
    %c0_55 = arith.constant 0 : index
    %78 = vector.load %arg7[%c1_53, %c0_54, %c0_55] : memref<2x1x8xf32, #tpu.memory_space<vmem>>, vector<1x1x8xf32>
    %79 = vector.shape_cast %78 : vector<1x1x8xf32> to vector<1x8xf32>
    %80 = vector.broadcast %79 : vector<1x8xf32> to vector<32x8xf32>
    %81 = arith.addf %77, %80 : vector<32x8xf32>
    %c1_56 = arith.constant 1 : index
    %c0_57 = arith.constant 0 : index
    %c0_58 = arith.constant 0 : index
    %82 = vector.load %arg5[%c1_56, %c0_57, %c0_58] : memref<2x16x8xf32, #tpu.memory_space<vmem>>, vector<1x16x8xf32>
    %83 = vector.shape_cast %82 : vector<1x16x8xf32> to vector<16x8xf32>
    %cst_59 = arith.constant dense<0.000000e+00> : vector<32x8xf32>
    %84 = tpu.matmul %24, %83, %cst_59 {dimension_numbers = #tpu.dot_dimension_numbers<[1], [0], [0], [1], [0, 0, 1, 1], [], []>} : vector<32x16xf32>, vector<16x8xf32>, vector<32x8xf32> -> vector<32x8xf32>
    %c1_60 = arith.constant 1 : index
    %c0_61 = arith.constant 0 : index
    %c0_62 = arith.constant 0 : index
    %85 = vector.load %arg8[%c1_60, %c0_61, %c0_62] : memref<2x1x8xf32, #tpu.memory_space<vmem>>, vector<1x1x8xf32>
    %86 = vector.shape_cast %85 : vector<1x1x8xf32> to vector<1x8xf32>
    %87 = vector.broadcast %86 : vector<1x8xf32> to vector<32x8xf32>
    %88 = arith.addf %84, %87 : vector<32x8xf32>
    "tpu.trace_start"() <{level = 10 : i32, message = "ld,md->lm"}> : () -> ()
    %cst_63 = arith.constant dense<0.000000e+00> : vector<32x32xf32>
    %89 = tpu.matmul %74, %81, %cst_63 {dimension_numbers = #tpu.dot_dimension_numbers<[1], [1], [0], [0], [0, 0, 1, 0], [], []>} : vector<32x8xf32>, vector<32x8xf32>, vector<32x32xf32> -> vector<32x32xf32>
    "tpu.trace_stop"() : () -> ()
    %c1_64 = arith.constant 1 : index
    %c0_65 = arith.constant 0 : index
    %c0_66 = arith.constant 0 : index
    %90 = vector.load %arg9[%c1_64, %c0_65, %c0_66] : memref<2x32x32xf32, #tpu.memory_space<vmem>>, vector<1x32x32xf32>
    %91 = vector.shape_cast %90 : vector<1x32x32xf32> to vector<32x32xf32>
    %92 = arith.addf %89, %91 : vector<32x32xf32>
    %cst_67 = arith.constant dense<0xFF800000> : vector<32xf32>
    %93 = vector.multi_reduction <maximumf>, %92, %cst_67 [1] : vector<32x32xf32> to vector<32xf32>
    %94 = vector.shape_cast %93 : vector<32xf32> to vector<32x1xf32>
    %95 = vector.broadcast %94 : vector<32x1xf32> to vector<32x32xf32>
    %96 = arith.subf %92, %95 : vector<32x32xf32>
    %97 = math.exp %96 : vector<32x32xf32>
    %cst_68 = arith.constant dense<0.000000e+00> : vector<32xf32>
    %98 = vector.multi_reduction <add>, %97, %cst_68 [1] : vector<32x32xf32> to vector<32xf32>
    %99 = vector.shape_cast %98 : vector<32xf32> to vector<32x1xf32>
    %100 = tpu.reciprocal %99 {approx = true} : vector<32x1xf32> -> vector<32x1xf32>
    %101 = vector.broadcast %100 : vector<32x1xf32> to vector<32x32xf32>
    %102 = arith.mulf %97, %101 : vector<32x32xf32>
    "tpu.trace_start"() <{level = 10 : i32, message = "lm,md->ld"}> : () -> ()
    %cst_69 = arith.constant dense<0.000000e+00> : vector<32x8xf32>
    %103 = tpu.matmul %102, %88, %cst_69 {dimension_numbers = #tpu.dot_dimension_numbers<[1], [0], [0], [1], [0, 0, 1, 1], [], []>} : vector<32x32xf32>, vector<32x8xf32>, vector<32x8xf32> -> vector<32x8xf32>
    "tpu.trace_stop"() : () -> ()
    %c1_70 = arith.constant 1 : index
    %c0_71 = arith.constant 0 : index
    %c0_72 = arith.constant 0 : index
    %104 = vector.load %arg10[%c1_70, %c0_71, %c0_72] : memref<2x8x16xf32, #tpu.memory_space<vmem>>, vector<1x8x16xf32>
    %105 = vector.shape_cast %104 : vector<1x8x16xf32> to vector<8x16xf32>
    %cst_73 = arith.constant dense<0.000000e+00> : vector<32x16xf32>
    %106 = tpu.matmul %103, %105, %cst_73 {dimension_numbers = #tpu.dot_dimension_numbers<[1], [0], [0], [1], [0, 0, 1, 1], [], []>} : vector<32x8xf32>, vector<8x16xf32>, vector<32x16xf32> -> vector<32x16xf32>
    %107 = arith.addf %65, %106 : vector<32x16xf32>
    %108 = arith.addf %24, %107 : vector<32x16xf32>
    %c0_74 = arith.constant 0 : index
    %c0_75 = arith.constant 0 : index
    %109 = vector.load %arg11[%c0_74, %c0_75] : memref<1x16xf32, #tpu.memory_space<vmem>>, vector<1x16xf32>
    %110 = vector.broadcast %109 : vector<1x16xf32> to vector<32x16xf32>
    %111 = arith.addf %108, %110 : vector<32x16xf32>
    %c0_76 = arith.constant 0 : index
    %c0_77 = arith.constant 0 : index
    %112 = vector.load %arg12[%c0_76, %c0_77] : memref<1x16xf32, #tpu.memory_space<vmem>>, vector<1x16xf32>
    %c0_78 = arith.constant 0 : index
    %c0_79 = arith.constant 0 : index
    %113 = vector.load %arg13[%c0_78, %c0_79] : memref<1x16xf32, #tpu.memory_space<vmem>>, vector<1x16xf32>
    %cst_80 = arith.constant dense<0.000000e+00> : vector<32xf32>
    %114 = vector.multi_reduction <add>, %111, %cst_80 [1] : vector<32x16xf32> to vector<32xf32>
    %115 = vector.shape_cast %114 : vector<32xf32> to vector<32x1xf32>
    %cst_81 = arith.constant 1.600000e+01 : f32
    %116 = vector.broadcast %cst_81 : f32 to vector<32x1xf32>
    %117 = arith.divf %115, %116 : vector<32x1xf32>
    %118 = vector.broadcast %117 : vector<32x1xf32> to vector<32x16xf32>
    %119 = arith.subf %111, %118 : vector<32x16xf32>
    %120 = arith.mulf %119, %119 : vector<32x16xf32>
    %cst_82 = arith.constant dense<0.000000e+00> : vector<32xf32>
    %121 = vector.multi_reduction <add>, %120, %cst_82 [1] : vector<32x16xf32> to vector<32xf32>
    %122 = vector.shape_cast %121 : vector<32xf32> to vector<32x1xf32>
    %cst_83 = arith.constant 1.600000e+01 : f32
    %123 = vector.broadcast %cst_83 : f32 to vector<32x1xf32>
    %124 = arith.divf %122, %123 : vector<32x1xf32>
    %125 = vector.broadcast %117 : vector<32x1xf32> to vector<32x16xf32>
    %126 = arith.subf %111, %125 : vector<32x16xf32>
    %cst_84 = arith.constant 9.99999974E-6 : f32
    %127 = vector.broadcast %cst_84 : f32 to vector<32x1xf32>
    %128 = arith.addf %124, %127 : vector<32x1xf32>
    %129 = math.rsqrt %128 : vector<32x1xf32>
    %130 = vector.broadcast %129 : vector<32x1xf32> to vector<32x16xf32>
    %131 = arith.mulf %126, %130 : vector<32x16xf32>
    %132 = vector.broadcast %112 : vector<1x16xf32> to vector<32x16xf32>
    %133 = arith.mulf %131, %132 : vector<32x16xf32>
    %134 = vector.broadcast %113 : vector<1x16xf32> to vector<32x16xf32>
    %135 = arith.addf %133, %134 : vector<32x16xf32>
    %c0_85 = arith.constant 0 : index
    %c0_86 = arith.constant 0 : index
    %136 = vector.load %arg14[%c0_85, %c0_86] : memref<16x64xf32, #tpu.memory_space<vmem>>, vector<16x64xf32>
    %cst_87 = arith.constant dense<0.000000e+00> : vector<32x64xf32>
    %137 = tpu.matmul %135, %136, %cst_87 {dimension_numbers = #tpu.dot_dimension_numbers<[1], [0], [0], [1], [0, 0, 1, 1], [], []>} : vector<32x16xf32>, vector<16x64xf32>, vector<32x64xf32> -> vector<32x64xf32>
    %c0_88 = arith.constant 0 : index
    %c0_89 = arith.constant 0 : index
    %138 = vector.load %arg15[%c0_88, %c0_89] : memref<1x64xf32, #tpu.memory_space<vmem>>, vector<1x64xf32>
    %139 = vector.broadcast %138 : vector<1x64xf32> to vector<32x64xf32>
    %140 = arith.addf %137, %139 : vector<32x64xf32>
    %cst_90 = arith.constant 5.000000e-01 : f32
    %141 = vector.broadcast %cst_90 : f32 to vector<32x64xf32>
    %142 = arith.mulf %141, %140 : vector<32x64xf32>
    %cst_91 = arith.constant 4.471500e-02 : f32
    %143 = vector.broadcast %cst_91 : f32 to vector<32x64xf32>
    %144 = arith.mulf %143, %140 : vector<32x64xf32>
    %145 = arith.mulf %144, %140 : vector<32x64xf32>
    %146 = arith.mulf %145, %140 : vector<32x64xf32>
    %147 = arith.addf %140, %146 : vector<32x64xf32>
    %cst_92 = arith.constant 0.797884583 : f32
    %148 = vector.broadcast %cst_92 : f32 to vector<32x64xf32>
    %149 = arith.mulf %148, %147 : vector<32x64xf32>
    %150 = math.tanh %149 : vector<32x64xf32>
    %cst_93 = arith.constant 1.000000e+00 : f32
    %151 = vector.broadcast %cst_93 : f32 to vector<32x64xf32>
    %152 = arith.addf %151, %150 : vector<32x64xf32>
    %153 = arith.mulf %142, %152 : vector<32x64xf32>
    %c0_94 = arith.constant 0 : index
    %c0_95 = arith.constant 0 : index
    %154 = vector.load %arg16[%c0_94, %c0_95] : memref<64x16xf32, #tpu.memory_space<vmem>>, vector<64x16xf32>
    %cst_96 = arith.constant dense<0.000000e+00> : vector<32x16xf32>
    %155 = tpu.matmul %153, %154, %cst_96 {dimension_numbers = #tpu.dot_dimension_numbers<[1], [0], [0], [1], [0, 0, 1, 1], [], []>} : vector<32x64xf32>, vector<64x16xf32>, vector<32x16xf32> -> vector<32x16xf32>
    %c0_97 = arith.constant 0 : index
    %c0_98 = arith.constant 0 : index
    %156 = vector.load %arg17[%c0_97, %c0_98] : memref<1x16xf32, #tpu.memory_space<vmem>>, vector<1x16xf32>
    %157 = vector.broadcast %156 : vector<1x16xf32> to vector<32x16xf32>
    %158 = arith.addf %155, %157 : vector<32x16xf32>
    %159 = arith.addf %111, %158 : vector<32x16xf32>
    %c0_99 = arith.constant 0 : index
    %c0_100 = arith.constant 0 : index
    %160 = vector.load %arg18[%c0_99, %c0_100] : memref<32x16xf32, #tpu.memory_space<vmem>>, vector<32x16xf32>
    tpu.vector_store %arg18[%c0_99, %c0_100], %159 {strides = array<i32>} : memref<32x16xf32, #tpu.memory_space<vmem>>, vector<32x16xf32>,
    return
  }
}

module attributes {stable_mosaic.version = 11 : i64} {
  func.func @_swin_block_kernel(%arg0: memref<8x32xf32, #tpu.memory_space<vmem>>, %arg1: memref<1x32xf32, #tpu.memory_space<vmem>>, %arg2: memref<1x32xf32, #tpu.memory_space<vmem>>, %arg3: memref<4x32x8xf32, #tpu.memory_space<vmem>>, %arg4: memref<4x32x8xf32, #tpu.memory_space<vmem>>, %arg5: memref<4x32x8xf32, #tpu.memory_space<vmem>>, %arg6: memref<4x1x8xf32, #tpu.memory_space<vmem>>, %arg7: memref<4x1x8xf32, #tpu.memory_space<vmem>>, %arg8: memref<4x1x8xf32, #tpu.memory_space<vmem>>, %arg9: memref<4x8x8xf32, #tpu.memory_space<vmem>>, %arg10: memref<4x8x32xf32, #tpu.memory_space<vmem>>, %arg11: memref<1x32xf32, #tpu.memory_space<vmem>>, %arg12: memref<1x32xf32, #tpu.memory_space<vmem>>, %arg13: memref<1x32xf32, #tpu.memory_space<vmem>>, %arg14: memref<32x128xf32, #tpu.memory_space<vmem>>, %arg15: memref<1x128xf32, #tpu.memory_space<vmem>>, %arg16: memref<128x32xf32, #tpu.memory_space<vmem>>, %arg17: memref<1x32xf32, #tpu.memory_space<vmem>>, %arg18: memref<8x32xf32, #tpu.memory_space<vmem>>) attributes {dimension_semantics = [], scalar_prefetch = 0 : i64, scratch_operands = 0 : i64, tpu.core_type = #tpu.core_type<tc>} {
    %c0 = arith.constant 0 : index
    %c0_0 = arith.constant 0 : index
    %0 = vector.load %arg0[%c0, %c0_0] : memref<8x32xf32, #tpu.memory_space<vmem>>, vector<8x32xf32>
    %c0_1 = arith.constant 0 : index
    %c0_2 = arith.constant 0 : index
    %1 = vector.load %arg1[%c0_1, %c0_2] : memref<1x32xf32, #tpu.memory_space<vmem>>, vector<1x32xf32>
    %c0_3 = arith.constant 0 : index
    %c0_4 = arith.constant 0 : index
    %2 = vector.load %arg2[%c0_3, %c0_4] : memref<1x32xf32, #tpu.memory_space<vmem>>, vector<1x32xf32>
    %cst = arith.constant dense<0.000000e+00> : vector<8xf32>
    %3 = vector.multi_reduction <add>, %0, %cst [1] : vector<8x32xf32> to vector<8xf32>
    %4 = vector.shape_cast %3 : vector<8xf32> to vector<8x1xf32>
    %cst_5 = arith.constant 3.200000e+01 : f32
    %5 = vector.broadcast %cst_5 : f32 to vector<8x1xf32>
    %6 = arith.divf %4, %5 : vector<8x1xf32>
    %7 = vector.broadcast %6 : vector<8x1xf32> to vector<8x32xf32>
    %8 = arith.subf %0, %7 : vector<8x32xf32>
    %9 = arith.mulf %8, %8 : vector<8x32xf32>
    %cst_6 = arith.constant dense<0.000000e+00> : vector<8xf32>
    %10 = vector.multi_reduction <add>, %9, %cst_6 [1] : vector<8x32xf32> to vector<8xf32>
    %11 = vector.shape_cast %10 : vector<8xf32> to vector<8x1xf32>
    %cst_7 = arith.constant 3.200000e+01 : f32
    %12 = vector.broadcast %cst_7 : f32 to vector<8x1xf32>
    %13 = arith.divf %11, %12 : vector<8x1xf32>
    %14 = vector.broadcast %6 : vector<8x1xf32> to vector<8x32xf32>
    %15 = arith.subf %0, %14 : vector<8x32xf32>
    %cst_8 = arith.constant 9.99999974E-6 : f32
    %16 = vector.broadcast %cst_8 : f32 to vector<8x1xf32>
    %17 = arith.addf %13, %16 : vector<8x1xf32>
    %18 = math.rsqrt %17 : vector<8x1xf32>
    %19 = vector.broadcast %18 : vector<8x1xf32> to vector<8x32xf32>
    %20 = arith.mulf %15, %19 : vector<8x32xf32>
    %21 = vector.broadcast %1 : vector<1x32xf32> to vector<8x32xf32>
    %22 = arith.mulf %20, %21 : vector<8x32xf32>
    %23 = vector.broadcast %2 : vector<1x32xf32> to vector<8x32xf32>
    %24 = arith.addf %22, %23 : vector<8x32xf32>
    %c0_9 = arith.constant 0 : index
    %c0_10 = arith.constant 0 : index
    %c0_11 = arith.constant 0 : index
    %25 = vector.load %arg3[%c0_9, %c0_10, %c0_11] : memref<4x32x8xf32, #tpu.memory_space<vmem>>, vector<1x32x8xf32>
    %26 = vector.shape_cast %25 : vector<1x32x8xf32> to vector<32x8xf32>
    %cst_12 = arith.constant dense<0.000000e+00> : vector<8x8xf32>
    %27 = tpu.matmul %24, %26, %cst_12 {dimension_numbers = #tpu.dot_dimension_numbers<[1], [0], [0], [1], [0, 0, 1, 1], [], []>} : vector<8x32xf32>, vector<32x8xf32>, vector<8x8xf32> -> vector<8x8xf32>
    %c0_13 = arith.constant 0 : index
    %c0_14 = arith.constant 0 : index
    %c0_15 = arith.constant 0 : index
    %28 = vector.load %arg6[%c0_13, %c0_14, %c0_15] : memref<4x1x8xf32, #tpu.memory_space<vmem>>, vector<1x1x8xf32>
    %29 = vector.shape_cast %28 : vector<1x1x8xf32> to vector<1x8xf32>
    %30 = vector.broadcast %29 : vector<1x8xf32> to vector<8x8xf32>
    %31 = arith.addf %27, %30 : vector<8x8xf32>
    %cst_16 = arith.constant 0.353553385 : f32
    %32 = vector.broadcast %cst_16 : f32 to vector<8x8xf32>
    %33 = arith.mulf %31, %32 : vector<8x8xf32>
    %c0_17 = arith.constant 0 : index
    %c0_18 = arith.constant 0 : index
    %c0_19 = arith.constant 0 : index
    %34 = vector.load %arg4[%c0_17, %c0_18, %c0_19] : memref<4x32x8xf32, #tpu.memory_space<vmem>>, vector<1x32x8xf32>
    %35 = vector.shape_cast %34 : vector<1x32x8xf32> to vector<32x8xf32>
    %cst_20 = arith.constant dense<0.000000e+00> : vector<8x8xf32>
    %36 = tpu.matmul %24, %35, %cst_20 {dimension_numbers = #tpu.dot_dimension_numbers<[1], [0], [0], [1], [0, 0, 1, 1], [], []>} : vector<8x32xf32>, vector<32x8xf32>, vector<8x8xf32> -> vector<8x8xf32>
    %c0_21 = arith.constant 0 : index
    %c0_22 = arith.constant 0 : index
    %c0_23 = arith.constant 0 : index
    %37 = vector.load %arg7[%c0_21, %c0_22, %c0_23] : memref<4x1x8xf32, #tpu.memory_space<vmem>>, vector<1x1x8xf32>
    %38 = vector.shape_cast %37 : vector<1x1x8xf32> to vector<1x8xf32>
    %39 = vector.broadcast %38 : vector<1x8xf32> to vector<8x8xf32>
    %40 = arith.addf %36, %39 : vector<8x8xf32>
    %c0_24 = arith.constant 0 : index
    %c0_25 = arith.constant 0 : index
    %c0_26 = arith.constant 0 : index
    %41 = vector.load %arg5[%c0_24, %c0_25, %c0_26] : memref<4x32x8xf32, #tpu.memory_space<vmem>>, vector<1x32x8xf32>
    %42 = vector.shape_cast %41 : vector<1x32x8xf32> to vector<32x8xf32>
    %cst_27 = arith.constant dense<0.000000e+00> : vector<8x8xf32>
    %43 = tpu.matmul %24, %42, %cst_27 {dimension_numbers = #tpu.dot_dimension_numbers<[1], [0], [0], [1], [0, 0, 1, 1], [], []>} : vector<8x32xf32>, vector<32x8xf32>, vector<8x8xf32> -> vector<8x8xf32>
    %c0_28 = arith.constant 0 : index
    %c0_29 = arith.constant 0 : index
    %c0_30 = arith.constant 0 : index
    %44 = vector.load %arg8[%c0_28, %c0_29, %c0_30] : memref<4x1x8xf32, #tpu.memory_space<vmem>>, vector<1x1x8xf32>
    %45 = vector.shape_cast %44 : vector<1x1x8xf32> to vector<1x8xf32>
    %46 = vector.broadcast %45 : vector<1x8xf32> to vector<8x8xf32>
    %47 = arith.addf %43, %46 : vector<8x8xf32>
    "tpu.trace_start"() <{level = 10 : i32, message = "ld,md->lm"}> : () -> ()
    %cst_31 = arith.constant dense<0.000000e+00> : vector<8x8xf32>
    %48 = tpu.matmul %33, %40, %cst_31 {dimension_numbers = #tpu.dot_dimension_numbers<[1], [1], [0], [0], [0, 0, 1, 0], [], []>} : vector<8x8xf32>, vector<8x8xf32>, vector<8x8xf32> -> vector<8x8xf32>
    "tpu.trace_stop"() : () -> ()
    %c0_32 = arith.constant 0 : index
    %c0_33 = arith.constant 0 : index
    %c0_34 = arith.constant 0 : index
    %49 = vector.load %arg9[%c0_32, %c0_33, %c0_34] : memref<4x8x8xf32, #tpu.memory_space<vmem>>, vector<1x8x8xf32>
    %50 = vector.shape_cast %49 : vector<1x8x8xf32> to vector<8x8xf32>
    %51 = arith.addf %48, %50 : vector<8x8xf32>
    %cst_35 = arith.constant dense<0xFF800000> : vector<8xf32>
    %52 = vector.multi_reduction <maximumf>, %51, %cst_35 [1] : vector<8x8xf32> to vector<8xf32>
    %53 = vector.shape_cast %52 : vector<8xf32> to vector<8x1xf32>
    %54 = vector.broadcast %53 : vector<8x1xf32> to vector<8x8xf32>
    %55 = arith.subf %51, %54 : vector<8x8xf32>
    %56 = math.exp %55 : vector<8x8xf32>
    %cst_36 = arith.constant dense<0.000000e+00> : vector<8xf32>
    %57 = vector.multi_reduction <add>, %56, %cst_36 [1] : vector<8x8xf32> to vector<8xf32>
    %58 = vector.shape_cast %57 : vector<8xf32> to vector<8x1xf32>
    %59 = tpu.reciprocal %58 {approx = true} : vector<8x1xf32> -> vector<8x1xf32>
    %60 = vector.broadcast %59 : vector<8x1xf32> to vector<8x8xf32>
    %61 = arith.mulf %56, %60 : vector<8x8xf32>
    "tpu.trace_start"() <{level = 10 : i32, message = "lm,md->ld"}> : () -> ()
    %cst_37 = arith.constant dense<0.000000e+00> : vector<8x8xf32>
    %62 = tpu.matmul %61, %47, %cst_37 {dimension_numbers = #tpu.dot_dimension_numbers<[1], [0], [0], [1], [0, 0, 1, 1], [], []>} : vector<8x8xf32>, vector<8x8xf32>, vector<8x8xf32> -> vector<8x8xf32>
    "tpu.trace_stop"() : () -> ()
    %c0_38 = arith.constant 0 : index
    %c0_39 = arith.constant 0 : index
    %c0_40 = arith.constant 0 : index
    %63 = vector.load %arg10[%c0_38, %c0_39, %c0_40] : memref<4x8x32xf32, #tpu.memory_space<vmem>>, vector<1x8x32xf32>
    %64 = vector.shape_cast %63 : vector<1x8x32xf32> to vector<8x32xf32>
    %cst_41 = arith.constant dense<0.000000e+00> : vector<8x32xf32>
    %65 = tpu.matmul %62, %64, %cst_41 {dimension_numbers = #tpu.dot_dimension_numbers<[1], [0], [0], [1], [0, 0, 1, 1], [], []>} : vector<8x8xf32>, vector<8x32xf32>, vector<8x32xf32> -> vector<8x32xf32>
    %c1 = arith.constant 1 : index
    %c0_42 = arith.constant 0 : index
    %c0_43 = arith.constant 0 : index
    %66 = vector.load %arg3[%c1, %c0_42, %c0_43] : memref<4x32x8xf32, #tpu.memory_space<vmem>>, vector<1x32x8xf32>
    %67 = vector.shape_cast %66 : vector<1x32x8xf32> to vector<32x8xf32>
    %cst_44 = arith.constant dense<0.000000e+00> : vector<8x8xf32>
    %68 = tpu.matmul %24, %67, %cst_44 {dimension_numbers = #tpu.dot_dimension_numbers<[1], [0], [0], [1], [0, 0, 1, 1], [], []>} : vector<8x32xf32>, vector<32x8xf32>, vector<8x8xf32> -> vector<8x8xf32>
    %c1_45 = arith.constant 1 : index
    %c0_46 = arith.constant 0 : index
    %c0_47 = arith.constant 0 : index
    %69 = vector.load %arg6[%c1_45, %c0_46, %c0_47] : memref<4x1x8xf32, #tpu.memory_space<vmem>>, vector<1x1x8xf32>
    %70 = vector.shape_cast %69 : vector<1x1x8xf32> to vector<1x8xf32>
    %71 = vector.broadcast %70 : vector<1x8xf32> to vector<8x8xf32>
    %72 = arith.addf %68, %71 : vector<8x8xf32>
    %cst_48 = arith.constant 0.353553385 : f32
    %73 = vector.broadcast %cst_48 : f32 to vector<8x8xf32>
    %74 = arith.mulf %72, %73 : vector<8x8xf32>
    %c1_49 = arith.constant 1 : index
    %c0_50 = arith.constant 0 : index
    %c0_51 = arith.constant 0 : index
    %75 = vector.load %arg4[%c1_49, %c0_50, %c0_51] : memref<4x32x8xf32, #tpu.memory_space<vmem>>, vector<1x32x8xf32>
    %76 = vector.shape_cast %75 : vector<1x32x8xf32> to vector<32x8xf32>
    %cst_52 = arith.constant dense<0.000000e+00> : vector<8x8xf32>
    %77 = tpu.matmul %24, %76, %cst_52 {dimension_numbers = #tpu.dot_dimension_numbers<[1], [0], [0], [1], [0, 0, 1, 1], [], []>} : vector<8x32xf32>, vector<32x8xf32>, vector<8x8xf32> -> vector<8x8xf32>
    %c1_53 = arith.constant 1 : index
    %c0_54 = arith.constant 0 : index
    %c0_55 = arith.constant 0 : index
    %78 = vector.load %arg7[%c1_53, %c0_54, %c0_55] : memref<4x1x8xf32, #tpu.memory_space<vmem>>, vector<1x1x8xf32>
    %79 = vector.shape_cast %78 : vector<1x1x8xf32> to vector<1x8xf32>
    %80 = vector.broadcast %79 : vector<1x8xf32> to vector<8x8xf32>
    %81 = arith.addf %77, %80 : vector<8x8xf32>
    %c1_56 = arith.constant 1 : index
    %c0_57 = arith.constant 0 : index
    %c0_58 = arith.constant 0 : index
    %82 = vector.load %arg5[%c1_56, %c0_57, %c0_58] : memref<4x32x8xf32, #tpu.memory_space<vmem>>, vector<1x32x8xf32>
    %83 = vector.shape_cast %82 : vector<1x32x8xf32> to vector<32x8xf32>
    %cst_59 = arith.constant dense<0.000000e+00> : vector<8x8xf32>
    %84 = tpu.matmul %24, %83, %cst_59 {dimension_numbers = #tpu.dot_dimension_numbers<[1], [0], [0], [1], [0, 0, 1, 1], [], []>} : vector<8x32xf32>, vector<32x8xf32>, vector<8x8xf32> -> vector<8x8xf32>
    %c1_60 = arith.constant 1 : index
    %c0_61 = arith.constant 0 : index
    %c0_62 = arith.constant 0 : index
    %85 = vector.load %arg8[%c1_60, %c0_61, %c0_62] : memref<4x1x8xf32, #tpu.memory_space<vmem>>, vector<1x1x8xf32>
    %86 = vector.shape_cast %85 : vector<1x1x8xf32> to vector<1x8xf32>
    %87 = vector.broadcast %86 : vector<1x8xf32> to vector<8x8xf32>
    %88 = arith.addf %84, %87 : vector<8x8xf32>
    "tpu.trace_start"() <{level = 10 : i32, message = "ld,md->lm"}> : () -> ()
    %cst_63 = arith.constant dense<0.000000e+00> : vector<8x8xf32>
    %89 = tpu.matmul %74, %81, %cst_63 {dimension_numbers = #tpu.dot_dimension_numbers<[1], [1], [0], [0], [0, 0, 1, 0], [], []>} : vector<8x8xf32>, vector<8x8xf32>, vector<8x8xf32> -> vector<8x8xf32>
    "tpu.trace_stop"() : () -> ()
    %c1_64 = arith.constant 1 : index
    %c0_65 = arith.constant 0 : index
    %c0_66 = arith.constant 0 : index
    %90 = vector.load %arg9[%c1_64, %c0_65, %c0_66] : memref<4x8x8xf32, #tpu.memory_space<vmem>>, vector<1x8x8xf32>
    %91 = vector.shape_cast %90 : vector<1x8x8xf32> to vector<8x8xf32>
    %92 = arith.addf %89, %91 : vector<8x8xf32>
    %cst_67 = arith.constant dense<0xFF800000> : vector<8xf32>
    %93 = vector.multi_reduction <maximumf>, %92, %cst_67 [1] : vector<8x8xf32> to vector<8xf32>
    %94 = vector.shape_cast %93 : vector<8xf32> to vector<8x1xf32>
    %95 = vector.broadcast %94 : vector<8x1xf32> to vector<8x8xf32>
    %96 = arith.subf %92, %95 : vector<8x8xf32>
    %97 = math.exp %96 : vector<8x8xf32>
    %cst_68 = arith.constant dense<0.000000e+00> : vector<8xf32>
    %98 = vector.multi_reduction <add>, %97, %cst_68 [1] : vector<8x8xf32> to vector<8xf32>
    %99 = vector.shape_cast %98 : vector<8xf32> to vector<8x1xf32>
    %100 = tpu.reciprocal %99 {approx = true} : vector<8x1xf32> -> vector<8x1xf32>
    %101 = vector.broadcast %100 : vector<8x1xf32> to vector<8x8xf32>
    %102 = arith.mulf %97, %101 : vector<8x8xf32>
    "tpu.trace_start"() <{level = 10 : i32, message = "lm,md->ld"}> : () -> ()
    %cst_69 = arith.constant dense<0.000000e+00> : vector<8x8xf32>
    %103 = tpu.matmul %102, %88, %cst_69 {dimension_numbers = #tpu.dot_dimension_numbers<[1], [0], [0], [1], [0, 0, 1, 1], [], []>} : vector<8x8xf32>, vector<8x8xf32>, vector<8x8xf32> -> vector<8x8xf32>
    "tpu.trace_stop"() : () -> ()
    %c1_70 = arith.constant 1 : index
    %c0_71 = arith.constant 0 : index
    %c0_72 = arith.constant 0 : index
    %104 = vector.load %arg10[%c1_70, %c0_71, %c0_72] : memref<4x8x32xf32, #tpu.memory_space<vmem>>, vector<1x8x32xf32>
    %105 = vector.shape_cast %104 : vector<1x8x32xf32> to vector<8x32xf32>
    %cst_73 = arith.constant dense<0.000000e+00> : vector<8x32xf32>
    %106 = tpu.matmul %103, %105, %cst_73 {dimension_numbers = #tpu.dot_dimension_numbers<[1], [0], [0], [1], [0, 0, 1, 1], [], []>} : vector<8x8xf32>, vector<8x32xf32>, vector<8x32xf32> -> vector<8x32xf32>
    %107 = arith.addf %65, %106 : vector<8x32xf32>
    %c2 = arith.constant 2 : index
    %c0_74 = arith.constant 0 : index
    %c0_75 = arith.constant 0 : index
    %108 = vector.load %arg3[%c2, %c0_74, %c0_75] : memref<4x32x8xf32, #tpu.memory_space<vmem>>, vector<1x32x8xf32>
    %109 = vector.shape_cast %108 : vector<1x32x8xf32> to vector<32x8xf32>
    %cst_76 = arith.constant dense<0.000000e+00> : vector<8x8xf32>
    %110 = tpu.matmul %24, %109, %cst_76 {dimension_numbers = #tpu.dot_dimension_numbers<[1], [0], [0], [1], [0, 0, 1, 1], [], []>} : vector<8x32xf32>, vector<32x8xf32>, vector<8x8xf32> -> vector<8x8xf32>
    %c2_77 = arith.constant 2 : index
    %c0_78 = arith.constant 0 : index
    %c0_79 = arith.constant 0 : index
    %111 = vector.load %arg6[%c2_77, %c0_78, %c0_79] : memref<4x1x8xf32, #tpu.memory_space<vmem>>, vector<1x1x8xf32>
    %112 = vector.shape_cast %111 : vector<1x1x8xf32> to vector<1x8xf32>
    %113 = vector.broadcast %112 : vector<1x8xf32> to vector<8x8xf32>
    %114 = arith.addf %110, %113 : vector<8x8xf32>
    %cst_80 = arith.constant 0.353553385 : f32
    %115 = vector.broadcast %cst_80 : f32 to vector<8x8xf32>
    %116 = arith.mulf %114, %115 : vector<8x8xf32>
    %c2_81 = arith.constant 2 : index
    %c0_82 = arith.constant 0 : index
    %c0_83 = arith.constant 0 : index
    %117 = vector.load %arg4[%c2_81, %c0_82, %c0_83] : memref<4x32x8xf32, #tpu.memory_space<vmem>>, vector<1x32x8xf32>
    %118 = vector.shape_cast %117 : vector<1x32x8xf32> to vector<32x8xf32>
    %cst_84 = arith.constant dense<0.000000e+00> : vector<8x8xf32>
    %119 = tpu.matmul %24, %118, %cst_84 {dimension_numbers = #tpu.dot_dimension_numbers<[1], [0], [0], [1], [0, 0, 1, 1], [], []>} : vector<8x32xf32>, vector<32x8xf32>, vector<8x8xf32> -> vector<8x8xf32>
    %c2_85 = arith.constant 2 : index
    %c0_86 = arith.constant 0 : index
    %c0_87 = arith.constant 0 : index
    %120 = vector.load %arg7[%c2_85, %c0_86, %c0_87] : memref<4x1x8xf32, #tpu.memory_space<vmem>>, vector<1x1x8xf32>
    %121 = vector.shape_cast %120 : vector<1x1x8xf32> to vector<1x8xf32>
    %122 = vector.broadcast %121 : vector<1x8xf32> to vector<8x8xf32>
    %123 = arith.addf %119, %122 : vector<8x8xf32>
    %c2_88 = arith.constant 2 : index
    %c0_89 = arith.constant 0 : index
    %c0_90 = arith.constant 0 : index
    %124 = vector.load %arg5[%c2_88, %c0_89, %c0_90] : memref<4x32x8xf32, #tpu.memory_space<vmem>>, vector<1x32x8xf32>
    %125 = vector.shape_cast %124 : vector<1x32x8xf32> to vector<32x8xf32>
    %cst_91 = arith.constant dense<0.000000e+00> : vector<8x8xf32>
    %126 = tpu.matmul %24, %125, %cst_91 {dimension_numbers = #tpu.dot_dimension_numbers<[1], [0], [0], [1], [0, 0, 1, 1], [], []>} : vector<8x32xf32>, vector<32x8xf32>, vector<8x8xf32> -> vector<8x8xf32>
    %c2_92 = arith.constant 2 : index
    %c0_93 = arith.constant 0 : index
    %c0_94 = arith.constant 0 : index
    %127 = vector.load %arg8[%c2_92, %c0_93, %c0_94] : memref<4x1x8xf32, #tpu.memory_space<vmem>>, vector<1x1x8xf32>
    %128 = vector.shape_cast %127 : vector<1x1x8xf32> to vector<1x8xf32>
    %129 = vector.broadcast %128 : vector<1x8xf32> to vector<8x8xf32>
    %130 = arith.addf %126, %129 : vector<8x8xf32>
    "tpu.trace_start"() <{level = 10 : i32, message = "ld,md->lm"}> : () -> ()
    %cst_95 = arith.constant dense<0.000000e+00> : vector<8x8xf32>
    %131 = tpu.matmul %116, %123, %cst_95 {dimension_numbers = #tpu.dot_dimension_numbers<[1], [1], [0], [0], [0, 0, 1, 0], [], []>} : vector<8x8xf32>, vector<8x8xf32>, vector<8x8xf32> -> vector<8x8xf32>
    "tpu.trace_stop"() : () -> ()
    %c2_96 = arith.constant 2 : index
    %c0_97 = arith.constant 0 : index
    %c0_98 = arith.constant 0 : index
    %132 = vector.load %arg9[%c2_96, %c0_97, %c0_98] : memref<4x8x8xf32, #tpu.memory_space<vmem>>, vector<1x8x8xf32>
    %133 = vector.shape_cast %132 : vector<1x8x8xf32> to vector<8x8xf32>
    %134 = arith.addf %131, %133 : vector<8x8xf32>
    %cst_99 = arith.constant dense<0xFF800000> : vector<8xf32>
    %135 = vector.multi_reduction <maximumf>, %134, %cst_99 [1] : vector<8x8xf32> to vector<8xf32>
    %136 = vector.shape_cast %135 : vector<8xf32> to vector<8x1xf32>
    %137 = vector.broadcast %136 : vector<8x1xf32> to vector<8x8xf32>
    %138 = arith.subf %134, %137 : vector<8x8xf32>
    %139 = math.exp %138 : vector<8x8xf32>
    %cst_100 = arith.constant dense<0.000000e+00> : vector<8xf32>
    %140 = vector.multi_reduction <add>, %139, %cst_100 [1] : vector<8x8xf32> to vector<8xf32>
    %141 = vector.shape_cast %140 : vector<8xf32> to vector<8x1xf32>
    %142 = tpu.reciprocal %141 {approx = true} : vector<8x1xf32> -> vector<8x1xf32>
    %143 = vector.broadcast %142 : vector<8x1xf32> to vector<8x8xf32>
    %144 = arith.mulf %139, %143 : vector<8x8xf32>
    "tpu.trace_start"() <{level = 10 : i32, message = "lm,md->ld"}> : () -> ()
    %cst_101 = arith.constant dense<0.000000e+00> : vector<8x8xf32>
    %145 = tpu.matmul %144, %130, %cst_101 {dimension_numbers = #tpu.dot_dimension_numbers<[1], [0], [0], [1], [0, 0, 1, 1], [], []>} : vector<8x8xf32>, vector<8x8xf32>, vector<8x8xf32> -> vector<8x8xf32>
    "tpu.trace_stop"() : () -> ()
    %c2_102 = arith.constant 2 : index
    %c0_103 = arith.constant 0 : index
    %c0_104 = arith.constant 0 : index
    %146 = vector.load %arg10[%c2_102, %c0_103, %c0_104] : memref<4x8x32xf32, #tpu.memory_space<vmem>>, vector<1x8x32xf32>
    %147 = vector.shape_cast %146 : vector<1x8x32xf32> to vector<8x32xf32>
    %cst_105 = arith.constant dense<0.000000e+00> : vector<8x32xf32>
    %148 = tpu.matmul %145, %147, %cst_105 {dimension_numbers = #tpu.dot_dimension_numbers<[1], [0], [0], [1], [0, 0, 1, 1], [], []>} : vector<8x8xf32>, vector<8x32xf32>, vector<8x32xf32> -> vector<8x32xf32>
    %149 = arith.addf %107, %148 : vector<8x32xf32>
    %c3 = arith.constant 3 : index
    %c0_106 = arith.constant 0 : index
    %c0_107 = arith.constant 0 : index
    %150 = vector.load %arg3[%c3, %c0_106, %c0_107] : memref<4x32x8xf32, #tpu.memory_space<vmem>>, vector<1x32x8xf32>
    %151 = vector.shape_cast %150 : vector<1x32x8xf32> to vector<32x8xf32>
    %cst_108 = arith.constant dense<0.000000e+00> : vector<8x8xf32>
    %152 = tpu.matmul %24, %151, %cst_108 {dimension_numbers = #tpu.dot_dimension_numbers<[1], [0], [0], [1], [0, 0, 1, 1], [], []>} : vector<8x32xf32>, vector<32x8xf32>, vector<8x8xf32> -> vector<8x8xf32>
    %c3_109 = arith.constant 3 : index
    %c0_110 = arith.constant 0 : index
    %c0_111 = arith.constant 0 : index
    %153 = vector.load %arg6[%c3_109, %c0_110, %c0_111] : memref<4x1x8xf32, #tpu.memory_space<vmem>>, vector<1x1x8xf32>
    %154 = vector.shape_cast %153 : vector<1x1x8xf32> to vector<1x8xf32>
    %155 = vector.broadcast %154 : vector<1x8xf32> to vector<8x8xf32>
    %156 = arith.addf %152, %155 : vector<8x8xf32>
    %cst_112 = arith.constant 0.353553385 : f32
    %157 = vector.broadcast %cst_112 : f32 to vector<8x8xf32>
    %158 = arith.mulf %156, %157 : vector<8x8xf32>
    %c3_113 = arith.constant 3 : index
    %c0_114 = arith.constant 0 : index
    %c0_115 = arith.constant 0 : index
    %159 = vector.load %arg4[%c3_113, %c0_114, %c0_115] : memref<4x32x8xf32, #tpu.memory_space<vmem>>, vector<1x32x8xf32>
    %160 = vector.shape_cast %159 : vector<1x32x8xf32> to vector<32x8xf32>
    %cst_116 = arith.constant dense<0.000000e+00> : vector<8x8xf32>
    %161 = tpu.matmul %24, %160, %cst_116 {dimension_numbers = #tpu.dot_dimension_numbers<[1], [0], [0], [1], [0, 0, 1, 1], [], []>} : vector<8x32xf32>, vector<32x8xf32>, vector<8x8xf32> -> vector<8x8xf32>
    %c3_117 = arith.constant 3 : index
    %c0_118 = arith.constant 0 : index
    %c0_119 = arith.constant 0 : index
    %162 = vector.load %arg7[%c3_117, %c0_118, %c0_119] : memref<4x1x8xf32, #tpu.memory_space<vmem>>, vector<1x1x8xf32>
    %163 = vector.shape_cast %162 : vector<1x1x8xf32> to vector<1x8xf32>
    %164 = vector.broadcast %163 : vector<1x8xf32> to vector<8x8xf32>
    %165 = arith.addf %161, %164 : vector<8x8xf32>
    %c3_120 = arith.constant 3 : index
    %c0_121 = arith.constant 0 : index
    %c0_122 = arith.constant 0 : index
    %166 = vector.load %arg5[%c3_120, %c0_121, %c0_122] : memref<4x32x8xf32, #tpu.memory_space<vmem>>, vector<1x32x8xf32>
    %167 = vector.shape_cast %166 : vector<1x32x8xf32> to vector<32x8xf32>
    %cst_123 = arith.constant dense<0.000000e+00> : vector<8x8xf32>
    %168 = tpu.matmul %24, %167, %cst_123 {dimension_numbers = #tpu.dot_dimension_numbers<[1], [0], [0], [1], [0, 0, 1, 1], [], []>} : vector<8x32xf32>, vector<32x8xf32>, vector<8x8xf32> -> vector<8x8xf32>
    %c3_124 = arith.constant 3 : index
    %c0_125 = arith.constant 0 : index
    %c0_126 = arith.constant 0 : index
    %169 = vector.load %arg8[%c3_124, %c0_125, %c0_126] : memref<4x1x8xf32, #tpu.memory_space<vmem>>, vector<1x1x8xf32>
    %170 = vector.shape_cast %169 : vector<1x1x8xf32> to vector<1x8xf32>
    %171 = vector.broadcast %170 : vector<1x8xf32> to vector<8x8xf32>
    %172 = arith.addf %168, %171 : vector<8x8xf32>
    "tpu.trace_start"() <{level = 10 : i32, message = "ld,md->lm"}> : () -> ()
    %cst_127 = arith.constant dense<0.000000e+00> : vector<8x8xf32>
    %173 = tpu.matmul %158, %165, %cst_127 {dimension_numbers = #tpu.dot_dimension_numbers<[1], [1], [0], [0], [0, 0, 1, 0], [], []>} : vector<8x8xf32>, vector<8x8xf32>, vector<8x8xf32> -> vector<8x8xf32>
    "tpu.trace_stop"() : () -> ()
    %c3_128 = arith.constant 3 : index
    %c0_129 = arith.constant 0 : index
    %c0_130 = arith.constant 0 : index
    %174 = vector.load %arg9[%c3_128, %c0_129, %c0_130] : memref<4x8x8xf32, #tpu.memory_space<vmem>>, vector<1x8x8xf32>
    %175 = vector.shape_cast %174 : vector<1x8x8xf32> to vector<8x8xf32>
    %176 = arith.addf %173, %175 : vector<8x8xf32>
    %cst_131 = arith.constant dense<0xFF800000> : vector<8xf32>
    %177 = vector.multi_reduction <maximumf>, %176, %cst_131 [1] : vector<8x8xf32> to vector<8xf32>
    %178 = vector.shape_cast %177 : vector<8xf32> to vector<8x1xf32>
    %179 = vector.broadcast %178 : vector<8x1xf32> to vector<8x8xf32>
    %180 = arith.subf %176, %179 : vector<8x8xf32>
    %181 = math.exp %180 : vector<8x8xf32>
    %cst_132 = arith.constant dense<0.000000e+00> : vector<8xf32>
    %182 = vector.multi_reduction <add>, %181, %cst_132 [1] : vector<8x8xf32> to vector<8xf32>
    %183 = vector.shape_cast %182 : vector<8xf32> to vector<8x1xf32>
    %184 = tpu.reciprocal %183 {approx = true} : vector<8x1xf32> -> vector<8x1xf32>
    %185 = vector.broadcast %184 : vector<8x1xf32> to vector<8x8xf32>
    %186 = arith.mulf %181, %185 : vector<8x8xf32>
    "tpu.trace_start"() <{level = 10 : i32, message = "lm,md->ld"}> : () -> ()
    %cst_133 = arith.constant dense<0.000000e+00> : vector<8x8xf32>
    %187 = tpu.matmul %186, %172, %cst_133 {dimension_numbers = #tpu.dot_dimension_numbers<[1], [0], [0], [1], [0, 0, 1, 1], [], []>} : vector<8x8xf32>, vector<8x8xf32>, vector<8x8xf32> -> vector<8x8xf32>
    "tpu.trace_stop"() : () -> ()
    %c3_134 = arith.constant 3 : index
    %c0_135 = arith.constant 0 : index
    %c0_136 = arith.constant 0 : index
    %188 = vector.load %arg10[%c3_134, %c0_135, %c0_136] : memref<4x8x32xf32, #tpu.memory_space<vmem>>, vector<1x8x32xf32>
    %189 = vector.shape_cast %188 : vector<1x8x32xf32> to vector<8x32xf32>
    %cst_137 = arith.constant dense<0.000000e+00> : vector<8x32xf32>
    %190 = tpu.matmul %187, %189, %cst_137 {dimension_numbers = #tpu.dot_dimension_numbers<[1], [0], [0], [1], [0, 0, 1, 1], [], []>} : vector<8x8xf32>, vector<8x32xf32>, vector<8x32xf32> -> vector<8x32xf32>
    %191 = arith.addf %149, %190 : vector<8x32xf32>
    %192 = arith.addf %24, %191 : vector<8x32xf32>
    %c0_138 = arith.constant 0 : index
    %c0_139 = arith.constant 0 : index
    %193 = vector.load %arg11[%c0_138, %c0_139] : memref<1x32xf32, #tpu.memory_space<vmem>>, vector<1x32xf32>
    %194 = vector.broadcast %193 : vector<1x32xf32> to vector<8x32xf32>
    %195 = arith.addf %192, %194 : vector<8x32xf32>
    %c0_140 = arith.constant 0 : index
    %c0_141 = arith.constant 0 : index
    %196 = vector.load %arg12[%c0_140, %c0_141] : memref<1x32xf32, #tpu.memory_space<vmem>>, vector<1x32xf32>
    %c0_142 = arith.constant 0 : index
    %c0_143 = arith.constant 0 : index
    %197 = vector.load %arg13[%c0_142, %c0_143] : memref<1x32xf32, #tpu.memory_space<vmem>>, vector<1x32xf32>
    %cst_144 = arith.constant dense<0.000000e+00> : vector<8xf32>
    %198 = vector.multi_reduction <add>, %195, %cst_144 [1] : vector<8x32xf32> to vector<8xf32>
    %199 = vector.shape_cast %198 : vector<8xf32> to vector<8x1xf32>
    %cst_145 = arith.constant 3.200000e+01 : f32
    %200 = vector.broadcast %cst_145 : f32 to vector<8x1xf32>
    %201 = arith.divf %199, %200 : vector<8x1xf32>
    %202 = vector.broadcast %201 : vector<8x1xf32> to vector<8x32xf32>
    %203 = arith.subf %195, %202 : vector<8x32xf32>
    %204 = arith.mulf %203, %203 : vector<8x32xf32>
    %cst_146 = arith.constant dense<0.000000e+00> : vector<8xf32>
    %205 = vector.multi_reduction <add>, %204, %cst_146 [1] : vector<8x32xf32> to vector<8xf32>
    %206 = vector.shape_cast %205 : vector<8xf32> to vector<8x1xf32>
    %cst_147 = arith.constant 3.200000e+01 : f32
    %207 = vector.broadcast %cst_147 : f32 to vector<8x1xf32>
    %208 = arith.divf %206, %207 : vector<8x1xf32>
    %209 = vector.broadcast %201 : vector<8x1xf32> to vector<8x32xf32>
    %210 = arith.subf %195, %209 : vector<8x32xf32>
    %cst_148 = arith.constant 9.99999974E-6 : f32
    %211 = vector.broadcast %cst_148 : f32 to vector<8x1xf32>
    %212 = arith.addf %208, %211 : vector<8x1xf32>
    %213 = math.rsqrt %212 : vector<8x1xf32>
    %214 = vector.broadcast %213 : vector<8x1xf32> to vector<8x32xf32>
    %215 = arith.mulf %210, %214 : vector<8x32xf32>
    %216 = vector.broadcast %196 : vector<1x32xf32> to vector<8x32xf32>
    %217 = arith.mulf %215, %216 : vector<8x32xf32>
    %218 = vector.broadcast %197 : vector<1x32xf32> to vector<8x32xf32>
    %219 = arith.addf %217, %218 : vector<8x32xf32>
    %c0_149 = arith.constant 0 : index
    %c0_150 = arith.constant 0 : index
    %220 = vector.load %arg14[%c0_149, %c0_150] : memref<32x128xf32, #tpu.memory_space<vmem>>, vector<32x128xf32>
    %cst_151 = arith.constant dense<0.000000e+00> : vector<8x128xf32>
    %221 = tpu.matmul %219, %220, %cst_151 {dimension_numbers = #tpu.dot_dimension_numbers<[1], [0], [0], [1], [0, 0, 1, 1], [], []>} : vector<8x32xf32>, vector<32x128xf32>, vector<8x128xf32> -> vector<8x128xf32>
    %c0_152 = arith.constant 0 : index
    %c0_153 = arith.constant 0 : index
    %222 = vector.load %arg15[%c0_152, %c0_153] : memref<1x128xf32, #tpu.memory_space<vmem>>, vector<1x128xf32>
    %223 = vector.broadcast %222 : vector<1x128xf32> to vector<8x128xf32>
    %224 = arith.addf %221, %223 : vector<8x128xf32>
    %cst_154 = arith.constant 5.000000e-01 : f32
    %225 = vector.broadcast %cst_154 : f32 to vector<8x128xf32>
    %226 = arith.mulf %225, %224 : vector<8x128xf32>
    %cst_155 = arith.constant 4.471500e-02 : f32
    %227 = vector.broadcast %cst_155 : f32 to vector<8x128xf32>
    %228 = arith.mulf %227, %224 : vector<8x128xf32>
    %229 = arith.mulf %228, %224 : vector<8x128xf32>
    %230 = arith.mulf %229, %224 : vector<8x128xf32>
    %231 = arith.addf %224, %230 : vector<8x128xf32>
    %cst_156 = arith.constant 0.797884583 : f32
    %232 = vector.broadcast %cst_156 : f32 to vector<8x128xf32>
    %233 = arith.mulf %232, %231 : vector<8x128xf32>
    %234 = math.tanh %233 : vector<8x128xf32>
    %cst_157 = arith.constant 1.000000e+00 : f32
    %235 = vector.broadcast %cst_157 : f32 to vector<8x128xf32>
    %236 = arith.addf %235, %234 : vector<8x128xf32>
    %237 = arith.mulf %226, %236 : vector<8x128xf32>
    %c0_158 = arith.constant 0 : index
    %c0_159 = arith.constant 0 : index
    %238 = vector.load %arg16[%c0_158, %c0_159] : memref<128x32xf32, #tpu.memory_space<vmem>>, vector<128x32xf32>
    %cst_160 = arith.constant dense<0.000000e+00> : vector<8x32xf32>
    %239 = tpu.matmul %237, %238, %cst_160 {dimension_numbers = #tpu.dot_dimension_numbers<[1], [0], [0], [1], [0, 0, 1, 1], [], []>} : vector<8x128xf32>, vector<128x32xf32>, vector<8x32xf32> -> vector<8x32xf32>
    %c0_161 = arith.constant 0 : index
    %c0_162 = arith.constant 0 : index
    %240 = vector.load %arg17[%c0_161, %c0_162] : memref<1x32xf32, #tpu.memory_space<vmem>>, vector<1x32xf32>
    %241 = vector.broadcast %240 : vector<1x32xf32> to vector<8x32xf32>
    %242 = arith.addf %239, %241 : vector<8x32xf32>
    %243 = arith.addf %195, %242 : vector<8x32xf32>
    %c0_163 = arith.constant 0 : index
    %c0_164 = arith.constant 0 : index
    %244 = vector.load %arg18[%c0_163, %c0_164] : memref<8x32xf32, #tpu.memory_space<vmem>>, vector<8x32xf32>
    tpu.vector_store %arg18[%c0_163, %c0_164], %243 {strides = array<i32>} : memref<8x32xf32, #tpu.memory_space<vmem>>, vector<8x32xf32>,
    return
  }
}

module attributes {stable_mosaic.version = 11 : i64} {
  func.func @_merge_kernel(%arg0: memref<8x64xf32, #tpu.memory_space<vmem>>, %arg1: memref<1x64xf32, #tpu.memory_space<vmem>>, %arg2: memref<1x64xf32, #tpu.memory_space<vmem>>, %arg3: memref<64x32xf32, #tpu.memory_space<vmem>>, %arg4: memref<1x32xf32, #tpu.memory_space<vmem>>, %arg5: memref<8x32xf32, #tpu.memory_space<vmem>>) attributes {dimension_semantics = [], scalar_prefetch = 0 : i64, scratch_operands = 0 : i64, tpu.core_type = #tpu.core_type<tc>} {
    %c0 = arith.constant 0 : index
    %c0_0 = arith.constant 0 : index
    %0 = vector.load %arg0[%c0, %c0_0] : memref<8x64xf32, #tpu.memory_space<vmem>>, vector<8x64xf32>
    %c0_1 = arith.constant 0 : index
    %c0_2 = arith.constant 0 : index
    %1 = vector.load %arg1[%c0_1, %c0_2] : memref<1x64xf32, #tpu.memory_space<vmem>>, vector<1x64xf32>
    %c0_3 = arith.constant 0 : index
    %c0_4 = arith.constant 0 : index
    %2 = vector.load %arg2[%c0_3, %c0_4] : memref<1x64xf32, #tpu.memory_space<vmem>>, vector<1x64xf32>
    %cst = arith.constant dense<0.000000e+00> : vector<8xf32>
    %3 = vector.multi_reduction <add>, %0, %cst [1] : vector<8x64xf32> to vector<8xf32>
    %4 = vector.shape_cast %3 : vector<8xf32> to vector<8x1xf32>
    %cst_5 = arith.constant 6.400000e+01 : f32
    %5 = vector.broadcast %cst_5 : f32 to vector<8x1xf32>
    %6 = arith.divf %4, %5 : vector<8x1xf32>
    %7 = vector.broadcast %6 : vector<8x1xf32> to vector<8x64xf32>
    %8 = arith.subf %0, %7 : vector<8x64xf32>
    %9 = arith.mulf %8, %8 : vector<8x64xf32>
    %cst_6 = arith.constant dense<0.000000e+00> : vector<8xf32>
    %10 = vector.multi_reduction <add>, %9, %cst_6 [1] : vector<8x64xf32> to vector<8xf32>
    %11 = vector.shape_cast %10 : vector<8xf32> to vector<8x1xf32>
    %cst_7 = arith.constant 6.400000e+01 : f32
    %12 = vector.broadcast %cst_7 : f32 to vector<8x1xf32>
    %13 = arith.divf %11, %12 : vector<8x1xf32>
    %14 = vector.broadcast %6 : vector<8x1xf32> to vector<8x64xf32>
    %15 = arith.subf %0, %14 : vector<8x64xf32>
    %cst_8 = arith.constant 9.99999974E-6 : f32
    %16 = vector.broadcast %cst_8 : f32 to vector<8x1xf32>
    %17 = arith.addf %13, %16 : vector<8x1xf32>
    %18 = math.rsqrt %17 : vector<8x1xf32>
    %19 = vector.broadcast %18 : vector<8x1xf32> to vector<8x64xf32>
    %20 = arith.mulf %15, %19 : vector<8x64xf32>
    %21 = vector.broadcast %1 : vector<1x64xf32> to vector<8x64xf32>
    %22 = arith.mulf %20, %21 : vector<8x64xf32>
    %23 = vector.broadcast %2 : vector<1x64xf32> to vector<8x64xf32>
    %24 = arith.addf %22, %23 : vector<8x64xf32>
    %c0_9 = arith.constant 0 : index
    %c0_10 = arith.constant 0 : index
    %25 = vector.load %arg3[%c0_9, %c0_10] : memref<64x32xf32, #tpu.memory_space<vmem>>, vector<64x32xf32>
    %cst_11 = arith.constant dense<0.000000e+00> : vector<8x32xf32>
    %26 = tpu.matmul %24, %25, %cst_11 {dimension_numbers = #tpu.dot_dimension_numbers<[1], [0], [0], [1], [0, 0, 1, 1], [], []>} : vector<8x64xf32>, vector<64x32xf32>, vector<8x32xf32> -> vector<8x32xf32>
    %c0_12 = arith.constant 0 : index
    %c0_13 = arith.constant 0 : index
    %27 = vector.load %arg4[%c0_12, %c0_13] : memref<1x32xf32, #tpu.memory_space<vmem>>, vector<1x32xf32>
    %28 = vector.broadcast %27 : vector<1x32xf32> to vector<8x32xf32>
    %29 = arith.addf %26, %28 : vector<8x32xf32>
    %c0_14 = arith.constant 0 : index
    %c0_15 = arith.constant 0 : index
    %30 = vector.load %arg5[%c0_14, %c0_15] : memref<8x32xf32, #tpu.memory_space<vmem>>, vector<8x32xf32>
    tpu.vector_store %arg5[%c0_14, %c0_15], %29 {strides = array<i32>} : memref<8x32xf32, #tpu.memory_space<vmem>>, vector<8x32xf32>,
    return
  }
}

module attributes {stable_mosaic.version = 11 : i64} {
  func.func @_tail_kernel(%arg0: memref<8x32xf32, #tpu.memory_space<vmem>>, %arg1: memref<1x32xf32, #tpu.memory_space<vmem>>, %arg2: memref<1x32xf32, #tpu.memory_space<vmem>>, %arg3: memref<2x8xf32, #tpu.memory_space<vmem>>, %arg4: memref<32x10xf32, #tpu.memory_space<vmem>>, %arg5: memref<1x10xf32, #tpu.memory_space<vmem>>, %arg6: memref<2x10xf32, #tpu.memory_space<vmem>>) attributes {dimension_semantics = [], scalar_prefetch = 0 : i64, scratch_operands = 0 : i64, tpu.core_type = #tpu.core_type<tc>} {
    %c0 = arith.constant 0 : index
    %c0_0 = arith.constant 0 : index
    %0 = vector.load %arg0[%c0, %c0_0] : memref<8x32xf32, #tpu.memory_space<vmem>>, vector<8x32xf32>
    %c0_1 = arith.constant 0 : index
    %c0_2 = arith.constant 0 : index
    %1 = vector.load %arg1[%c0_1, %c0_2] : memref<1x32xf32, #tpu.memory_space<vmem>>, vector<1x32xf32>
    %c0_3 = arith.constant 0 : index
    %c0_4 = arith.constant 0 : index
    %2 = vector.load %arg2[%c0_3, %c0_4] : memref<1x32xf32, #tpu.memory_space<vmem>>, vector<1x32xf32>
    %cst = arith.constant dense<0.000000e+00> : vector<8xf32>
    %3 = vector.multi_reduction <add>, %0, %cst [1] : vector<8x32xf32> to vector<8xf32>
    %4 = vector.shape_cast %3 : vector<8xf32> to vector<8x1xf32>
    %cst_5 = arith.constant 3.200000e+01 : f32
    %5 = vector.broadcast %cst_5 : f32 to vector<8x1xf32>
    %6 = arith.divf %4, %5 : vector<8x1xf32>
    %7 = vector.broadcast %6 : vector<8x1xf32> to vector<8x32xf32>
    %8 = arith.subf %0, %7 : vector<8x32xf32>
    %9 = arith.mulf %8, %8 : vector<8x32xf32>
    %cst_6 = arith.constant dense<0.000000e+00> : vector<8xf32>
    %10 = vector.multi_reduction <add>, %9, %cst_6 [1] : vector<8x32xf32> to vector<8xf32>
    %11 = vector.shape_cast %10 : vector<8xf32> to vector<8x1xf32>
    %cst_7 = arith.constant 3.200000e+01 : f32
    %12 = vector.broadcast %cst_7 : f32 to vector<8x1xf32>
    %13 = arith.divf %11, %12 : vector<8x1xf32>
    %14 = vector.broadcast %6 : vector<8x1xf32> to vector<8x32xf32>
    %15 = arith.subf %0, %14 : vector<8x32xf32>
    %cst_8 = arith.constant 9.99999974E-6 : f32
    %16 = vector.broadcast %cst_8 : f32 to vector<8x1xf32>
    %17 = arith.addf %13, %16 : vector<8x1xf32>
    %18 = math.rsqrt %17 : vector<8x1xf32>
    %19 = vector.broadcast %18 : vector<8x1xf32> to vector<8x32xf32>
    %20 = arith.mulf %15, %19 : vector<8x32xf32>
    %21 = vector.broadcast %1 : vector<1x32xf32> to vector<8x32xf32>
    %22 = arith.mulf %20, %21 : vector<8x32xf32>
    %23 = vector.broadcast %2 : vector<1x32xf32> to vector<8x32xf32>
    %24 = arith.addf %22, %23 : vector<8x32xf32>
    %c0_9 = arith.constant 0 : index
    %c0_10 = arith.constant 0 : index
    %25 = vector.load %arg3[%c0_9, %c0_10] : memref<2x8xf32, #tpu.memory_space<vmem>>, vector<2x8xf32>
    %cst_11 = arith.constant dense<0.000000e+00> : vector<2x32xf32>
    %26 = tpu.matmul %25, %24, %cst_11 {dimension_numbers = #tpu.dot_dimension_numbers<[1], [0], [0], [1], [0, 0, 1, 1], [], []>} : vector<2x8xf32>, vector<8x32xf32>, vector<2x32xf32> -> vector<2x32xf32>
    %c0_12 = arith.constant 0 : index
    %c0_13 = arith.constant 0 : index
    %27 = vector.load %arg4[%c0_12, %c0_13] : memref<32x10xf32, #tpu.memory_space<vmem>>, vector<32x10xf32>
    %cst_14 = arith.constant dense<0.000000e+00> : vector<2x10xf32>
    %28 = tpu.matmul %26, %27, %cst_14 {dimension_numbers = #tpu.dot_dimension_numbers<[1], [0], [0], [1], [0, 0, 1, 1], [], []>} : vector<2x32xf32>, vector<32x10xf32>, vector<2x10xf32> -> vector<2x10xf32>
    %c0_15 = arith.constant 0 : index
    %c0_16 = arith.constant 0 : index
    %29 = vector.load %arg5[%c0_15, %c0_16] : memref<1x10xf32, #tpu.memory_space<vmem>>, vector<1x10xf32>
    %30 = vector.broadcast %29 : vector<1x10xf32> to vector<2x10xf32>
    %31 = arith.addf %28, %30 : vector<2x10xf32>
    %c0_17 = arith.constant 0 : index
    %c0_18 = arith.constant 0 : index
    %32 = vector.load %arg6[%c0_17, %c0_18] : memref<2x10xf32, #tpu.memory_space<vmem>>, vector<2x10xf32>
    tpu.vector_store %arg6[%c0_17, %c0_18], %31 {strides = array<i32>} : memref<2x10xf32, #tpu.memory_space<vmem>>, vector<2x10xf32>,
    return
  }
}

</mosaic_0001>

<llo_original>
// kernel: _lambda_.7
$region0: #{_lambda_.7}
  #allocation0 [shape = 'u32[]', space=smem, size = 0x4, offset = 0x4, fixed_abs, tag = 'smem constant byte address 0x4 - core index']
  #allocation1 [shape = 'u32[144,128]{1,0:T(1,128)}', space=vmem, size = 0x12000, scoped, tag = 'internal scratch']
  %s0 = inlined_call_operand.vmem [shape: f32[32,12], index: 0, kind: input, shape index: {}]
  %s1 = inlined_call_operand.vmem [shape: f32[12,16], index: 1, kind: input, shape index: {}]
  %s2 = inlined_call_operand.vmem [shape: f32[1,16], index: 2, kind: input, shape index: {}]
  %s3 = inlined_call_operand.vmem [shape: f32[32,16], index: 3, kind: output, shape index: {}]
  %s4 = sld [smem:[#allocation0]]
  $region22: #{_lambda_.7} parent=0
    _
  %s6 = ssub.s32 1, %s4
  %s7 = scalar_select 0, %s6, %s4
  // Predicated region
  $region2: #{_lambda_.7} parent=0 // pred_check
    _
  $region3: #{_lambda_.7} parent=0 // pred_check_branch
    %9 = sbr.rel (0) target = $region5
  $region4: #{_lambda_.7} parent=0 // pred_region
    _
  $region5: #{_lambda_.7} parent=0 // pred_fallthru
    _
  // Predicated region
  $region6: #{_lambda_.7} parent=0 // pred_check
    _
  $region7: #{_lambda_.7} parent=0 // pred_check_branch
    %11 = sbr.rel (0) target = $region9
  $region8: #{_lambda_.7} parent=0 // pred_region
    _
  $region9: #{_lambda_.7} parent=0 // pred_fallthru
    _
  // Predicated region
  $region10: #{_lambda_.7} parent=0 // pred_check
    _
  $region11: #{_lambda_.7} parent=0 // pred_check_branch
    %13 = sbr.rel (0) target = $region13
  $region12: #{_lambda_.7} parent=0 // pred_region
    _
  $region13: #{_lambda_.7} parent=0 // pred_fallthru
    _
  %v14 = vld [vmem:[%s0] sm:$0xff]
  %v15 = vld [vmem:[%s0 + $0x8] sm:$0xff]
  %v16 = vld [vmem:[%s0 + $0x10] sm:$0xff]
  %v17 = vld [vmem:[%s0 + $0x18] sm:$0xff]
  %v18 = vld [vmem:[%s1] sm:$0xff]
  %v19 = vld [vmem:[%s1 + $0x8] sm:$0xf]
  %v20 = vld [vmem:[%s2] sm:$0x1]
  %v22 = vlaneseq
  %v23 = vshrl.u32 %v22, 7
  %v24 = vsub.s32 0, %v23
  %v25 = vrot.slane %v20, %v24
  %vm27 = vcmask 97280
  %v29 = vsel %vm27, %v14, 0
  %v32 = vsel %vm27, %v15, 0
  %v35 = vsel %vm27, %v16, 0
  %v38 = vsel %vm27, %v17, 0
  %vm40 = vcmask 1043456
  %v42 = vsel %vm40, %v19, 0
  %44 = vmatprep.subr.mxu0 0.0
  %45 = vmatpush1.msra.mxu0 %v18
  %46 = vmatprep.subr.mxu0 0.0
  %47 = vmatpush1.msra.mxu0 %v42
  %48 = vmatprep.subr.mxu0 0.0
  %49 = vmatpush1.msra.mxu0 0.0
  %50 = vmatprep.subr.mxu0 0.0
  %51 = vmatpush1.msra.mxu0 0.0
  %52 = vmatprep.subr.mxu0 0.0
  %53 = vmatpush1.msra.mxu0 0.0
  %54 = vmatprep.subr.mxu0 0.0
  %55 = vmatpush1.msra.mxu0 0.0
  %56 = vmatprep.subr.mxu0 0.0
  %57 = vmatpush1.msra.mxu0 0.0
  %58 = vmatprep.subr.mxu0 0.0
  %59 = vmatpush1.msra.mxu0 0.0
  %60 = vmatprep.subr.mxu0 0.0
  %61 = vmatpush1.msra.mxu0 0.0
  %62 = vmatprep.subr.mxu0 0.0
  %63 = vmatpush1.msra.mxu0 0.0
  %64 = vmatprep.subr.mxu0 0.0
  %65 = vmatpush1.msra.mxu0 0.0
  %66 = vmatprep.subr.mxu0 0.0
  %67 = vmatpush1.msra.mxu0 0.0
  %68 = vmatprep.subr.mxu0 0.0
  %69 = vmatpush1.msra.mxu0 0.0
  %70 = vmatprep.subr.mxu0 0.0
  %71 = vmatpush1.msra.mxu0 0.0
  %72 = vmatprep.subr.mxu0 0.0
  %73 = vmatpush1.msra.mxu0 0.0
  %74 = vmatprep.subr.mxu0 0.0
  %75 = vmatpush1.msra.mxu0 0.0
  %76 = vmatprep.subr.mxu0 0.0
  %77 = vmatpush1.msra.mxu0 0.0
  %78 = vmatprep.subr.mxu0 0.0
  %79 = vmatpush1.msra.mxu0 0.0
  %80 = vmatprep.subr.mxu0 0.0
  %81 = vmatpush1.msra.mxu0 0.0
  %82 = vmatprep.subr.mxu0 0.0
  %83 = vmatpush1.msra.mxu0 0.0
  %84 = vmatprep.subr.mxu0 0.0
  %85 = vmatpush1.msra.mxu0 0.0
  %86 = vmatprep.subr.mxu0 0.0
  %87 = vmatpush1.msra.mxu0 0.0
  %88 = vmatprep.subr.mxu0 0.0
  %89 = vmatpush1.msra.mxu0 0.0
  %90 = vmatprep.subr.mxu0 0.0
  %91 = vmatpush1.msra.mxu0 0.0
  %92 = vmatprep.subr.mxu0 0.0
  %93 = vmatpush1.msra.mxu0 0.0
  %94 = vmatprep.subr.mxu0 0.0
  %95 = vmatpush1.msra.mxu0 0.0
  %96 = vmatprep.subr.mxu0 0.0
  %97 = vmatpush1.msra.mxu0 0.0
  %98 = vmatprep.subr.mxu0 0.0
  %99 = vmatpush1.msra.mxu0 0.0
  %100 = vmatprep.subr.mxu0 0.0
  %101 = vmatpush1.msra.mxu0 0.0
  %102 = vmatprep.subr.mxu0 0.0
  %103 = vmatpush1.msra.mxu0 0.0
  %104 = vmatprep.subr.mxu0 0.0
  %105 = vmatpush1.msra.mxu0 0.0
  %106 = vmatprep.subr.mxu0 0.0
  %107 = vmatpush1.msra.mxu0 0.0
  %108 = vmatprep.mubr.f32.mxu0 0.0
  %109 = vmatmul.mubr.f32.gmra.mrb[0].mxu0 %v29
  %v110 = vpop.f32.mrb[0].mxu0
  %v111 = vadd.f32 %v25, %v110
  %v112 = vpop.f32.mrb[0].mxu0
  %113 = vmatprep.mubr.f32.mxu0 0.0
  %114 = vmatmul.mubr.f32.gmra.mrb[0].mxu0 %v32
  %v115 = vpop.f32.mrb[0].mxu0
  %v116 = vadd.f32 %v25, %v115
  %v117 = vpop.f32.mrb[0].mxu0
  %118 = vmatprep.mubr.f32.mxu0 0.0
  %119 = vmatmul.mubr.f32.gmra.mrb[0].mxu0 %v35
  %v120 = vpop.f32.mrb[0].mxu0
  %v121 = vadd.f32 %v25, %v120
  %v122 = vpop.f32.mrb[0].mxu0
  %123 = vmatprep.mubr.f32.mxu0 0.0
  %124 = vmatmul.mubr.f32.gmra.mrb[0].mxu0 %v38
  %v125 = vpop.f32.mrb[0].mxu0
  %v126 = vadd.f32 %v25, %v125
  %v127 = vpop.f32.mrb[0].mxu0
  %128 = vdwg.mxu0
  %vm129 = vcmask 130048
  %130 = vst.msk [vmem:[%s3] sm:$0xff] %vm129, %v111
  %131 = vst.msk [vmem:[%s3 + $0x8] sm:$0xff] %vm129, %v116
  %132 = vst.msk [vmem:[%s3 + $0x10] sm:$0xff] %vm129, %v121
  %133 = vst.msk [vmem:[%s3 + $0x18] sm:$0xff] %vm129, %v126
  // Predicated region
  $region14: #{_lambda_.7} parent=0 // pred_check
    _
  $region15: #{_lambda_.7} parent=0 // pred_check_branch
    %135 = sbr.rel (0) target = $region17
  $region16: #{_lambda_.7} parent=0 // pred_region
    _
  $region17: #{_lambda_.7} parent=0 // pred_fallthru
    _
  // Predicated region
  $region18: #{_lambda_.7} parent=0 // pred_check
    _
  $region19: #{_lambda_.7} parent=0 // pred_check_branch
    %137 = sbr.rel (0) target = $region21
  $region20: #{_lambda_.7} parent=0 // pred_region
    _
  $region21: #{_lambda_.7} parent=0 // pred_fallthru
    _

// kernel: _lambda_.10
$region0: #{_lambda_.10}
  #allocation0 [shape = 'u32[]', space=smem, size = 0x4, offset = 0x4, fixed_abs, tag = 'smem constant byte address 0x4 - core index']
  #allocation1 [shape = 'u32[144,128]{1,0:T(1,128)}', space=vmem, size = 0x12000, scoped, tag = 'internal scratch']
  %s0 = inlined_call_operand.vmem [shape: f32[8,64], index: 0, kind: input, shape index: {}]
  %s1 = inlined_call_operand.vmem [shape: f32[1,64], index: 1, kind: input, shape index: {}]
  %s2 = inlined_call_operand.vmem [shape: f32[1,64], index: 2, kind: input, shape index: {}]
  %s3 = inlined_call_operand.vmem [shape: f32[64,32], index: 3, kind: input, shape index: {}]
  %s4 = inlined_call_operand.vmem [shape: f32[1,32], index: 4, kind: input, shape index: {}]
  %s5 = inlined_call_operand.vmem [shape: f32[8,32], index: 5, kind: output, shape index: {}]
  %s6 = sld [smem:[#allocation0]]
  $region30: #{_lambda_.10} parent=0
    _
  %s8 = ssub.s32 1, %s6
  %s9 = scalar_select 0, %s8, %s6
  // Predicated region
  $region2: #{_lambda_.10} parent=0 // pred_check
    _
  $region3: #{_lambda_.10} parent=0 // pred_check_branch
    %11 = sbr.rel (0) target = $region5
  $region4: #{_lambda_.10} parent=0 // pred_region
    _
  $region5: #{_lambda_.10} parent=0 // pred_fallthru
    _
  // Predicated region
  $region6: #{_lambda_.10} parent=0 // pred_check
    _
  $region7: #{_lambda_.10} parent=0 // pred_check_branch
    %13 = sbr.rel (0) target = $region9
  $region8: #{_lambda_.10} parent=0 // pred_region
    _
  $region9: #{_lambda_.10} parent=0 // pred_fallthru
    _
  // Predicated region
  $region10: #{_lambda_.10} parent=0 // pred_check
    _
  $region11: #{_lambda_.10} parent=0 // pred_check_branch
    %15 = sbr.rel (0) target = $region13
  $region12: #{_lambda_.10} parent=0 // pred_region
    _
  $region13: #{_lambda_.10} parent=0 // pred_fallthru
    _
  // Predicated region
  $region14: #{_lambda_.10} parent=0 // pred_check
    _
  $region15: #{_lambda_.10} parent=0 // pred_check_branch
    %17 = sbr.rel (0) target = $region17
  $region16: #{_lambda_.10} parent=0 // pred_region
    _
  $region17: #{_lambda_.10} parent=0 // pred_fallthru
    _
  // Predicated region
  $region18: #{_lambda_.10} parent=0 // pred_check
    _
  $region19: #{_lambda_.10} parent=0 // pred_check_branch
    %19 = sbr.rel (0) target = $region21
  $region20: #{_lambda_.10} parent=0 // pred_region
    _
  $region21: #{_lambda_.10} parent=0 // pred_fallthru
    _
  %v20 = vld [vmem:[%s0] sm:$0xff]
  %v21 = vld [vmem:[%s1] sm:$0x1]
  %v22 = vld [vmem:[%s2] sm:$0x1]
  %vm23 = vcmask 523264
  %v24 = vsel %vm23, %v20, 0.0
  %25 = vadd.xlane.f32.xlu0 %v24
  %v26 = vpop.xlane.xlu0 %25
  %v27 = vrcp.pop 64.0
  %v28 = vmul.f32 %v26, %v27
  %v29 = vsub.f32 %v20, %v28
  %v30 = vmul.f32 %v29, %v29
  %v31 = vsel %vm23, %v30, 0.0
  %32 = vadd.xlane.f32.xlu0 %v31
  %v33 = vpop.xlane.xlu0 %32
  %v34 = vmul.f32 %v33, %v27
  %v35 = vadd.f32 %v34, 1e-05
  %v36 = vrsqrt.pop %v35
  %v37 = vmul.f32 %v29, %v36
  %v39 = vlaneseq
  %v40 = vshrl.u32 %v39, 7
  %v41 = vsub.s32 0, %v40
  %v42 = vrot.slane %v21, %v41
  %v44 = vmul.f32 %v37, %v42
  %v46 = vlaneseq
  %v47 = vshrl.u32 %v46, 7
  %v48 = vsub.s32 0, %v47
  %v49 = vrot.slane %v22, %v48
  %v51 = vadd.f32 %v44, %v49
  %v52 = vld [vmem:[%s3] sm:$0xff]
  %v53 = vld [vmem:[%s3 + $0x8] sm:$0xff]
  %v54 = vld [vmem:[%s3 + $0x10] sm:$0xff]
  %v55 = vld [vmem:[%s3 + $0x18] sm:$0xff]
  %v56 = vld [vmem:[%s3 + $0x20] sm:$0xff]
  %v57 = vld [vmem:[%s3 + $0x28] sm:$0xff]
  %v58 = vld [vmem:[%s3 + $0x30] sm:$0xff]
  %v59 = vld [vmem:[%s3 + $0x38] sm:$0xff]
  %v60 = vld [vmem:[%s4] sm:$0x1]
  %v62 = vlaneseq
  %v63 = vshrl.u32 %v62, 7
  %v64 = vsub.s32 0, %v63
  %v65 = vrot.slane %v60, %v64
  %v68 = vsel %vm23, %v51, 0
  %70 = vmatprep.subr.mxu0 0.0
  %71 = vmatpush1.msra.mxu0 %v52
  %72 = vmatprep.subr.mxu0 0.0
  %73 = vmatpush1.msra.mxu0 %v53
  %74 = vmatprep.subr.mxu0 0.0
  %75 = vmatpush1.msra.mxu0 %v54
  %76 = vmatprep.subr.mxu0 0.0
  %77 = vmatpush1.msra.mxu0 %v55
  %78 = vmatprep.subr.mxu0 0.0
  %79 = vmatpush1.msra.mxu0 %v56
  %80 = vmatprep.subr.mxu0 0.0
  %81 = vmatpush1.msra.mxu0 %v57
  %82 = vmatprep.subr.mxu0 0.0
  %83 = vmatpush1.msra.mxu0 %v58
  %84 = vmatprep.subr.mxu0 0.0
  %85 = vmatpush1.msra.mxu0 %v59
  %86 = vmatprep.subr.mxu0 0.0
  %87 = vmatpush1.msra.mxu0 0.0
  %88 = vmatprep.subr.mxu0 0.0
  %89 = vmatpush1.msra.mxu0 0.0
  %90 = vmatprep.subr.mxu0 0.0
  %91 = vmatpush1.msra.mxu0 0.0
  %92 = vmatprep.subr.mxu0 0.0
  %93 = vmatpush1.msra.mxu0 0.0
  %94 = vmatprep.subr.mxu0 0.0
  %95 = vmatpush1.msra.mxu0 0.0
  %96 = vmatprep.subr.mxu0 0.0
  %97 = vmatpush1.msra.mxu0 0.0
  %98 = vmatprep.subr.mxu0 0.0
  %99 = vmatpush1.msra.mxu0 0.0
  %100 = vmatprep.subr.mxu0 0.0
  %101 = vmatpush1.msra.mxu0 0.0
  %102 = vmatprep.subr.mxu0 0.0
  %103 = vmatpush1.msra.mxu0 0.0
  %104 = vmatprep.subr.mxu0 0.0
  %105 = vmatpush1.msra.mxu0 0.0
  %106 = vmatprep.subr.mxu0 0.0
  %107 = vmatpush1.msra.mxu0 0.0
  %108 = vmatprep.subr.mxu0 0.0
  %109 = vmatpush1.msra.mxu0 0.0
  %110 = vmatprep.subr.mxu0 0.0
  %111 = vmatpush1.msra.mxu0 0.0
  %112 = vmatprep.subr.mxu0 0.0
  %113 = vmatpush1.msra.mxu0 0.0
  %114 = vmatprep.subr.mxu0 0.0
  %115 = vmatpush1.msra.mxu0 0.0
  %116 = vmatprep.subr.mxu0 0.0
  %117 = vmatpush1.msra.mxu0 0.0
  %118 = vmatprep.subr.mxu0 0.0
  %119 = vmatpush1.msra.mxu0 0.0
  %120 = vmatprep.subr.mxu0 0.0
  %121 = vmatpush1.msra.mxu0 0.0
  %122 = vmatprep.subr.mxu0 0.0
  %123 = vmatpush1.msra.mxu0 0.0
  %124 = vmatprep.subr.mxu0 0.0
  %125 = vmatpush1.msra.mxu0 0.0
  %126 = vmatprep.subr.mxu0 0.0
  %127 = vmatpush1.msra.mxu0 0.0
  %128 = vmatprep.subr.mxu0 0.0
  %129 = vmatpush1.msra.mxu0 0.0
  %130 = vmatprep.subr.mxu0 0.0
  %131 = vmatpush1.msra.mxu0 0.0
  %132 = vmatprep.subr.mxu0 0.0
  %133 = vmatpush1.msra.mxu0 0.0
  %134 = vmatprep.mubr.f32.mxu0 0.0
  %135 = vmatmul.mubr.f32.gmra.mrb[0].mxu0 %v68
  %v136 = vpop.f32.mrb[0].mxu0
  %v137 = vadd.f32 %v65, %v136
  %v138 = vpop.f32.mrb[0].mxu0
  %139 = vdwg.mxu0
  %vm140 = vcmask 261120
  %141 = vst.msk [vmem:[%s5] sm:$0xff] %vm140, %v137
  // Predicated region
  $region22: #{_lambda_.10} parent=0 // pred_check
    _
  $region23: #{_lambda_.10} parent=0 // pred_check_branch
    %143 = sbr.rel (0) target = $region25
  $region24: #{_lambda_.10} parent=0 // pred_region
    _
  $region25: #{_lambda_.10} parent=0 // pred_fallthru
    _
  // Predicated region
  $region26: #{_lambda_.10} parent=0 // pred_check
    _
  $region27: #{_lambda_.10} parent=0 // pred_check_branch
    %145 = sbr.rel (0) target = $region29
  $region28: #{_lambda_.10} parent=0 // pred_region
    _
  $region29: #{_lambda_.10} parent=0 // pred_fallthru
    _

// kernel: _lambda_.8
$region0: #{_lambda_.8}
  #allocation0 [shape = 'u32[]', space=smem, size = 0x4, offset = 0x4, fixed_abs, tag = 'smem constant byte address 0x4 - core index']
  #allocation1 [shape = 'u32[144,128]{1,0:T(1,128)}', space=vmem, size = 0x12000, scoped, tag = 'internal scratch']
  %s0 = inlined_call_operand.vmem [shape: f32[32,16], index: 0, kind: input, shape index: {}]
  %s1 = inlined_call_operand.vmem [shape: f32[1,16], index: 1, kind: input, shape index: {}, may-alias: {1,12}]
  %s2 = inlined_call_operand.vmem [shape: f32[1,16], index: 2, kind: input, shape index: {}, may-alias: {2,11,13,17}]
  %s3 = inlined_call_operand.vmem [shape: f32[2,16,8], index: 3, kind: input, shape index: {}]
  %s4 = inlined_call_operand.vmem [shape: f32[2,16,8], index: 4, kind: input, shape index: {}]
  %s5 = inlined_call_operand.vmem [shape: f32[2,16,8], index: 5, kind: input, shape index: {}]
  %s6 = inlined_call_operand.vmem [shape: f32[2,1,8], index: 6, kind: input, shape index: {}, may-alias: {6,7,8}]
  %s7 = inlined_call_operand.vmem [shape: f32[2,1,8], index: 7, kind: input, shape index: {}, may-alias: {6,7,8}]
  %s8 = inlined_call_operand.vmem [shape: f32[2,1,8], index: 8, kind: input, shape index: {}, may-alias: {6,7,8}]
  %s9 = inlined_call_operand.vmem [shape: f32[2,32,32], index: 9, kind: input, shape index: {}]
  %s10 = inlined_call_operand.vmem [shape: f32[2,8,16], index: 10, kind: input, shape index: {}]
  %s11 = inlined_call_operand.vmem [shape: f32[1,16], index: 11, kind: input, shape index: {}, may-alias: {2,11,13,17}]
  %s12 = inlined_call_operand.vmem [shape: f32[1,16], index: 12, kind: input, shape index: {}, may-alias: {1,12}]
  %s13 = inlined_call_operand.vmem [shape: f32[1,16], index: 13, kind: input, shape index: {}, may-alias: {2,11,13,17}]
  %s14 = inlined_call_operand.vmem [shape: f32[16,64], index: 14, kind: input, shape index: {}]
  %s15 = inlined_call_operand.vmem [shape: f32[1,64], index: 15, kind: input, shape index: {}]
  %s16 = inlined_call_operand.vmem [shape: f32[64,16], index: 16, kind: input, shape index: {}]
  %s17 = inlined_call_operand.vmem [shape: f32[1,16], index: 17, kind: input, shape index: {}, may-alias: {2,11,13,17}]
  %s18 = inlined_call_operand.vmem [shape: f32[32,16], index: 18, kind: output, shape index: {}]
  %s19 = sld [smem:[#allocation0]]
  $region82: #{_lambda_.8} parent=0
    _
  %s21 = ssub.s32 1, %s19
  %s22 = scalar_select 0, %s21, %s19
  // Predicated region
  $region2: #{_lambda_.8} parent=0 // pred_check
    _
  $region3: #{_lambda_.8} parent=0 // pred_check_branch
    %24 = sbr.rel (0) target = $region5
  $region4: #{_lambda_.8} parent=0 // pred_region
    _
  $region5: #{_lambda_.8} parent=0 // pred_fallthru
    _
  // Predicated region
  $region6: #{_lambda_.8} parent=0 // pred_check
    _
  $region7: #{_lambda_.8} parent=0 // pred_check_branch
    %26 = sbr.rel (0) target = $region9
  $region8: #{_lambda_.8} parent=0 // pred_region
    _
  $region9: #{_lambda_.8} parent=0 // pred_fallthru
    _
  // Predicated region
  $region10: #{_lambda_.8} parent=0 // pred_check
    _
  $region11: #{_lambda_.8} parent=0 // pred_check_branch
    %28 = sbr.rel (0) target = $region13
  $region12: #{_lambda_.8} parent=0 // pred_region
    _
  $region13: #{_lambda_.8} parent=0 // pred_fallthru
    _
  // Predicated region
  $region14: #{_lambda_.8} parent=0 // pred_check
    _
  $region15: #{_lambda_.8} parent=0 // pred_check_branch
    %30 = sbr.rel (0) target = $region17
  $region16: #{_lambda_.8} parent=0 // pred_region
    _
  $region17: #{_lambda_.8} parent=0 // pred_fallthru
    _
  // Predicated region
  $region18: #{_lambda_.8} parent=0 // pred_check
    _
  $region19: #{_lambda_.8} parent=0 // pred_check_branch
    %32 = sbr.rel (0) target = $region21
  $region20: #{_lambda_.8} parent=0 // pred_region
    _
  $region21: #{_lambda_.8} parent=0 // pred_fallthru
    _
  // Predicated region
  $region22: #{_lambda_.8} parent=0 // pred_check
    _
  $region23: #{_lambda_.8} parent=0 // pred_check_branch
    %34 = sbr.rel (0) target = $region25
  $region24: #{_lambda_.8} parent=0 // pred_region
    _
  $region25: #{_lambda_.8} parent=0 // pred_fallthru
    _
  // Predicated region
  $region26: #{_lambda_.8} parent=0 // pred_check
    _
  $region27: #{_lambda_.8} parent=0 // pred_check_branch
    %36 = sbr.rel (0) target = $region29
  $region28: #{_lambda_.8} parent=0 // pred_region
    _
  $region29: #{_lambda_.8} parent=0 // pred_fallthru
    _
  // Predicated region
  $region30: #{_lambda_.8} parent=0 // pred_check
    _
  $region31: #{_lambda_.8} parent=0 // pred_check_branch
    %38 = sbr.rel (0) target = $region33
  $region32: #{_lambda_.8} parent=0 // pred_region
    _
  $region33: #{_lambda_.8} parent=0 // pred_fallthru
    _
  // Predicated region
  $region34: #{_lambda_.8} parent=0 // pred_check
    _
  $region35: #{_lambda_.8} parent=0 // pred_check_branch
    %40 = sbr.rel (0) target = $region37
  $region36: #{_lambda_.8} parent=0 // pred_region
    _
  $region37: #{_lambda_.8} parent=0 // pred_fallthru
    _
  // Predicated region
  $region38: #{_lambda_.8} parent=0 // pred_check
    _
  $region39: #{_lambda_.8} parent=0 // pred_check_branch
    %42 = sbr.rel (0) target = $region41
  $region40: #{_lambda_.8} parent=0 // pred_region
    _
  $region41: #{_lambda_.8} parent=0 // pred_fallthru
    _
  // Predicated region
  $region42: #{_lambda_.8} parent=0 // pred_check
    _
  $region43: #{_lambda_.8} parent=0 // pred_check_branch
    %44 = sbr.rel (0) target = $region45
  $region44: #{_lambda_.8} parent=0 // pred_region
    _
  $region45: #{_lambda_.8} parent=0 // pred_fallthru
    _
  // Predicated region
  $region46: #{_lambda_.8} parent=0 // pred_check
    _
  $region47: #{_lambda_.8} parent=0 // pred_check_branch
    %46 = sbr.rel (0) target = $region49
  $region48: #{_lambda_.8} parent=0 // pred_region
    _
  $region49: #{_lambda_.8} parent=0 // pred_fallthru
    _
  // Predicated region
  $region50: #{_lambda_.8} parent=0 // pred_check
    _
  $region51: #{_lambda_.8} parent=0 // pred_check_branch
    %48 = sbr.rel (0) target = $region53
  $region52: #{_lambda_.8} parent=0 // pred_region
    _
  $region53: #{_lambda_.8} parent=0 // pred_fallthru
    _
  // Predicated region
  $region54: #{_lambda_.8} parent=0 // pred_check
    _
  $region55: #{_lambda_.8} parent=0 // pred_check_branch
    %50 = sbr.rel (0) target = $region57
  $region56: #{_lambda_.8} parent=0 // pred_region
    _
  $region57: #{_lambda_.8} parent=0 // pred_fallthru
    _
  // Predicated region
  $region58: #{_lambda_.8} parent=0 // pred_check
    _
  $region59: #{_lambda_.8} parent=0 // pred_check_branch
    %52 = sbr.rel (0) target = $region61
  $region60: #{_lambda_.8} parent=0 // pred_region
    _
  $region61: #{_lambda_.8} parent=0 // pred_fallthru
    _
  // Predicated region
  $region62: #{_lambda_.8} parent=0 // pred_check
    _
  $region63: #{_lambda_.8} parent=0 // pred_check_branch
    %54 = sbr.rel (0) target = $region65
  $region64: #{_lambda_.8} parent=0 // pred_region
    _
  $region65: #{_lambda_.8} parent=0 // pred_fallthru
    _
  // Predicated region
  $region66: #{_lambda_.8} parent=0 // pred_check
    _
  $region67: #{_lambda_.8} parent=0 // pred_check_branch
    %56 = sbr.rel (0) target = $region69
  $region68: #{_lambda_.8} parent=0 // pred_region
    _
  $region69: #{_lambda_.8} parent=0 // pred_fallthru
    _
  // Predicated region
  $region70: #{_lambda_.8} parent=0 // pred_check
    _
  $region71: #{_lambda_.8} parent=0 // pred_check_branch
    %58 = sbr.rel (0) target = $region73
  $region72: #{_lambda_.8} parent=0 // pred_region
    _
  $region73: #{_lambda_.8} parent=0 // pred_fallthru
    _
  %v59 = vld [vmem:[%s0] sm:$0xff]
  %v60 = vld [vmem:[%s0 + $0x8] sm:$0xff]
  %v61 = vld [vmem:[%s0 + $0x10] sm:$0xff]
  %v62 = vld [vmem:[%s0 + $0x18] sm:$0xff]
  %v63 = vld [vmem:[%s1] sm:$0x1]
  %v64 = vld [vmem:[%s2] sm:$0x1]
  %vm65 = vcmask 130048
  %v66 = vsel %vm65, %v59, 0.0
  %67 = vadd.xlane.f32.xlu0 %v66
  %v68 = vpop.xlane.xlu0 %67
  %v69 = vsel %vm65, %v60, 0.0
  %70 = vadd.xlane.f32.xlu0 %v69
  %v71 = vpop.xlane.xlu0 %70
  %v72 = vsel %vm65, %v61, 0.0
  %73 = vadd.xlane.f32.xlu0 %v72
  %v74 = vpop.xlane.xlu0 %73
  %v75 = vsel %vm65, %v62, 0.0
  %76 = vadd.xlane.f32.xlu0 %v75
  %v77 = vpop.xlane.xlu0 %76
  %v78 = vrcp.pop 16.0
  %v79 = vmul.f32 %v68, %v78
  %v80 = vmul.f32 %v71, %v78
  %v81 = vmul.f32 %v74, %v78
  %v82 = vmul.f32 %v77, %v78
  %v83 = vsub.f32 %v59, %v79
  %v84 = vsub.f32 %v60, %v80
  %v85 = vsub.f32 %v61, %v81
  %v86 = vsub.f32 %v62, %v82
  %v87 = vmul.f32 %v83, %v83
  %v88 = vmul.f32 %v84, %v84
  %v89 = vmul.f32 %v85, %v85
  %v90 = vmul.f32 %v86, %v86
  %v91 = vsel %vm65, %v87, 0.0
  %92 = vadd.xlane.f32.xlu0 %v91
  %v93 = vpop.xlane.xlu0 %92
  %v94 = vsel %vm65, %v88, 0.0
  %95 = vadd.xlane.f32.xlu0 %v94
  %v96 = vpop.xlane.xlu0 %95
  %v97 = vsel %vm65, %v89, 0.0
  %98 = vadd.xlane.f32.xlu0 %v97
  %v99 = vpop.xlane.xlu0 %98
  %v100 = vsel %vm65, %v90, 0.0
  %101 = vadd.xlane.f32.xlu0 %v100
  %v102 = vpop.xlane.xlu0 %101
  %v103 = vmul.f32 %v93, %v78
  %v104 = vmul.f32 %v96, %v78
  %v105 = vmul.f32 %v99, %v78
  %v106 = vmul.f32 %v102, %v78
  %v107 = vadd.f32 %v103, 1e-05
  %v108 = vadd.f32 %v104, 1e-05
  %v109 = vadd.f32 %v105, 1e-05
  %v110 = vadd.f32 %v106, 1e-05
  %v111 = vrsqrt.pop %v107
  %v112 = vrsqrt.pop %v108
  %v113 = vrsqrt.pop %v109
  %v114 = vrsqrt.pop %v110
  %v115 = vmul.f32 %v83, %v111
  %v116 = vmul.f32 %v84, %v112
  %v117 = vmul.f32 %v85, %v113
  %v118 = vmul.f32 %v86, %v114
  %v120 = vlaneseq
  %v121 = vshrl.u32 %v120, 7
  %v122 = vsub.s32 0, %v121
  %v123 = vrot.slane %v63, %v122
  %v125 = vmul.f32 %v115, %v123
  %v126 = vmul.f32 %v116, %v123
  %v127 = vmul.f32 %v117, %v123
  %v128 = vmul.f32 %v118, %v123
  %v130 = vlaneseq
  %v131 = vshrl.u32 %v130, 7
  %v132 = vsub.s32 0, %v131
  %v133 = vrot.slane %v64, %v132
  %v135 = vadd.f32 %v125, %v133
  %v136 = vadd.f32 %v126, %v133
  %v137 = vadd.f32 %v127, %v133
  %v138 = vadd.f32 %v128, %v133
  %v139 = vld [vmem:[%s3] sm:$0xff]
  %v140 = vld [vmem:[%s3 + $0x8] sm:$0xff]
  %v141 = vld [vmem:[%s6] sm:$0x1]
  %v143 = vlaneseq
  %v144 = vshrl.u32 %v143, 7
  %v145 = vsub.s32 0, %v144
  %v146 = vrot.slane %v141, %v145
  %v149 = vsel %vm65, %v135, 0
  %v152 = vsel %vm65, %v136, 0
  %v155 = vsel %vm65, %v137, 0
  %v158 = vsel %vm65, %v138, 0
  %160 = vmatprep.subr.mxu0 0.0
  %161 = vmatpush1.msra.mxu0 %v139
  %162 = vmatprep.subr.mxu0 0.0
  %163 = vmatpush1.msra.mxu0 %v140
  %164 = vmatprep.subr.mxu0 0.0
  %165 = vmatpush1.msra.mxu0 0.0
  %166 = vmatprep.subr.mxu0 0.0
  %167 = vmatpush1.msra.mxu0 0.0
  %168 = vmatprep.subr.mxu0 0.0
  %169 = vmatpush1.msra.mxu0 0.0
  %170 = vmatprep.subr.mxu0 0.0
  %171 = vmatpush1.msra.mxu0 0.0
  %172 = vmatprep.subr.mxu0 0.0
  %173 = vmatpush1.msra.mxu0 0.0
  %174 = vmatprep.subr.mxu0 0.0
  %175 = vmatpush1.msra.mxu0 0.0
  %176 = vmatprep.subr.mxu0 0.0
  %177 = vmatpush1.msra.mxu0 0.0
  %178 = vmatprep.subr.mxu0 0.0
  %179 = vmatpush1.msra.mxu0 0.0
  %180 = vmatprep.subr.mxu0 0.0
  %181 = vmatpush1.msra.mxu0 0.0
  %182 = vmatprep.subr.mxu0 0.0
  %183 = vmatpush1.msra.mxu0 0.0
  %184 = vmatprep.subr.mxu0 0.0
  %185 = vmatpush1.msra.mxu0 0.0
  %186 = vmatprep.subr.mxu0 0.0
  %187 = vmatpush1.msra.mxu0 0.0
  %188 = vmatprep.subr.mxu0 0.0
  %189 = vmatpush1.msra.mxu0 0.0
  %190 = vmatprep.subr.mxu0 0.0
  %191 = vmatpush1.msra.mxu0 0.0
  %192 = vmatprep.subr.mxu0 0.0
  %193 = vmatpush1.msra.mxu0 0.0
  %194 = vmatprep.subr.mxu0 0.0
  %195 = vmatpush1.msra.mxu0 0.0
  %196 = vmatprep.subr.mxu0 0.0
  %197 = vmatpush1.msra.mxu0 0.0
  %198 = vmatprep.subr.mxu0 0.0
  %199 = vmatpush1.msra.mxu0 0.0
  %200 = vmatprep.subr.mxu0 0.0
  %201 = vmatpush1.msra.mxu0 0.0
  %202 = vmatprep.subr.mxu0 0.0
  %203 = vmatpush1.msra.mxu0 0.0
  %204 = vmatprep.subr.mxu0 0.0
  %205 = vmatpush1.msra.mxu0 0.0
  %206 = vmatprep.subr.mxu0 0.0
  %207 = vmatpush1.msra.mxu0 0.0
  %208 = vmatprep.subr.mxu0 0.0
  %209 = vmatpush1.msra.mxu0 0.0
  %210 = vmatprep.subr.mxu0 0.0
  %211 = vmatpush1.msra.mxu0 0.0
  %212 = vmatprep.subr.mxu0 0.0
  %213 = vmatpush1.msra.mxu0 0.0
  %214 = vmatprep.subr.mxu0 0.0
  %215 = vmatpush1.msra.mxu0 0.0
  %216 = vmatprep.subr.mxu0 0.0
  %217 = vmatpush1.msra.mxu0 0.0
  %218 = vmatprep.subr.mxu0 0.0
  %219 = vmatpush1.msra.mxu0 0.0
  %220 = vmatprep.subr.mxu0 0.0
  %221 = vmatpush1.msra.mxu0 0.0
  %222 = vmatprep.subr.mxu0 0.0
  %223 = vmatpush1.msra.mxu0 0.0
  %224 = vmatprep.mubr.f32.mxu0 0.0
  %225 = vmatmul.mubr.f32.gmra.mrb[0].mxu0 %v149
  %v226 = vpop.f32.mrb[0].mxu0
  %v227 = vadd.f32 %v146, %v226
  %v228 = vpop.f32.mrb[0].mxu0
  %229 = vmatprep.mubr.f32.mxu0 0.0
  %230 = vmatmul.mubr.f32.gmra.mrb[0].mxu0 %v152
  %v231 = vpop.f32.mrb[0].mxu0
  %v232 = vadd.f32 %v146, %v231
  %v233 = vpop.f32.mrb[0].mxu0
  %234 = vmatprep.mubr.f32.mxu0 0.0
  %235 = vmatmul.mubr.f32.gmra.mrb[0].mxu0 %v155
  %v236 = vpop.f32.mrb[0].mxu0
  %v237 = vadd.f32 %v146, %v236
  %v238 = vpop.f32.mrb[0].mxu0
  %239 = vmatprep.mubr.f32.mxu0 0.0
  %240 = vmatmul.mubr.f32.gmra.mrb[0].mxu0 %v158
  %v241 = vpop.f32.mrb[0].mxu0
  %v242 = vadd.f32 %v146, %v241
  %v243 = vpop.f32.mrb[0].mxu0
  %244 = vdwg.mxu0
  %v245 = vmul.f32 %v227, 0.35355338
  %v246 = vmul.f32 %v232, 0.35355338
  %v247 = vmul.f32 %v237, 0.35355338
  %v248 = vmul.f32 %v242, 0.35355338
  %v249 = vld [vmem:[%s4] sm:$0xff]
  %v250 = vld [vmem:[%s4 + $0x8] sm:$0xff]
  %v251 = vld [vmem:[%s7] sm:$0x1]
  %v253 = vlaneseq
  %v254 = vshrl.u32 %v253, 7
  %v255 = vsub.s32 0, %v254
  %v256 = vrot.slane %v251, %v255
  %258 = vmatprep.subr.mxu0 0.0
  %259 = vmatpush1.msra.mxu0 %v249
  %260 = vmatprep.subr.mxu0 0.0
  %261 = vmatpush1.msra.mxu0 %v250
  %262 = vmatprep.subr.mxu0 0.0
  %263 = vmatpush1.msra.mxu0 0.0
  %264 = vmatprep.subr.mxu0 0.0
  %265 = vmatpush1.msra.mxu0 0.0
  %266 = vmatprep.subr.mxu0 0.0
  %267 = vmatpush1.msra.mxu0 0.0
  %268 = vmatprep.subr.mxu0 0.0
  %269 = vmatpush1.msra.mxu0 0.0
  %270 = vmatprep.subr.mxu0 0.0
  %271 = vmatpush1.msra.mxu0 0.0
  %272 = vmatprep.subr.mxu0 0.0
  %273 = vmatpush1.msra.mxu0 0.0
  %274 = vmatprep.subr.mxu0 0.0
  %275 = vmatpush1.msra.mxu0 0.0
  %276 = vmatprep.subr.mxu0 0.0
  %277 = vmatpush1.msra.mxu0 0.0
  %278 = vmatprep.subr.mxu0 0.0
  %279 = vmatpush1.msra.mxu0 0.0
  %280 = vmatprep.subr.mxu0 0.0
  %281 = vmatpush1.msra.mxu0 0.0
  %282 = vmatprep.subr.mxu0 0.0
  %283 = vmatpush1.msra.mxu0 0.0
  %284 = vmatprep.subr.mxu0 0.0
  %285 = vmatpush1.msra.mxu0 0.0
  %286 = vmatprep.subr.mxu0 0.0
  %287 = vmatpush1.msra.mxu0 0.0
  %288 = vmatprep.subr.mxu0 0.0
  %289 = vmatpush1.msra.mxu0 0.0
  %290 = vmatprep.subr.mxu0 0.0
  %291 = vmatpush1.msra.mxu0 0.0
  %292 = vmatprep.subr.mxu0 0.0
  %293 = vmatpush1.msra.mxu0 0.0
  %294 = vmatprep.subr.mxu0 0.0
  %295 = vmatpush1.msra.mxu0 0.0
  %296 = vmatprep.subr.mxu0 0.0
  %297 = vmatpush1.msra.mxu0 0.0
  %298 = vmatprep.subr.mxu0 0.0
  %299 = vmatpush1.msra.mxu0 0.0
  %300 = vmatprep.subr.mxu0 0.0
  %301 = vmatpush1.msra.mxu0 0.0
  %302 = vmatprep.subr.mxu0 0.0
  %303 = vmatpush1.msra.mxu0 0.0
  %304 = vmatprep.subr.mxu0 0.0
  %305 = vmatpush1.msra.mxu0 0.0
  %306 = vmatprep.subr.mxu0 0.0
  %307 = vmatpush1.msra.mxu0 0.0
  %308 = vmatprep.subr.mxu0 0.0
  %309 = vmatpush1.msra.mxu0 0.0
  %310 = vmatprep.subr.mxu0 0.0
  %311 = vmatpush1.msra.mxu0 0.0
  %312 = vmatprep.subr.mxu0 0.0
  %313 = vmatpush1.msra.mxu0 0.0
  %314 = vmatprep.subr.mxu0 0.0
  %315 = vmatpush1.msra.mxu0 0.0
  %316 = vmatprep.subr.mxu0 0.0
  %317 = vmatpush1.msra.mxu0 0.0
  %318 = vmatprep.subr.mxu0 0.0
  %319 = vmatpush1.msra.mxu0 0.0
  %320 = vmatprep.subr.mxu0 0.0
  %321 = vmatpush1.msra.mxu0 0.0
  %322 = vmatprep.mubr.f32.mxu0 0.0
  %323 = vmatmul.mubr.f32.gmra.mrb[0].mxu0 %v149
  %v324 = vpop.f32.mrb[0].mxu0
  %v325 = vadd.f32 %v256, %v324
  %v326 = vpop.f32.mrb[0].mxu0
  %327 = vmatprep.mubr.f32.mxu0 0.0
  %328 = vmatmul.mubr.f32.gmra.mrb[0].mxu0 %v152
  %v329 = vpop.f32.mrb[0].mxu0
  %v330 = vadd.f32 %v256, %v329
  %v331 = vpop.f32.mrb[0].mxu0
  %332 = vmatprep.mubr.f32.mxu0 0.0
  %333 = vmatmul.mubr.f32.gmra.mrb[0].mxu0 %v155
  %v334 = vpop.f32.mrb[0].mxu0
  %v335 = vadd.f32 %v256, %v334
  %v336 = vpop.f32.mrb[0].mxu0
  %337 = vmatprep.mubr.f32.mxu0 0.0
  %338 = vmatmul.mubr.f32.gmra.mrb[0].mxu0 %v158
  %v339 = vpop.f32.mrb[0].mxu0
  %v340 = vadd.f32 %v256, %v339
  %v341 = vpop.f32.mrb[0].mxu0
  %342 = vdwg.mxu0
  %v343 = vld [vmem:[%s5] sm:$0xff]
  %v344 = vld [vmem:[%s5 + $0x8] sm:$0xff]
  %v345 = vld [vmem:[%s8] sm:$0x1]
  %v347 = vlaneseq
  %v348 = vshrl.u32 %v347, 7
  %v349 = vsub.s32 0, %v348
  %v350 = vrot.slane %v345, %v349
  %352 = vmatprep.subr.mxu0 0.0
  %353 = vmatpush1.msra.mxu0 %v343
  %354 = vmatprep.subr.mxu0 0.0
  %355 = vmatpush1.msra.mxu0 %v344
  %356 = vmatprep.subr.mxu0 0.0
  %357 = vmatpush1.msra.mxu0 0.0
  %358 = vmatprep.subr.mxu0 0.0
  %359 = vmatpush1.msra.mxu0 0.0
  %360 = vmatprep.subr.mxu0 0.0
  %361 = vmatpush1.msra.mxu0 0.0
  %362 = vmatprep.subr.mxu0 0.0
  %363 = vmatpush1.msra.mxu0 0.0
  %364 = vmatprep.subr.mxu0 0.0
  %365 = vmatpush1.msra.mxu0 0.0
  %366 = vmatprep.subr.mxu0 0.0
  %367 = vmatpush1.msra.mxu0 0.0
  %368 = vmatprep.subr.mxu0 0.0
  %369 = vmatpush1.msra.mxu0 0.0
  %370 = vmatprep.subr.mxu0 0.0
  %371 = vmatpush1.msra.mxu0 0.0
  %372 = vmatprep.subr.mxu0 0.0
  %373 = vmatpush1.msra.mxu0 0.0
  %374 = vmatprep.subr.mxu0 0.0
  %375 = vmatpush1.msra.mxu0 0.0
  %376 = vmatprep.subr.mxu0 0.0
  %377 = vmatpush1.msra.mxu0 0.0
  %378 = vmatprep.subr.mxu0 0.0
  %379 = vmatpush1.msra.mxu0 0.0
  %380 = vmatprep.subr.mxu0 0.0
  %381 = vmatpush1.msra.mxu0 0.0
  %382 = vmatprep.subr.mxu0 0.0
  %383 = vmatpush1.msra.mxu0 0.0
  %384 = vmatprep.subr.mxu0 0.0
  %385 = vmatpush1.msra.mxu0 0.0
  %386 = vmatprep.subr.mxu0 0.0
  %387 = vmatpush1.msra.mxu0 0.0
  %388 = vmatprep.subr.mxu0 0.0
  %389 = vmatpush1.msra.mxu0 0.0
  %390 = vmatprep.subr.mxu0 0.0
  %391 = vmatpush1.msra.mxu0 0.0
  %392 = vmatprep.subr.mxu0 0.0
  %393 = vmatpush1.msra.mxu0 0.0
  %394 = vmatprep.subr.mxu0 0.0
  %395 = vmatpush1.msra.mxu0 0.0
  %396 = vmatprep.subr.mxu0 0.0
  %397 = vmatpush1.msra.mxu0 0.0
  %398 = vmatprep.subr.mxu0 0.0
  %399 = vmatpush1.msra.mxu0 0.0
  %400 = vmatprep.subr.mxu0 0.0
  %401 = vmatpush1.msra.mxu0 0.0
  %402 = vmatprep.subr.mxu0 0.0
  %403 = vmatpush1.msra.mxu0 0.0
  %404 = vmatprep.subr.mxu0 0.0
  %405 = vmatpush1.msra.mxu0 0.0
  %406 = vmatprep.subr.mxu0 0.0
  %407 = vmatpush1.msra.mxu0 0.0
  %408 = vmatprep.subr.mxu0 0.0
  %409 = vmatpush1.msra.mxu0 0.0
  %410 = vmatprep.subr.mxu0 0.0
  %411 = vmatpush1.msra.mxu0 0.0
  %412 = vmatprep.subr.mxu0 0.0
  %413 = vmatpush1.msra.mxu0 0.0
  %414 = vmatprep.subr.mxu0 0.0
  %415 = vmatpush1.msra.mxu0 0.0
  %416 = vmatprep.mubr.f32.mxu0 0.0
  %417 = vmatmul.mubr.f32.gmra.mrb[0].mxu0 %v149
  %v418 = vpop.f32.mrb[0].mxu0
  %v419 = vadd.f32 %v350, %v418
  %v420 = vpop.f32.mrb[0].mxu0
  %421 = vmatprep.mubr.f32.mxu0 0.0
  %422 = vmatmul.mubr.f32.gmra.mrb[0].mxu0 %v152
  %v423 = vpop.f32.mrb[0].mxu0
  %v424 = vadd.f32 %v350, %v423
  %v425 = vpop.f32.mrb[0].mxu0
  %426 = vmatprep.mubr.f32.mxu0 0.0
  %427 = vmatmul.mubr.f32.gmra.mrb[0].mxu0 %v155
  %v428 = vpop.f32.mrb[0].mxu0
  %v429 = vadd.f32 %v350, %v428
  %v430 = vpop.f32.mrb[0].mxu0
  %431 = vmatprep.mubr.f32.mxu0 0.0
  %432 = vmatmul.mubr.f32.gmra.mrb[0].mxu0 %v158
  %v433 = vpop.f32.mrb[0].mxu0
  %v434 = vadd.f32 %v350, %v433
  %v435 = vpop.f32.mrb[0].mxu0
  %436 = vdwg.mxu0
  %v437 = vld [vmem:[%s9] sm:$0xff]
  %v438 = vld [vmem:[%s9 + $0x8] sm:$0xff]
  %v439 = vld [vmem:[%s9 + $0x10] sm:$0xff]
  %v440 = vld [vmem:[%s9 + $0x18] sm:$0xff]
  %vm441 = vcmask 64512
  %v443 = vsel %vm441, %v245, 0
  %v446 = vsel %vm441, %v246, 0
  %v449 = vsel %vm441, %v247, 0
  %v452 = vsel %vm441, %v248, 0
  %v455 = vsel %vm441, %v325, 0
  %v458 = vsel %vm441, %v330, 0
  %v461 = vsel %vm441, %v335, 0
  %v464 = vsel %vm441, %v340, 0
  %466 = vmatprep.subr.mxu0 0.0
  %467 = vmatpush1.xpose.msra.mxu0 %v455
  %468 = vmatprep.subr.mxu0 0.0
  %469 = vmatpush1.xpose.msra.mxu0 %v458
  %470 = vmatprep.subr.mxu0 0.0
  %471 = vmatpush1.xpose.msra.mxu0 %v461
  %472 = vmatprep.subr.mxu0 0.0
  %473 = vmatpush1.xpose.msra.mxu0 %v464
  %474 = vmatprep.subr.mxu0 0.0
  %475 = vmatpush1.xpose.msra.mxu0 0.0
  %476 = vmatprep.subr.mxu0 0.0
  %477 = vmatpush1.xpose.msra.mxu0 0.0
  %478 = vmatprep.subr.mxu0 0.0
  %479 = vmatpush1.xpose.msra.mxu0 0.0
  %480 = vmatprep.subr.mxu0 0.0
  %481 = vmatpush1.xpose.msra.mxu0 0.0
  %482 = vmatprep.subr.mxu0 0.0
  %483 = vmatpush1.xpose.msra.mxu0 0.0
  %484 = vmatprep.subr.mxu0 0.0
  %485 = vmatpush1.xpose.msra.mxu0 0.0
  %486 = vmatprep.subr.mxu0 0.0
  %487 = vmatpush1.xpose.msra.mxu0 0.0
  %488 = vmatprep.subr.mxu0 0.0
  %489 = vmatpush1.xpose.msra.mxu0 0.0
  %490 = vmatprep.subr.mxu0 0.0
  %491 = vmatpush1.xpose.msra.mxu0 0.0
  %492 = vmatprep.subr.mxu0 0.0
  %493 = vmatpush1.xpose.msra.mxu0 0.0
  %494 = vmatprep.subr.mxu0 0.0
  %495 = vmatpush1.xpose.msra.mxu0 0.0
  %496 = vmatprep.subr.mxu0 0.0
  %497 = vmatpush1.xpose.msra.mxu0 0.0
  %498 = vmatprep.subr.mxu0 0.0
  %499 = vmatpush1.xpose.msra.mxu0 0.0
  %500 = vmatprep.subr.mxu0 0.0
  %501 = vmatpush1.xpose.msra.mxu0 0.0
  %502 = vmatprep.subr.mxu0 0.0
  %503 = vmatpush1.xpose.msra.mxu0 0.0
  %504 = vmatprep.subr.mxu0 0.0
  %505 = vmatpush1.xpose.msra.mxu0 0.0
  %506 = vmatprep.subr.mxu0 0.0
  %507 = vmatpush1.xpose.msra.mxu0 0.0
  %508 = vmatprep.subr.mxu0 0.0
  %509 = vmatpush1.xpose.msra.mxu0 0.0
  %510 = vmatprep.subr.mxu0 0.0
  %511 = vmatpush1.xpose.msra.mxu0 0.0
  %512 = vmatprep.subr.mxu0 0.0
  %513 = vmatpush1.xpose.msra.mxu0 0.0
  %514 = vmatprep.subr.mxu0 0.0
  %515 = vmatpush1.xpose.msra.mxu0 0.0
  %516 = vmatprep.subr.mxu0 0.0
  %517 = vmatpush1.xpose.msra.mxu0 0.0
  %518 = vmatprep.subr.mxu0 0.0
  %519 = vmatpush1.xpose.msra.mxu0 0.0
  %520 = vmatprep.subr.mxu0 0.0
  %521 = vmatpush1.xpose.msra.mxu0 0.0
  %522 = vmatprep.subr.mxu0 0.0
  %523 = vmatpush1.xpose.msra.mxu0 0.0
  %524 = vmatprep.subr.mxu0 0.0
  %525 = vmatpush1.xpose.msra.mxu0 0.0
  %526 = vmatprep.subr.mxu0 0.0
  %527 = vmatpush1.xpose.msra.mxu0 0.0
  %528 = vmatprep.subr.mxu0 0.0
  %529 = vmatpush1.xpose.msra.mxu0 0.0
  %530 = vmatprep.mubr.f32.mxu0 0.0
  %531 = vmatmul.mubr.f32.gmra.mrb[0].mxu0 %v443
  %v532 = vpop.f32.mrb[0].mxu0
  %v533 = vadd.f32 %v437, %v532
  %v534 = vpop.f32.mrb[0].mxu0
  %535 = vmatprep.mubr.f32.mxu0 0.0
  %536 = vmatmul.mubr.f32.gmra.mrb[0].mxu0 %v446
  %v537 = vpop.f32.mrb[0].mxu0
  %v538 = vadd.f32 %v438, %v537
  %v539 = vpop.f32.mrb[0].mxu0
  %540 = vmatprep.mubr.f32.mxu0 0.0
  %541 = vmatmul.mubr.f32.gmra.mrb[0].mxu0 %v449
  %v542 = vpop.f32.mrb[0].mxu0
  %v543 = vadd.f32 %v439, %v542
  %v544 = vpop.f32.mrb[0].mxu0
  %545 = vmatprep.mubr.f32.mxu0 0.0
  %546 = vmatmul.mubr.f32.gmra.mrb[0].mxu0 %v452
  %v547 = vpop.f32.mrb[0].mxu0
  %v548 = vadd.f32 %v440, %v547
  %v549 = vpop.f32.mrb[0].mxu0
  %550 = vdwg.mxu0
  %vm551 = vcmask 261120
  %v552 = vsel %vm551, %v533, -inf
  %553 = vmax.xlane.f32.xlu0 %v552
  %v554 = vpop.xlane.xlu0 %553
  %v555 = vsel %vm551, %v538, -inf
  %556 = vmax.xlane.f32.xlu0 %v555
  %v557 = vpop.xlane.xlu0 %556
  %v558 = vsel %vm551, %v543, -inf
  %559 = vmax.xlane.f32.xlu0 %v558
  %v560 = vpop.xlane.xlu0 %559
  %v561 = vsel %vm551, %v548, -inf
  %562 = vmax.xlane.f32.xlu0 %v561
  %v563 = vpop.xlane.xlu0 %562
  %v564 = vsub.f32 %v533, %v554
  %v565 = vsub.f32 %v538, %v557
  %v566 = vsub.f32 %v543, %v560
  %v567 = vsub.f32 %v548, %v563
  %v568 = vmul.f32 %v564, 1.442695
  %v569 = vpow.pop %v568
  %v570 = vmul.f32 %v565, 1.442695
  %v571 = vpow.pop %v570
  %v572 = vmul.f32 %v566, 1.442695
  %v573 = vpow.pop %v572
  %v574 = vmul.f32 %v567, 1.442695
  %v575 = vpow.pop %v574
  %v576 = vsel %vm551, %v569, 0.0
  %577 = vadd.xlane.f32.xlu0 %v576
  %v578 = vpop.xlane.xlu0 %577
  %v579 = vsel %vm551, %v571, 0.0
  %580 = vadd.xlane.f32.xlu0 %v579
  %v581 = vpop.xlane.xlu0 %580
  %v582 = vsel %vm551, %v573, 0.0
  %583 = vadd.xlane.f32.xlu0 %v582
  %v584 = vpop.xlane.xlu0 %583
  %v585 = vsel %vm551, %v575, 0.0
  %586 = vadd.xlane.f32.xlu0 %v585
  %v587 = vpop.xlane.xlu0 %586
  %v588 = vrcp.pop %v578
  %v589 = vrcp.pop %v581
  %v590 = vrcp.pop %v584
  %v591 = vrcp.pop %v587
  %v592 = vmul.f32 %v569, %v588
  %v593 = vmul.f32 %v571, %v589
  %v594 = vmul.f32 %v573, %v590
  %v595 = vmul.f32 %v575, %v591
  %v597 = vsel %vm551, %v592, 0
  %v600 = vsel %vm551, %v593, 0
  %v603 = vsel %vm551, %v594, 0
  %v606 = vsel %vm551, %v595, 0
  %608 = vmatprep.subr.mxu0 0.0
  %609 = vmatpush1.msra.mxu0 %v419
  %610 = vmatprep.subr.mxu0 0.0
  %611 = vmatpush1.msra.mxu0 %v424
  %612 = vmatprep.subr.mxu0 0.0
  %613 = vmatpush1.msra.mxu0 %v429
  %614 = vmatprep.subr.mxu0 0.0
  %615 = vmatpush1.msra.mxu0 %v434
  %616 = vmatprep.subr.mxu0 0.0
  %617 = vmatpush1.msra.mxu0 0.0
  %618 = vmatprep.subr.mxu0 0.0
  %619 = vmatpush1.msra.mxu0 0.0
  %620 = vmatprep.subr.mxu0 0.0
  %621 = vmatpush1.msra.mxu0 0.0
  %622 = vmatprep.subr.mxu0 0.0
  %623 = vmatpush1.msra.mxu0 0.0
  %624 = vmatprep.subr.mxu0 0.0
  %625 = vmatpush1.msra.mxu0 0.0
  %626 = vmatprep.subr.mxu0 0.0
  %627 = vmatpush1.msra.mxu0 0.0
  %628 = vmatprep.subr.mxu0 0.0
  %629 = vmatpush1.msra.mxu0 0.0
  %630 = vmatprep.subr.mxu0 0.0
  %631 = vmatpush1.msra.mxu0 0.0
  %632 = vmatprep.subr.mxu0 0.0
  %633 = vmatpush1.msra.mxu0 0.0
  %634 = vmatprep.subr.mxu0 0.0
  %635 = vmatpush1.msra.mxu0 0.0
  %636 = vmatprep.subr.mxu0 0.0
  %637 = vmatpush1.msra.mxu0 0.0
  %638 = vmatprep.subr.mxu0 0.0
  %639 = vmatpush1.msra.mxu0 0.0
  %640 = vmatprep.subr.mxu0 0.0
  %641 = vmatpush1.msra.mxu0 0.0
  %642 = vmatprep.subr.mxu0 0.0
  %643 = vmatpush1.msra.mxu0 0.0
  %644 = vmatprep.subr.mxu0 0.0
  %645 = vmatpush1.msra.mxu0 0.0
  %646 = vmatprep.subr.mxu0 0.0
  %647 = vmatpush1.msra.mxu0 0.0
  %648 = vmatprep.subr.mxu0 0.0
  %649 = vmatpush1.msra.mxu0 0.0
  %650 = vmatprep.subr.mxu0 0.0
  %651 = vmatpush1.msra.mxu0 0.0
  %652 = vmatprep.subr.mxu0 0.0
  %653 = vmatpush1.msra.mxu0 0.0
  %654 = vmatprep.subr.mxu0 0.0
  %655 = vmatpush1.msra.mxu0 0.0
  %656 = vmatprep.subr.mxu0 0.0
  %657 = vmatpush1.msra.mxu0 0.0
  %658 = vmatprep.subr.mxu0 0.0
  %659 = vmatpush1.msra.mxu0 0.0
  %660 = vmatprep.subr.mxu0 0.0
  %661 = vmatpush1.msra.mxu0 0.0
  %662 = vmatprep.subr.mxu0 0.0
  %663 = vmatpush1.msra.mxu0 0.0
  %664 = vmatprep.subr.mxu0 0.0
  %665 = vmatpush1.msra.mxu0 0.0
  %666 = vmatprep.subr.mxu0 0.0
  %667 = vmatpush1.msra.mxu0 0.0
  %668 = vmatprep.subr.mxu0 0.0
  %669 = vmatpush1.msra.mxu0 0.0
  %670 = vmatprep.subr.mxu0 0.0
  %671 = vmatpush1.msra.mxu0 0.0
  %672 = vmatprep.mubr.f32.mxu0 0.0
  %673 = vmatmul.mubr.f32.gmra.mrb[0].mxu0 %v597
  %v674 = vpop.f32.mrb[0].mxu0
  %v675 = vadd.f32 0.0, %v674
  %v676 = vpop.f32.mrb[0].mxu0
  %677 = vmatprep.mubr.f32.mxu0 0.0
  %678 = vmatmul.mubr.f32.gmra.mrb[0].mxu0 %v600
  %v679 = vpop.f32.mrb[0].mxu0
  %v680 = vadd.f32 0.0, %v679
  %v681 = vpop.f32.mrb[0].mxu0
  %682 = vmatprep.mubr.f32.mxu0 0.0
  %683 = vmatmul.mubr.f32.gmra.mrb[0].mxu0 %v603
  %v684 = vpop.f32.mrb[0].mxu0
  %v685 = vadd.f32 0.0, %v684
  %v686 = vpop.f32.mrb[0].mxu0
  %687 = vmatprep.mubr.f32.mxu0 0.0
  %688 = vmatmul.mubr.f32.gmra.mrb[0].mxu0 %v606
  %v689 = vpop.f32.mrb[0].mxu0
  %v690 = vadd.f32 0.0, %v689
  %v691 = vpop.f32.mrb[0].mxu0
  %692 = vdwg.mxu0
  %v693 = vld [vmem:[%s10] sm:$0xff]
  %s694 = scalar_lea.vmem %s3, 16
  %v695 = vld [vmem:[%s694] sm:$0xff]
  %v696 = vld [vmem:[%s694 + $0x8] sm:$0xff]
  %s697 = scalar_lea.vmem %s6, 1
  %v698 = vld [vmem:[%s697] sm:$0x1]
  %v700 = vlaneseq
  %v701 = vshrl.u32 %v700, 7
  %v702 = vsub.s32 0, %v701
  %v703 = vrot.slane %v698, %v702
  %705 = vmatprep.subr.mxu0 0.0
  %706 = vmatpush1.msra.mxu0 %v695
  %707 = vmatprep.subr.mxu0 0.0
  %708 = vmatpush1.msra.mxu0 %v696
  %709 = vmatprep.subr.mxu0 0.0
  %710 = vmatpush1.msra.mxu0 0.0
  %711 = vmatprep.subr.mxu0 0.0
  %712 = vmatpush1.msra.mxu0 0.0
  %713 = vmatprep.subr.mxu0 0.0
  %714 = vmatpush1.msra.mxu0 0.0
  %715 = vmatprep.subr.mxu0 0.0
  %716 = vmatpush1.msra.mxu0 0.0
  %717 = vmatprep.subr.mxu0 0.0
  %718 = vmatpush1.msra.mxu0 0.0
  %719 = vmatprep.subr.mxu0 0.0
  %720 = vmatpush1.msra.mxu0 0.0
  %721 = vmatprep.subr.mxu0 0.0
  %722 = vmatpush1.msra.mxu0 0.0
  %723 = vmatprep.subr.mxu0 0.0
  %724 = vmatpush1.msra.mxu0 0.0
  %725 = vmatprep.subr.mxu0 0.0
  %726 = vmatpush1.msra.mxu0 0.0
  %727 = vmatprep.subr.mxu0 0.0
  %728 = vmatpush1.msra.mxu0 0.0
  %729 = vmatprep.subr.mxu0 0.0
  %730 = vmatpush1.msra.mxu0 0.0
  %731 = vmatprep.subr.mxu0 0.0
  %732 = vmatpush1.msra.mxu0 0.0
  %733 = vmatprep.subr.mxu0 0.0
  %734 = vmatpush1.msra.mxu0 0.0
  %735 = vmatprep.subr.mxu0 0.0
  %736 = vmatpush1.msra.mxu0 0.0
  %737 = vmatprep.subr.mxu0 0.0
  %738 = vmatpush1.msra.mxu0 0.0
  %739 = vmatprep.subr.mxu0 0.0
  %740 = vmatpush1.msra.mxu0 0.0
  %741 = vmatprep.subr.mxu0 0.0
  %742 = vmatpush1.msra.mxu0 0.0
  %743 = vmatprep.subr.mxu0 0.0
  %744 = vmatpush1.msra.mxu0 0.0
  %745 = vmatprep.subr.mxu0 0.0
  %746 = vmatpush1.msra.mxu0 0.0
  %747 = vmatprep.subr.mxu0 0.0
  %748 = vmatpush1.msra.mxu0 0.0
  %749 = vmatprep.subr.mxu0 0.0
  %750 = vmatpush1.msra.mxu0 0.0
  %751 = vmatprep.subr.mxu0 0.0
  %752 = vmatpush1.msra.mxu0 0.0
  %753 = vmatprep.subr.mxu0 0.0
  %754 = vmatpush1.msra.mxu0 0.0
  %755 = vmatprep.subr.mxu0 0.0
  %756 = vmatpush1.msra.mxu0 0.0
  %757 = vmatprep.subr.mxu0 0.0
  %758 = vmatpush1.msra.mxu0 0.0
  %759 = vmatprep.subr.mxu0 0.0
  %760 = vmatpush1.msra.mxu0 0.0
  %761 = vmatprep.subr.mxu0 0.0
  %762 = vmatpush1.msra.mxu0 0.0
  %763 = vmatprep.subr.mxu0 0.0
  %764 = vmatpush1.msra.mxu0 0.0
  %765 = vmatprep.subr.mxu0 0.0
  %766 = vmatpush1.msra.mxu0 0.0
  %767 = vmatprep.subr.mxu0 0.0
  %768 = vmatpush1.msra.mxu0 0.0
  %769 = vmatprep.mubr.f32.mxu0 0.0
  %770 = vmatmul.mubr.f32.gmra.mrb[0].mxu0 %v149
  %v771 = vpop.f32.mrb[0].mxu0
  %v772 = vadd.f32 %v703, %v771
  %v773 = vpop.f32.mrb[0].mxu0
  %774 = vmatprep.mubr.f32.mxu0 0.0
  %775 = vmatmul.mubr.f32.gmra.mrb[0].mxu0 %v152
  %v776 = vpop.f32.mrb[0].mxu0
  %v777 = vadd.f32 %v703, %v776
  %v778 = vpop.f32.mrb[0].mxu0
  %779 = vmatprep.mubr.f32.mxu0 0.0
  %780 = vmatmul.mubr.f32.gmra.mrb[0].mxu0 %v155
  %v781 = vpop.f32.mrb[0].mxu0
  %v782 = vadd.f32 %v703, %v781
  %v783 = vpop.f32.mrb[0].mxu0
  %784 = vmatprep.mubr.f32.mxu0 0.0
  %785 = vmatmul.mubr.f32.gmra.mrb[0].mxu0 %v158
  %v786 = vpop.f32.mrb[0].mxu0
  %v787 = vadd.f32 %v703, %v786
  %v788 = vpop.f32.mrb[0].mxu0
  %789 = vdwg.mxu0
  %v790 = vmul.f32 %v772, 0.35355338
  %v791 = vmul.f32 %v777, 0.35355338
  %v792 = vmul.f32 %v782, 0.35355338
  %v793 = vmul.f32 %v787, 0.35355338
  %s794 = scalar_lea.vmem %s4, 16
  %v795 = vld [vmem:[%s794] sm:$0xff]
  %v796 = vld [vmem:[%s794 + $0x8] sm:$0xff]
  %s797 = scalar_lea.vmem %s7, 1
  %v798 = vld [vmem:[%s797] sm:$0x1]
  %v800 = vlaneseq
  %v801 = vshrl.u32 %v800, 7
  %v802 = vsub.s32 0, %v801
  %v803 = vrot.slane %v798, %v802
  %805 = vmatprep.subr.mxu0 0.0
  %806 = vmatpush1.msra.mxu0 %v795
  %807 = vmatprep.subr.mxu0 0.0
  %808 = vmatpush1.msra.mxu0 %v796
  %809 = vmatprep.subr.mxu0 0.0
  %810 = vmatpush1.msra.mxu0 0.0
  %811 = vmatprep.subr.mxu0 0.0
  %812 = vmatpush1.msra.mxu0 0.0
  %813 = vmatprep.subr.mxu0 0.0
  %814 = vmatpush1.msra.mxu0 0.0
  %815 = vmatprep.subr.mxu0 0.0
  %816 = vmatpush1.msra.mxu0 0.0
  %817 = vmatprep.subr.mxu0 0.0
  %818 = vmatpush1.msra.mxu0 0.0
  %819 = vmatprep.subr.mxu0 0.0
  %820 = vmatpush1.msra.mxu0 0.0
  %821 = vmatprep.subr.mxu0 0.0
  %822 = vmatpush1.msra.mxu0 0.0
  %823 = vmatprep.subr.mxu0 0.0
  %824 = vmatpush1.msra.mxu0 0.0
  %825 = vmatprep.subr.mxu0 0.0
  %826 = vmatpush1.msra.mxu0 0.0
  %827 = vmatprep.subr.mxu0 0.0
  %828 = vmatpush1.msra.mxu0 0.0
  %829 = vmatprep.subr.mxu0 0.0
  %830 = vmatpush1.msra.mxu0 0.0
  %831 = vmatprep.subr.mxu0 0.0
  %832 = vmatpush1.msra.mxu0 0.0
  %833 = vmatprep.subr.mxu0 0.0
  %834 = vmatpush1.msra.mxu0 0.0
  %835 = vmatprep.subr.mxu0 0.0
  %836 = vmatpush1.msra.mxu0 0.0
  %837 = vmatprep.subr.mxu0 0.0
  %838 = vmatpush1.msra.mxu0 0.0
  %839 = vmatprep.subr.mxu0 0.0
  %840 = vmatpush1.msra.mxu0 0.0
  %841 = vmatprep.subr.mxu0 0.0
  %842 = vmatpush1.msra.mxu0 0.0
  %843 = vmatprep.subr.mxu0 0.0
  %844 = vmatpush1.msra.mxu0 0.0
  %845 = vmatprep.subr.mxu0 0.0
  %846 = vmatpush1.msra.mxu0 0.0
  %847 = vmatprep.subr.mxu0 0.0
  %848 = vmatpush1.msra.mxu0 0.0
  %849 = vmatprep.subr.mxu0 0.0
  %850 = vmatpush1.msra.mxu0 0.0
  %851 = vmatprep.subr.mxu0 0.0
  %852 = vmatpush1.msra.mxu0 0.0
  %853 = vmatprep.subr.mxu0 0.0
  %854 = vmatpush1.msra.mxu0 0.0
  %855 = vmatprep.subr.mxu0 0.0
  %856 = vmatpush1.msra.mxu0 0.0
  %857 = vmatprep.subr.mxu0 0.0
  %858 = vmatpush1.msra.mxu0 0.0
  %859 = vmatprep.subr.mxu0 0.0
  %860 = vmatpush1.msra.mxu0 0.0
  %861 = vmatprep.subr.mxu0 0.0
  %862 = vmatpush1.msra.mxu0 0.0
  %863 = vmatprep.subr.mxu0 0.0
  %864 = vmatpush1.msra.mxu0 0.0
  %865 = vmatprep.subr.mxu0 0.0
  %866 = vmatpush1.msra.mxu0 0.0
  %867 = vmatprep.subr.mxu0 0.0
  %868 = vmatpush1.msra.mxu0 0.0
  %869 = vmatprep.mubr.f32.mxu0 0.0
  %870 = vmatmul.mubr.f32.gmra.mrb[0].mxu0 %v149
  %v871 = vpop.f32.mrb[0].mxu0
  %v872 = vadd.f32 %v803, %v871
  %v873 = vpop.f32.mrb[0].mxu0
  %874 = vmatprep.mubr.f32.mxu0 0.0
  %875 = vmatmul.mubr.f32.gmra.mrb[0].mxu0 %v152
  %v876 = vpop.f32.mrb[0].mxu0
  %v877 = vadd.f32 %v803, %v876
  %v878 = vpop.f32.mrb[0].mxu0
  %879 = vmatprep.mubr.f32.mxu0 0.0
  %880 = vmatmul.mubr.f32.gmra.mrb[0].mxu0 %v155
  %v881 = vpop.f32.mrb[0].mxu0
  %v882 = vadd.f32 %v803, %v881
  %v883 = vpop.f32.mrb[0].mxu0
  %884 = vmatprep.mubr.f32.mxu0 0.0
  %885 = vmatmul.mubr.f32.gmra.mrb[0].mxu0 %v158
  %v886 = vpop.f32.mrb[0].mxu0
  %v887 = vadd.f32 %v803, %v886
  %v888 = vpop.f32.mrb[0].mxu0
  %889 = vdwg.mxu0
  %s890 = scalar_lea.vmem %s5, 16
  %v891 = vld [vmem:[%s890] sm:$0xff]
  %v892 = vld [vmem:[%s890 + $0x8] sm:$0xff]
  %s893 = scalar_lea.vmem %s8, 1
  %v894 = vld [vmem:[%s893] sm:$0x1]
  %v896 = vlaneseq
  %v897 = vshrl.u32 %v896, 7
  %v898 = vsub.s32 0, %v897
  %v899 = vrot.slane %v894, %v898
  %901 = vmatprep.subr.mxu0 0.0
  %902 = vmatpush1.msra.mxu0 %v891
  %903 = vmatprep.subr.mxu0 0.0
  %904 = vmatpush1.msra.mxu0 %v892
  %905 = vmatprep.subr.mxu0 0.0
  %906 = vmatpush1.msra.mxu0 0.0
  %907 = vmatprep.subr.mxu0 0.0
  %908 = vmatpush1.msra.mxu0 0.0
  %909 = vmatprep.subr.mxu0 0.0
  %910 = vmatpush1.msra.mxu0 0.0
  %911 = vmatprep.subr.mxu0 0.0
  %912 = vmatpush1.msra.mxu0 0.0
  %913 = vmatprep.subr.mxu0 0.0
  %914 = vmatpush1.msra.mxu0 0.0
  %915 = vmatprep.subr.mxu0 0.0
  %916 = vmatpush1.msra.mxu0 0.0
  %917 = vmatprep.subr.mxu0 0.0
  %918 = vmatpush1.msra.mxu0 0.0
  %919 = vmatprep.subr.mxu0 0.0
  %920 = vmatpush1.msra.mxu0 0.0
  %921 = vmatprep.subr.mxu0 0.0
  %922 = vmatpush1.msra.mxu0 0.0
  %923 = vmatprep.subr.mxu0 0.0
  %924 = vmatpush1.msra.mxu0 0.0
  %925 = vmatprep.subr.mxu0 0.0
  %926 = vmatpush1.msra.mxu0 0.0
  %927 = vmatprep.subr.mxu0 0.0
  %928 = vmatpush1.msra.mxu0 0.0
  %929 = vmatprep.subr.mxu0 0.0
  %930 = vmatpush1.msra.mxu0 0.0
  %931 = vmatprep.subr.mxu0 0.0
  %932 = vmatpush1.msra.mxu0 0.0
  %933 = vmatprep.subr.mxu0 0.0
  %934 = vmatpush1.msra.mxu0 0.0
  %935 = vmatprep.subr.mxu0 0.0
  %936 = vmatpush1.msra.mxu0 0.0
  %937 = vmatprep.subr.mxu0 0.0
  %938 = vmatpush1.msra.mxu0 0.0
  %939 = vmatprep.subr.mxu0 0.0
  %940 = vmatpush1.msra.mxu0 0.0
  %941 = vmatprep.subr.mxu0 0.0
  %942 = vmatpush1.msra.mxu0 0.0
  %943 = vmatprep.subr.mxu0 0.0
  %944 = vmatpush1.msra.mxu0 0.0
  %945 = vmatprep.subr.mxu0 0.0
  %946 = vmatpush1.msra.mxu0 0.0
  %947 = vmatprep.subr.mxu0 0.0
  %948 = vmatpush1.msra.mxu0 0.0
  %949 = vmatprep.subr.mxu0 0.0
  %950 = vmatpush1.msra.mxu0 0.0
  %951 = vmatprep.subr.mxu0 0.0
  %952 = vmatpush1.msra.mxu0 0.0
  %953 = vmatprep.subr.mxu0 0.0
  %954 = vmatpush1.msra.mxu0 0.0
  %955 = vmatprep.subr.mxu0 0.0
  %956 = vmatpush1.msra.mxu0 0.0
  %957 = vmatprep.subr.mxu0 0.0
  %958 = vmatpush1.msra.mxu0 0.0
  %959 = vmatprep.subr.mxu0 0.0
  %960 = vmatpush1.msra.mxu0 0.0
  %961 = vmatprep.subr.mxu0 0.0
  %962 = vmatpush1.msra.mxu0 0.0
  %963 = vmatprep.subr.mxu0 0.0
  %964 = vmatpush1.msra.mxu0 0.0
  %965 = vmatprep.mubr.f32.mxu0 0.0
  %966 = vmatmul.mubr.f32.gmra.mrb[0].mxu0 %v149
  %v967 = vpop.f32.mrb[0].mxu0
  %v968 = vadd.f32 %v899, %v967
  %v969 = vpop.f32.mrb[0].mxu0
  %970 = vmatprep.mubr.f32.mxu0 0.0
  %971 = vmatmul.mubr.f32.gmra.mrb[0].mxu0 %v152
  %v972 = vpop.f32.mrb[0].mxu0
  %v973 = vadd.f32 %v899, %v972
  %v974 = vpop.f32.mrb[0].mxu0
  %975 = vmatprep.mubr.f32.mxu0 0.0
  %976 = vmatmul.mubr.f32.gmra.mrb[0].mxu0 %v155
  %v977 = vpop.f32.mrb[0].mxu0
  %v978 = vadd.f32 %v899, %v977
  %v979 = vpop.f32.mrb[0].mxu0
  %980 = vmatprep.mubr.f32.mxu0 0.0
  %981 = vmatmul.mubr.f32.gmra.mrb[0].mxu0 %v158
  %v982 = vpop.f32.mrb[0].mxu0
  %v983 = vadd.f32 %v899, %v982
  %v984 = vpop.f32.mrb[0].mxu0
  %985 = vdwg.mxu0
  %s986 = scalar_lea.vmem %s9, 32
  %v987 = vld [vmem:[%s986] sm:$0xff]
  %v988 = vld [vmem:[%s986 + $0x8] sm:$0xff]
  %v989 = vld [vmem:[%s986 + $0x10] sm:$0xff]
  %v990 = vld [vmem:[%s986 + $0x18] sm:$0xff]
  %v992 = vsel %vm441, %v790, 0
  %v995 = vsel %vm441, %v791, 0
  %v998 = vsel %vm441, %v792, 0
  %v1001 = vsel %vm441, %v793, 0
  %v1004 = vsel %vm441, %v872, 0
  %v1007 = vsel %vm441, %v877, 0
  %v1010 = vsel %vm441, %v882, 0
  %v1013 = vsel %vm441, %v887, 0
  %1015 = vmatprep.subr.mxu0 0.0
  %1016 = vmatpush1.xpose.msra.mxu0 %v1004
  %1017 = vmatprep.subr.mxu0 0.0
  %1018 = vmatpush1.xpose.msra.mxu0 %v1007
  %1019 = vmatprep.subr.mxu0 0.0
  %1020 = vmatpush1.xpose.msra.mxu0 %v1010
  %1021 = vmatprep.subr.mxu0 0.0
  %1022 = vmatpush1.xpose.msra.mxu0 %v1013
  %1023 = vmatprep.subr.mxu0 0.0
  %1024 = vmatpush1.xpose.msra.mxu0 0.0
  %1025 = vmatprep.subr.mxu0 0.0
  %1026 = vmatpush1.xpose.msra.mxu0 0.0
  %1027 = vmatprep.subr.mxu0 0.0
  %1028 = vmatpush1.xpose.msra.mxu0 0.0
  %1029 = vmatprep.subr.mxu0 0.0
  %1030 = vmatpush1.xpose.msra.mxu0 0.0
  %1031 = vmatprep.subr.mxu0 0.0
  %1032 = vmatpush1.xpose.msra.mxu0 0.0
  %1033 = vmatprep.subr.mxu0 0.0
  %1034 = vmatpush1.xpose.msra.mxu0 0.0
  %1035 = vmatprep.subr.mxu0 0.0
  %1036 = vmatpush1.xpose.msra.mxu0 0.0
  %1037 = vmatprep.subr.mxu0 0.0
  %1038 = vmatpush1.xpose.msra.mxu0 0.0
  %1039 = vmatprep.subr.mxu0 0.0
  %1040 = vmatpush1.xpose.msra.mxu0 0.0
  %1041 = vmatprep.subr.mxu0 0.0
  %1042 = vmatpush1.xpose.msra.mxu0 0.0
  %1043 = vmatprep.subr.mxu0 0.0
  %1044 = vmatpush1.xpose.msra.mxu0 0.0
  %1045 = vmatprep.subr.mxu0 0.0
  %1046 = vmatpush1.xpose.msra.mxu0 0.0
  %1047 = vmatprep.subr.mxu0 0.0
  %1048 = vmatpush1.xpose.msra.mxu0 0.0
  %1049 = vmatprep.subr.mxu0 0.0
  %1050 = vmatpush1.xpose.msra.mxu0 0.0
  %1051 = vmatprep.subr.mxu0 0.0
  %1052 = vmatpush1.xpose.msra.mxu0 0.0
  %1053 = vmatprep.subr.mxu0 0.0
  %1054 = vmatpush1.xpose.msra.mxu0 0.0
  %1055 = vmatprep.subr.mxu0 0.0
  %1056 = vmatpush1.xpose.msra.mxu0 0.0
  %1057 = vmatprep.subr.mxu0 0.0
  %1058 = vmatpush1.xpose.msra.mxu0 0.0
  %1059 = vmatprep.subr.mxu0 0.0
  %1060 = vmatpush1.xpose.msra.mxu0 0.0
  %1061 = vmatprep.subr.mxu0 0.0
  %1062 = vmatpush1.xpose.msra.mxu0 0.0
  %1063 = vmatprep.subr.mxu0 0.0
  %1064 = vmatpush1.xpose.msra.mxu0 0.0
  %1065 = vmatprep.subr.mxu0 0.0
  %1066 = vmatpush1.xpose.msra.mxu0 0.0
  %1067 = vmatprep.subr.mxu0 0.0
  %1068 = vmatpush1.xpose.msra.mxu0 0.0
  %1069 = vmatprep.subr.mxu0 0.0
  %1070 = vmatpush1.xpose.msra.mxu0 0.0
  %1071 = vmatprep.subr.mxu0 0.0
  %1072 = vmatpush1.xpose.msra.mxu0 0.0
  %1073 = vmatprep.subr.mxu0 0.0
  %1074 = vmatpush1.xpose.msra.mxu0 0.0
  %1075 = vmatprep.subr.mxu0 0.0
  %1076 = vmatpush1.xpose.msra.mxu0 0.0
  %1077 = vmatprep.subr.mxu0 0.0
  %1078 = vmatpush1.xpose.msra.mxu0 0.0
  %1079 = vmatprep.mubr.f32.mxu0 0.0
  %1080 = vmatmul.mubr.f32.gmra.mrb[0].mxu0 %v992
  %v1081 = vpop.f32.mrb[0].mxu0
  %v1082 = vadd.f32 %v987, %v1081
  %v1083 = vpop.f32.mrb[0].mxu0
  %1084 = vmatprep.mubr.f32.mxu0 0.0
  %1085 = vmatmul.mubr.f32.gmra.mrb[0].mxu0 %v995
  %v1086 = vpop.f32.mrb[0].mxu0
  %v1087 = vadd.f32 %v988, %v1086
  %v1088 = vpop.f32.mrb[0].mxu0
  %1089 = vmatprep.mubr.f32.mxu0 0.0
  %1090 = vmatmul.mubr.f32.gmra.mrb[0].mxu0 %v998
  %v1091 = vpop.f32.mrb[0].mxu0
  %v1092 = vadd.f32 %v989, %v1091
  %v1093 = vpop.f32.mrb[0].mxu0
  %1094 = vmatprep.mubr.f32.mxu0 0.0
  %1095 = vmatmul.mubr.f32.gmra.mrb[0].mxu0 %v1001
  %v1096 = vpop.f32.mrb[0].mxu0
  %v1097 = vadd.f32 %v990, %v1096
  %v1098 = vpop.f32.mrb[0].mxu0
  %1099 = vdwg.mxu0
  %v1100 = vsel %vm551, %v1082, -inf
  %1101 = vmax.xlane.f32.xlu0 %v1100
  %v1102 = vpop.xlane.xlu0 %1101
  %v1103 = vsel %vm551, %v1087, -inf
  %1104 = vmax.xlane.f32.xlu0 %v1103
  %v1105 = vpop.xlane.xlu0 %1104
  %v1106 = vsel %vm551, %v1092, -inf
  %1107 = vmax.xlane.f32.xlu0 %v1106
  %v1108 = vpop.xlane.xlu0 %1107
  %v1109 = vsel %vm551, %v1097, -inf
  %1110 = vmax.xlane.f32.xlu0 %v1109
  %v1111 = vpop.xlane.xlu0 %1110
  %v1112 = vsub.f32 %v1082, %v1102
  %v1113 = vsub.f32 %v1087, %v1105
  %v1114 = vsub.f32 %v1092, %v1108
  %v1115 = vsub.f32 %v1097, %v1111
  %v1116 = vmul.f32 %v1112, 1.442695
  %v1117 = vpow.pop %v1116
  %v1118 = vmul.f32 %v1113, 1.442695
  %v1119 = vpow.pop %v1118
  %v1120 = vmul.f32 %v1114, 1.442695
  %v1121 = vpow.pop %v1120
  %v1122 = vmul.f32 %v1115, 1.442695
  %v1123 = vpow.pop %v1122
  %v1124 = vsel %vm551, %v1117, 0.0
  %1125 = vadd.xlane.f32.xlu0 %v1124
  %v1126 = vpop.xlane.xlu0 %1125
  %v1127 = vsel %vm551, %v1119, 0.0
  %1128 = vadd.xlane.f32.xlu0 %v1127
  %v1129 = vpop.xlane.xlu0 %1128
  %v1130 = vsel %vm551, %v1121, 0.0
  %1131 = vadd.xlane.f32.xlu0 %v1130
  %v1132 = vpop.xlane.xlu0 %1131
  %v1133 = vsel %vm551, %v1123, 0.0
  %1134 = vadd.xlane.f32.xlu0 %v1133
  %v1135 = vpop.xlane.xlu0 %1134
  %v1136 = vrcp.pop %v1126
  %v1137 = vrcp.pop %v1129
  %v1138 = vrcp.pop %v1132
  %v1139 = vrcp.pop %v1135
  %v1140 = vmul.f32 %v1117, %v1136
  %v1141 = vmul.f32 %v1119, %v1137
  %v1142 = vmul.f32 %v1121, %v1138
  %v1143 = vmul.f32 %v1123, %v1139
  %v1145 = vsel %vm551, %v1140, 0
  %v1148 = vsel %vm551, %v1141, 0
  %v1151 = vsel %vm551, %v1142, 0
  %v1154 = vsel %vm551, %v1143, 0
  %1156 = vmatprep.subr.mxu0 0.0
  %1157 = vmatpush1.msra.mxu0 %v968
  %1158 = vmatprep.subr.mxu0 0.0
  %1159 = vmatpush1.msra.mxu0 %v973
  %1160 = vmatprep.subr.mxu0 0.0
  %1161 = vmatpush1.msra.mxu0 %v978
  %1162 = vmatprep.subr.mxu0 0.0
  %1163 = vmatpush1.msra.mxu0 %v983
  %1164 = vmatprep.subr.mxu0 0.0
  %1165 = vmatpush1.msra.mxu0 0.0
  %1166 = vmatprep.subr.mxu0 0.0
  %1167 = vmatpush1.msra.mxu0 0.0
  %1168 = vmatprep.subr.mxu0 0.0
  %1169 = vmatpush1.msra.mxu0 0.0
  %1170 = vmatprep.subr.mxu0 0.0
  %1171 = vmatpush1.msra.mxu0 0.0
  %1172 = vmatprep.subr.mxu0 0.0
  %1173 = vmatpush1.msra.mxu0 0.0
  %1174 = vmatprep.subr.mxu0 0.0
  %1175 = vmatpush1.msra.mxu0 0.0
  %1176 = vmatprep.subr.mxu0 0.0
  %1177 = vmatpush1.msra.mxu0 0.0
  %1178 = vmatprep.subr.mxu0 0.0
  %1179 = vmatpush1.msra.mxu0 0.0
  %1180 = vmatprep.subr.mxu0 0.0
  %1181 = vmatpush1.msra.mxu0 0.0
  %1182 = vmatprep.subr.mxu0 0.0
  %1183 = vmatpush1.msra.mxu0 0.0
  %1184 = vmatprep.subr.mxu0 0.0
  %1185 = vmatpush1.msra.mxu0 0.0
  %1186 = vmatprep.subr.mxu0 0.0
  %1187 = vmatpush1.msra.mxu0 0.0
  %1188 = vmatprep.subr.mxu0 0.0
  %1189 = vmatpush1.msra.mxu0 0.0
  %1190 = vmatprep.subr.mxu0 0.0
  %1191 = vmatpush1.msra.mxu0 0.0
  %1192 = vmatprep.subr.mxu0 0.0
  %1193 = vmatpush1.msra.mxu0 0.0
  %1194 = vmatprep.subr.mxu0 0.0
  %1195 = vmatpush1.msra.mxu0 0.0
  %1196 = vmatprep.subr.mxu0 0.0
  %1197 = vmatpush1.msra.mxu0 0.0
  %1198 = vmatprep.subr.mxu0 0.0
  %1199 = vmatpush1.msra.mxu0 0.0
  %1200 = vmatprep.subr.mxu0 0.0
  %1201 = vmatpush1.msra.mxu0 0.0
  %1202 = vmatprep.subr.mxu0 0.0
  %1203 = vmatpush1.msra.mxu0 0.0
  %1204 = vmatprep.subr.mxu0 0.0
  %1205 = vmatpush1.msra.mxu0 0.0
  %1206 = vmatprep.subr.mxu0 0.0
  %1207 = vmatpush1.msra.mxu0 0.0
  %1208 = vmatprep.subr.mxu0 0.0
  %1209 = vmatpush1.msra.mxu0 0.0
  %1210 = vmatprep.subr.mxu0 0.0
  %1211 = vmatpush1.msra.mxu0 0.0
  %1212 = vmatprep.subr.mxu0 0.0
  %1213 = vmatpush1.msra.mxu0 0.0
  %1214 = vmatprep.subr.mxu0 0.0
  %1215 = vmatpush1.msra.mxu0 0.0
  %1216 = vmatprep.subr.mxu0 0.0
  %1217 = vmatpush1.msra.mxu0 0.0
  %1218 = vmatprep.subr.mxu0 0.0
  %1219 = vmatpush1.msra.mxu0 0.0
  %1220 = vmatprep.mubr.f32.mxu0 0.0
  %1221 = vmatmul.mubr.f32.gmra.mrb[0].mxu0 %v1145
  %v1222 = vpop.f32.mrb[0].mxu0
  %v1223 = vadd.f32 0.0, %v1222
  %v1224 = vpop.f32.mrb[0].mxu0
  %1225 = vmatprep.mubr.f32.mxu0 0.0
  %1226 = vmatmul.mubr.f32.gmra.mrb[0].mxu0 %v1148
  %v1227 = vpop.f32.mrb[0].mxu0
  %v1228 = vadd.f32 0.0, %v1227
  %v1229 = vpop.f32.mrb[0].mxu0
  %1230 = vmatprep.mubr.f32.mxu0 0.0
  %1231 = vmatmul.mubr.f32.gmra.mrb[0].mxu0 %v1151
  %v1232 = vpop.f32.mrb[0].mxu0
  %v1233 = vadd.f32 0.0, %v1232
  %v1234 = vpop.f32.mrb[0].mxu0
  %1235 = vmatprep.mubr.f32.mxu0 0.0
  %1236 = vmatmul.mubr.f32.gmra.mrb[0].mxu0 %v1154
  %v1237 = vpop.f32.mrb[0].mxu0
  %v1238 = vadd.f32 0.0, %v1237
  %v1239 = vpop.f32.mrb[0].mxu0
  %1240 = vdwg.mxu0
  %s1241 = scalar_lea.vmem %s10, 8
  %v1242 = vld [vmem:[%s1241] sm:$0xff]
  %v1244 = vsel %vm441, %v1223, 0
  %v1247 = vsel %vm441, %v1228, 0
  %v1250 = vsel %vm441, %v1233, 0
  %v1253 = vsel %vm441, %v1238, 0
  %1255 = vmatprep.subr.mxu0 0.0
  %1256 = vmatpush1.msra.mxu0 %v1242
  %1257 = vmatprep.subr.mxu0 0.0
  %1258 = vmatpush1.msra.mxu0 0.0
  %1259 = vmatprep.subr.mxu0 0.0
  %1260 = vmatpush1.msra.mxu0 0.0
  %1261 = vmatprep.subr.mxu0 0.0
  %1262 = vmatpush1.msra.mxu0 0.0
  %1263 = vmatprep.subr.mxu0 0.0
  %1264 = vmatpush1.msra.mxu0 0.0
  %1265 = vmatprep.subr.mxu0 0.0
  %1266 = vmatpush1.msra.mxu0 0.0
  %1267 = vmatprep.subr.mxu0 0.0
  %1268 = vmatpush1.msra.mxu0 0.0
  %1269 = vmatprep.subr.mxu0 0.0
  %1270 = vmatpush1.msra.mxu0 0.0
  %1271 = vmatprep.subr.mxu0 0.0
  %1272 = vmatpush1.msra.mxu0 0.0
  %1273 = vmatprep.subr.mxu0 0.0
  %1274 = vmatpush1.msra.mxu0 0.0
  %1275 = vmatprep.subr.mxu0 0.0
  %1276 = vmatpush1.msra.mxu0 0.0
  %1277 = vmatprep.subr.mxu0 0.0
  %1278 = vmatpush1.msra.mxu0 0.0
  %1279 = vmatprep.subr.mxu0 0.0
  %1280 = vmatpush1.msra.mxu0 0.0
  %1281 = vmatprep.subr.mxu0 0.0
  %1282 = vmatpush1.msra.mxu0 0.0
  %1283 = vmatprep.subr.mxu0 0.0
  %1284 = vmatpush1.msra.mxu0 0.0
  %1285 = vmatprep.subr.mxu0 0.0
  %1286 = vmatpush1.msra.mxu0 0.0
  %1287 = vmatprep.subr.mxu0 0.0
  %1288 = vmatpush1.msra.mxu0 0.0
  %1289 = vmatprep.subr.mxu0 0.0
  %1290 = vmatpush1.msra.mxu0 0.0
  %1291 = vmatprep.subr.mxu0 0.0
  %1292 = vmatpush1.msra.mxu0 0.0
  %1293 = vmatprep.subr.mxu0 0.0
  %1294 = vmatpush1.msra.mxu0 0.0
  %1295 = vmatprep.subr.mxu0 0.0
  %1296 = vmatpush1.msra.mxu0 0.0
  %1297 = vmatprep.subr.mxu0 0.0
  %1298 = vmatpush1.msra.mxu0 0.0
  %1299 = vmatprep.subr.mxu0 0.0
  %1300 = vmatpush1.msra.mxu0 0.0
  %1301 = vmatprep.subr.mxu0 0.0
  %1302 = vmatpush1.msra.mxu0 0.0
  %1303 = vmatprep.subr.mxu0 0.0
  %1304 = vmatpush1.msra.mxu0 0.0
  %1305 = vmatprep.subr.mxu0 0.0
  %1306 = vmatpush1.msra.mxu0 0.0
  %1307 = vmatprep.subr.mxu0 0.0
  %1308 = vmatpush1.msra.mxu0 0.0
  %1309 = vmatprep.subr.mxu0 0.0
  %1310 = vmatpush1.msra.mxu0 0.0
  %1311 = vmatprep.subr.mxu0 0.0
  %1312 = vmatpush1.msra.mxu0 0.0
  %1313 = vmatprep.subr.mxu0 0.0
  %1314 = vmatpush1.msra.mxu0 0.0
  %1315 = vmatprep.subr.mxu0 0.0
  %1316 = vmatpush1.msra.mxu0 0.0
  %1317 = vmatprep.subr.mxu0 0.0
  %1318 = vmatpush1.msra.mxu0 0.0
  %1319 = vmatprep.mubr.f32.mxu0 0.0
  %1320 = vmatmul.mubr.f32.gmra.mrb[0].mxu0 %v1244
  %v1321 = vpop.f32.mrb[0].mxu0
  %v1322 = vadd.f32 0.0, %v1321
  %v1323 = vpop.f32.mrb[0].mxu0
  %1324 = vmatprep.mubr.f32.mxu0 0.0
  %1325 = vmatmul.mubr.f32.gmra.mrb[0].mxu0 %v1247
  %v1326 = vpop.f32.mrb[0].mxu0
  %v1327 = vadd.f32 0.0, %v1326
  %v1328 = vpop.f32.mrb[0].mxu0
  %1329 = vmatprep.mubr.f32.mxu0 0.0
  %1330 = vmatmul.mubr.f32.gmra.mrb[0].mxu0 %v1250
  %v1331 = vpop.f32.mrb[0].mxu0
  %v1332 = vadd.f32 0.0, %v1331
  %v1333 = vpop.f32.mrb[0].mxu0
  %1334 = vmatprep.mubr.f32.mxu0 0.0
  %1335 = vmatmul.mubr.f32.gmra.mrb[0].mxu0 %v1253
  %v1336 = vpop.f32.mrb[0].mxu0
  %v1337 = vadd.f32 0.0, %v1336
  %v1338 = vpop.f32.mrb[0].mxu0
  %1339 = vdwg.mxu0
  %v1341 = vsel %vm441, %v675, 0
  %v1344 = vsel %vm441, %v680, 0
  %v1347 = vsel %vm441, %v685, 0
  %v1350 = vsel %vm441, %v690, 0
  %1352 = vmatprep.subr.mxu0 0.0
  %1353 = vmatpush1.msra.mxu0 %v693
  %1354 = vmatprep.subr.mxu0 0.0
  %1355 = vmatpush1.msra.mxu0 0.0
  %1356 = vmatprep.subr.mxu0 0.0
  %1357 = vmatpush1.msra.mxu0 0.0
  %1358 = vmatprep.subr.mxu0 0.0
  %1359 = vmatpush1.msra.mxu0 0.0
  %1360 = vmatprep.subr.mxu0 0.0
  %1361 = vmatpush1.msra.mxu0 0.0
  %1362 = vmatprep.subr.mxu0 0.0
  %1363 = vmatpush1.msra.mxu0 0.0
  %1364 = vmatprep.subr.mxu0 0.0
  %1365 = vmatpush1.msra.mxu0 0.0
  %1366 = vmatprep.subr.mxu0 0.0
  %1367 = vmatpush1.msra.mxu0 0.0
  %1368 = vmatprep.subr.mxu0 0.0
  %1369 = vmatpush1.msra.mxu0 0.0
  %1370 = vmatprep.subr.mxu0 0.0
  %1371 = vmatpush1.msra.mxu0 0.0
  %1372 = vmatprep.subr.mxu0 0.0
  %1373 = vmatpush1.msra.mxu0 0.0
  %1374 = vmatprep.subr.mxu0 0.0
  %1375 = vmatpush1.msra.mxu0 0.0
  %1376 = vmatprep.subr.mxu0 0.0
  %1377 = vmatpush1.msra.mxu0 0.0
  %1378 = vmatprep.subr.mxu0 0.0
  %1379 = vmatpush1.msra.mxu0 0.0
  %1380 = vmatprep.subr.mxu0 0.0
  %1381 = vmatpush1.msra.mxu0 0.0
  %1382 = vmatprep.subr.mxu0 0.0
  %1383 = vmatpush1.msra.mxu0 0.0
  %1384 = vmatprep.subr.mxu0 0.0
  %1385 = vmatpush1.msra.mxu0 0.0
  %1386 = vmatprep.subr.mxu0 0.0
  %1387 = vmatpush1.msra.mxu0 0.0
  %1388 = vmatprep.subr.mxu0 0.0
  %1389 = vmatpush1.msra.mxu0 0.0
  %1390 = vmatprep.subr.mxu0 0.0
  %1391 = vmatpush1.msra.mxu0 0.0
  %1392 = vmatprep.subr.mxu0 0.0
  %1393 = vmatpush1.msra.mxu0 0.0
  %1394 = vmatprep.subr.mxu0 0.0
  %1395 = vmatpush1.msra.mxu0 0.0
  %1396 = vmatprep.subr.mxu0 0.0
  %1397 = vmatpush1.msra.mxu0 0.0
  %1398 = vmatprep.subr.mxu0 0.0
  %1399 = vmatpush1.msra.mxu0 0.0
  %1400 = vmatprep.subr.mxu0 0.0
  %1401 = vmatpush1.msra.mxu0 0.0
  %1402 = vmatprep.subr.mxu0 0.0
  %1403 = vmatpush1.msra.mxu0 0.0
  %1404 = vmatprep.subr.mxu0 0.0
  %1405 = vmatpush1.msra.mxu0 0.0
  %1406 = vmatprep.subr.mxu0 0.0
  %1407 = vmatpush1.msra.mxu0 0.0
  %1408 = vmatprep.subr.mxu0 0.0
  %1409 = vmatpush1.msra.mxu0 0.0
  %1410 = vmatprep.subr.mxu0 0.0
  %1411 = vmatpush1.msra.mxu0 0.0
  %1412 = vmatprep.subr.mxu0 0.0
  %1413 = vmatpush1.msra.mxu0 0.0
  %1414 = vmatprep.subr.mxu0 0.0
  %1415 = vmatpush1.msra.mxu0 0.0
  %1416 = vmatprep.mubr.f32.mxu0 0.0
  %1417 = vmatmul.mubr.f32.gmra.mrb[0].mxu0 %v1341
  %v1418 = vpop.f32.mrb[0].mxu0
  %v1419 = vadd.f32 %v1322, %v1418
  %v1420 = vpop.f32.mrb[0].mxu0
  %1421 = vmatprep.mubr.f32.mxu0 0.0
  %1422 = vmatmul.mubr.f32.gmra.mrb[0].mxu0 %v1344
  %v1423 = vpop.f32.mrb[0].mxu0
  %v1424 = vadd.f32 %v1327, %v1423
  %v1425 = vpop.f32.mrb[0].mxu0
  %1426 = vmatprep.mubr.f32.mxu0 0.0
  %1427 = vmatmul.mubr.f32.gmra.mrb[0].mxu0 %v1347
  %v1428 = vpop.f32.mrb[0].mxu0
  %v1429 = vadd.f32 %v1332, %v1428
  %v1430 = vpop.f32.mrb[0].mxu0
  %1431 = vmatprep.mubr.f32.mxu0 0.0
  %1432 = vmatmul.mubr.f32.gmra.mrb[0].mxu0 %v1350
  %v1433 = vpop.f32.mrb[0].mxu0
  %v1434 = vadd.f32 %v1337, %v1433
  %v1435 = vpop.f32.mrb[0].mxu0
  %1436 = vdwg.mxu0
  %v1437 = vadd.f32 %v135, %v1419
  %v1438 = vadd.f32 %v136, %v1424
  %v1439 = vadd.f32 %v137, %v1429
  %v1440 = vadd.f32 %v138, %v1434
  %v1441 = vld [vmem:[%s11] sm:$0x1]
  %v1443 = vlaneseq
  %v1444 = vshrl.u32 %v1443, 7
  %v1445 = vsub.s32 0, %v1444
  %v1446 = vrot.slane %v1441, %v1445
  %v1448 = vadd.f32 %v1437, %v1446
  %v1449 = vadd.f32 %v1438, %v1446
  %v1450 = vadd.f32 %v1439, %v1446
  %v1451 = vadd.f32 %v1440, %v1446
  %v1452 = vld [vmem:[%s12] sm:$0x1]
  %v1453 = vld [vmem:[%s13] sm:$0x1]
  %v1454 = vsel %vm65, %v1448, 0.0
  %1455 = vadd.xlane.f32.xlu0 %v1454
  %v1456 = vpop.xlane.xlu0 %1455
  %v1457 = vsel %vm65, %v1449, 0.0
  %1458 = vadd.xlane.f32.xlu0 %v1457
  %v1459 = vpop.xlane.xlu0 %1458
  %v1460 = vsel %vm65, %v1450, 0.0
  %1461 = vadd.xlane.f32.xlu0 %v1460
  %v1462 = vpop.xlane.xlu0 %1461
  %v1463 = vsel %vm65, %v1451, 0.0
  %1464 = vadd.xlane.f32.xlu0 %v1463
  %v1465 = vpop.xlane.xlu0 %1464
  %v1466 = vmul.f32 %v1456, %v78
  %v1467 = vmul.f32 %v1459, %v78
  %v1468 = vmul.f32 %v1462, %v78
  %v1469 = vmul.f32 %v1465, %v78
  %v1470 = vsub.f32 %v1448, %v1466
  %v1471 = vsub.f32 %v1449, %v1467
  %v1472 = vsub.f32 %v1450, %v1468
  %v1473 = vsub.f32 %v1451, %v1469
  %v1474 = vmul.f32 %v1470, %v1470
  %v1475 = vmul.f32 %v1471, %v1471
  %v1476 = vmul.f32 %v1472, %v1472
  %v1477 = vmul.f32 %v1473, %v1473
  %v1478 = vsel %vm65, %v1474, 0.0
  %1479 = vadd.xlane.f32.xlu0 %v1478
  %v1480 = vpop.xlane.xlu0 %1479
  %v1481 = vsel %vm65, %v1475, 0.0
  %1482 = vadd.xlane.f32.xlu0 %v1481
  %v1483 = vpop.xlane.xlu0 %1482
  %v1484 = vsel %vm65, %v1476, 0.0
  %1485 = vadd.xlane.f32.xlu0 %v1484
  %v1486 = vpop.xlane.xlu0 %1485
  %v1487 = vsel %vm65, %v1477, 0.0
  %1488 = vadd.xlane.f32.xlu0 %v1487
  %v1489 = vpop.xlane.xlu0 %1488
  %v1490 = vmul.f32 %v1480, %v78
  %v1491 = vmul.f32 %v1483, %v78
  %v1492 = vmul.f32 %v1486, %v78
  %v1493 = vmul.f32 %v1489, %v78
  %v1494 = vadd.f32 %v1490, 1e-05
  %v1495 = vadd.f32 %v1491, 1e-05
  %v1496 = vadd.f32 %v1492, 1e-05
  %v1497 = vadd.f32 %v1493, 1e-05
  %v1498 = vrsqrt.pop %v1494
  %v1499 = vrsqrt.pop %v1495
  %v1500 = vrsqrt.pop %v1496
  %v1501 = vrsqrt.pop %v1497
  %v1502 = vmul.f32 %v1470, %v1498
  %v1503 = vmul.f32 %v1471, %v1499
  %v1504 = vmul.f32 %v1472, %v1500
  %v1505 = vmul.f32 %v1473, %v1501
  %v1507 = vlaneseq
  %v1508 = vshrl.u32 %v1507, 7
  %v1509 = vsub.s32 0, %v1508
  %v1510 = vrot.slane %v1452, %v1509
  %v1512 = vmul.f32 %v1502, %v1510
  %v1513 = vmul.f32 %v1503, %v1510
  %v1514 = vmul.f32 %v1504, %v1510
  %v1515 = vmul.f32 %v1505, %v1510
  %v1517 = vlaneseq
  %v1518 = vshrl.u32 %v1517, 7
  %v1519 = vsub.s32 0, %v1518
  %v1520 = vrot.slane %v1453, %v1519
  %v1522 = vadd.f32 %v1512, %v1520
  %v1523 = vadd.f32 %v1513, %v1520
  %v1524 = vadd.f32 %v1514, %v1520
  %v1525 = vadd.f32 %v1515, %v1520
  %v1526 = vld [vmem:[%s14] sm:$0xff]
  %v1527 = vld [vmem:[%s14 + $0x8] sm:$0xff]
  %v1528 = vld [vmem:[%s15] sm:$0x1]
  %v1530 = vlaneseq
  %v1531 = vshrl.u32 %v1530, 7
  %v1532 = vsub.s32 0, %v1531
  %v1533 = vrot.slane %v1528, %v1532
  %v1536 = vsel %vm65, %v1522, 0
  %v1539 = vsel %vm65, %v1523, 0
  %v1542 = vsel %vm65, %v1524, 0
  %v1545 = vsel %vm65, %v1525, 0
  %1547 = vmatprep.subr.mxu0 0.0
  %1548 = vmatpush1.msra.mxu0 %v1526
  %1549 = vmatprep.subr.mxu0 0.0
  %1550 = vmatpush1.msra.mxu0 %v1527
  %1551 = vmatprep.subr.mxu0 0.0
  %1552 = vmatpush1.msra.mxu0 0.0
  %1553 = vmatprep.subr.mxu0 0.0
  %1554 = vmatpush1.msra.mxu0 0.0
  %1555 = vmatprep.subr.mxu0 0.0
  %1556 = vmatpush1.msra.mxu0 0.0
  %1557 = vmatprep.subr.mxu0 0.0
  %1558 = vmatpush1.msra.mxu0 0.0
  %1559 = vmatprep.subr.mxu0 0.0
  %1560 = vmatpush1.msra.mxu0 0.0
  %1561 = vmatprep.subr.mxu0 0.0
  %1562 = vmatpush1.msra.mxu0 0.0
  %1563 = vmatprep.subr.mxu0 0.0
  %1564 = vmatpush1.msra.mxu0 0.0
  %1565 = vmatprep.subr.mxu0 0.0
  %1566 = vmatpush1.msra.mxu0 0.0
  %1567 = vmatprep.subr.mxu0 0.0
  %1568 = vmatpush1.msra.mxu0 0.0
  %1569 = vmatprep.subr.mxu0 0.0
  %1570 = vmatpush1.msra.mxu0 0.0
  %1571 = vmatprep.subr.mxu0 0.0
  %1572 = vmatpush1.msra.mxu0 0.0
  %1573 = vmatprep.subr.mxu0 0.0
  %1574 = vmatpush1.msra.mxu0 0.0
  %1575 = vmatprep.subr.mxu0 0.0
  %1576 = vmatpush1.msra.mxu0 0.0
  %1577 = vmatprep.subr.mxu0 0.0
  %1578 = vmatpush1.msra.mxu0 0.0
  %1579 = vmatprep.subr.mxu0 0.0
  %1580 = vmatpush1.msra.mxu0 0.0
  %1581 = vmatprep.subr.mxu0 0.0
  %1582 = vmatpush1.msra.mxu0 0.0
  %1583 = vmatprep.subr.mxu0 0.0
  %1584 = vmatpush1.msra.mxu0 0.0
  %1585 = vmatprep.subr.mxu0 0.0
  %1586 = vmatpush1.msra.mxu0 0.0
  %1587 = vmatprep.subr.mxu0 0.0
  %1588 = vmatpush1.msra.mxu0 0.0
  %1589 = vmatprep.subr.mxu0 0.0
  %1590 = vmatpush1.msra.mxu0 0.0
  %1591 = vmatprep.subr.mxu0 0.0
  %1592 = vmatpush1.msra.mxu0 0.0
  %1593 = vmatprep.subr.mxu0 0.0
  %1594 = vmatpush1.msra.mxu0 0.0
  %1595 = vmatprep.subr.mxu0 0.0
  %1596 = vmatpush1.msra.mxu0 0.0
  %1597 = vmatprep.subr.mxu0 0.0
  %1598 = vmatpush1.msra.mxu0 0.0
  %1599 = vmatprep.subr.mxu0 0.0
  %1600 = vmatpush1.msra.mxu0 0.0
  %1601 = vmatprep.subr.mxu0 0.0
  %1602 = vmatpush1.msra.mxu0 0.0
  %1603 = vmatprep.subr.mxu0 0.0
  %1604 = vmatpush1.msra.mxu0 0.0
  %1605 = vmatprep.subr.mxu0 0.0
  %1606 = vmatpush1.msra.mxu0 0.0
  %1607 = vmatprep.subr.mxu0 0.0
  %1608 = vmatpush1.msra.mxu0 0.0
  %1609 = vmatprep.subr.mxu0 0.0
  %1610 = vmatpush1.msra.mxu0 0.0
  %1611 = vmatprep.mubr.f32.mxu0 0.0
  %1612 = vmatmul.mubr.f32.gmra.mrb[0].mxu0 %v1536
  %v1613 = vpop.f32.mrb[0].mxu0
  %v1614 = vadd.f32 %v1533, %v1613
  %v1615 = vpop.f32.mrb[0].mxu0
  %1616 = vmatprep.mubr.f32.mxu0 0.0
  %1617 = vmatmul.mubr.f32.gmra.mrb[0].mxu0 %v1539
  %v1618 = vpop.f32.mrb[0].mxu0
  %v1619 = vadd.f32 %v1533, %v1618
  %v1620 = vpop.f32.mrb[0].mxu0
  %1621 = vmatprep.mubr.f32.mxu0 0.0
  %1622 = vmatmul.mubr.f32.gmra.mrb[0].mxu0 %v1542
  %v1623 = vpop.f32.mrb[0].mxu0
  %v1624 = vadd.f32 %v1533, %v1623
  %v1625 = vpop.f32.mrb[0].mxu0
  %1626 = vmatprep.mubr.f32.mxu0 0.0
  %1627 = vmatmul.mubr.f32.gmra.mrb[0].mxu0 %v1545
  %v1628 = vpop.f32.mrb[0].mxu0
  %v1629 = vadd.f32 %v1533, %v1628
  %v1630 = vpop.f32.mrb[0].mxu0
  %1631 = vdwg.mxu0
  %v1632 = vmul.f32 %v1614, 0.5
  %v1633 = vmul.f32 %v1619, 0.5
  %v1634 = vmul.f32 %v1624, 0.5
  %v1635 = vmul.f32 %v1629, 0.5
  %v1636 = vmul.f32 %v1614, 0.044715
  %v1637 = vmul.f32 %v1619, 0.044715
  %v1638 = vmul.f32 %v1624, 0.044715
  %v1639 = vmul.f32 %v1629, 0.044715
  %v1640 = vmul.f32 %v1636, %v1614
  %v1641 = vmul.f32 %v1637, %v1619
  %v1642 = vmul.f32 %v1638, %v1624
  %v1643 = vmul.f32 %v1639, %v1629
  %v1644 = vmul.f32 %v1640, %v1614
  %v1645 = vmul.f32 %v1641, %v1619
  %v1646 = vmul.f32 %v1642, %v1624
  %v1647 = vmul.f32 %v1643, %v1629
  %v1648 = vadd.f32 %v1614, %v1644
  %v1649 = vadd.f32 %v1619, %v1645
  %v1650 = vadd.f32 %v1624, %v1646
  %v1651 = vadd.f32 %v1629, %v1647
  %v1652 = vmul.f32 %v1648, 0.7978846
  %v1653 = vmul.f32 %v1649, 0.7978846
  %v1654 = vmul.f32 %v1650, 0.7978846
  %v1655 = vmul.f32 %v1651, 0.7978846
  %v1656 = vtanh.pop %v1652
  %v1657 = vtanh.pop %v1653
  %v1658 = vtanh.pop %v1654
  %v1659 = vtanh.pop %v1655
  %v1660 = vadd.f32 %v1656, 1.0
  %v1661 = vadd.f32 %v1657, 1.0
  %v1662 = vadd.f32 %v1658, 1.0
  %v1663 = vadd.f32 %v1659, 1.0
  %v1664 = vmul.f32 %v1632, %v1660
  %v1665 = vmul.f32 %v1633, %v1661
  %v1666 = vmul.f32 %v1634, %v1662
  %v1667 = vmul.f32 %v1635, %v1663
  %v1668 = vld [vmem:[%s16] sm:$0xff]
  %v1669 = vld [vmem:[%s16 + $0x8] sm:$0xff]
  %v1670 = vld [vmem:[%s16 + $0x10] sm:$0xff]
  %v1671 = vld [vmem:[%s16 + $0x18] sm:$0xff]
  %v1672 = vld [vmem:[%s16 + $0x20] sm:$0xff]
  %v1673 = vld [vmem:[%s16 + $0x28] sm:$0xff]
  %v1674 = vld [vmem:[%s16 + $0x30] sm:$0xff]
  %v1675 = vld [vmem:[%s16 + $0x38] sm:$0xff]
  %v1676 = vld [vmem:[%s17] sm:$0x1]
  %v1678 = vlaneseq
  %v1679 = vshrl.u32 %v1678, 7
  %v1680 = vsub.s32 0, %v1679
  %v1681 = vrot.slane %v1676, %v1680
  %vm1683 = vcmask 523264
  %v1685 = vsel %vm1683, %v1664, 0
  %v1688 = vsel %vm1683, %v1665, 0
  %v1691 = vsel %vm1683, %v1666, 0
  %v1694 = vsel %vm1683, %v1667, 0
  %1696 = vmatprep.subr.mxu0 0.0
  %1697 = vmatpush1.msra.mxu0 %v1668
  %1698 = vmatprep.subr.mxu0 0.0
  %1699 = vmatpush1.msra.mxu0 %v1669
  %1700 = vmatprep.subr.mxu0 0.0
  %1701 = vmatpush1.msra.mxu0 %v1670
  %1702 = vmatprep.subr.mxu0 0.0
  %1703 = vmatpush1.msra.mxu0 %v1671
  %1704 = vmatprep.subr.mxu0 0.0
  %1705 = vmatpush1.msra.mxu0 %v1672
  %1706 = vmatprep.subr.mxu0 0.0
  %1707 = vmatpush1.msra.mxu0 %v1673
  %1708 = vmatprep.subr.mxu0 0.0
  %1709 = vmatpush1.msra.mxu0 %v1674
  %1710 = vmatprep.subr.mxu0 0.0
  %1711 = vmatpush1.msra.mxu0 %v1675
  %1712 = vmatprep.subr.mxu0 0.0
  %1713 = vmatpush1.msra.mxu0 0.0
  %1714 = vmatprep.subr.mxu0 0.0
  %1715 = vmatpush1.msra.mxu0 0.0
  %1716 = vmatprep.subr.mxu0 0.0
  %1717 = vmatpush1.msra.mxu0 0.0
  %1718 = vmatprep.subr.mxu0 0.0
  %1719 = vmatpush1.msra.mxu0 0.0
  %1720 = vmatprep.subr.mxu0 0.0
  %1721 = vmatpush1.msra.mxu0 0.0
  %1722 = vmatprep.subr.mxu0 0.0
  %1723 = vmatpush1.msra.mxu0 0.0
  %1724 = vmatprep.subr.mxu0 0.0
  %1725 = vmatpush1.msra.mxu0 0.0
  %1726 = vmatprep.subr.mxu0 0.0
  %1727 = vmatpush1.msra.mxu0 0.0
  %1728 = vmatprep.subr.mxu0 0.0
  %1729 = vmatpush1.msra.mxu0 0.0
  %1730 = vmatprep.subr.mxu0 0.0
  %1731 = vmatpush1.msra.mxu0 0.0
  %1732 = vmatprep.subr.mxu0 0.0
  %1733 = vmatpush1.msra.mxu0 0.0
  %1734 = vmatprep.subr.mxu0 0.0
  %1735 = vmatpush1.msra.mxu0 0.0
  %1736 = vmatprep.subr.mxu0 0.0
  %1737 = vmatpush1.msra.mxu0 0.0
  %1738 = vmatprep.subr.mxu0 0.0
  %1739 = vmatpush1.msra.mxu0 0.0
  %1740 = vmatprep.subr.mxu0 0.0
  %1741 = vmatpush1.msra.mxu0 0.0
  %1742 = vmatprep.subr.mxu0 0.0
  %1743 = vmatpush1.msra.mxu0 0.0
  %1744 = vmatprep.subr.mxu0 0.0
  %1745 = vmatpush1.msra.mxu0 0.0
  %1746 = vmatprep.subr.mxu0 0.0
  %1747 = vmatpush1.msra.mxu0 0.0
  %1748 = vmatprep.subr.mxu0 0.0
  %1749 = vmatpush1.msra.mxu0 0.0
  %1750 = vmatprep.subr.mxu0 0.0
  %1751 = vmatpush1.msra.mxu0 0.0
  %1752 = vmatprep.subr.mxu0 0.0
  %1753 = vmatpush1.msra.mxu0 0.0
  %1754 = vmatprep.subr.mxu0 0.0
  %1755 = vmatpush1.msra.mxu0 0.0
  %1756 = vmatprep.subr.mxu0 0.0
  %1757 = vmatpush1.msra.mxu0 0.0
  %1758 = vmatprep.subr.mxu0 0.0
  %1759 = vmatpush1.msra.mxu0 0.0
  %1760 = vmatprep.mubr.f32.mxu0 0.0
  %1761 = vmatmul.mubr.f32.gmra.mrb[0].mxu0 %v1685
  %v1762 = vpop.f32.mrb[0].mxu0
  %v1763 = vadd.f32 %v1681, %v1762
  %v1764 = vpop.f32.mrb[0].mxu0
  %1765 = vmatprep.mubr.f32.mxu0 0.0
  %1766 = vmatmul.mubr.f32.gmra.mrb[0].mxu0 %v1688
  %v1767 = vpop.f32.mrb[0].mxu0
  %v1768 = vadd.f32 %v1681, %v1767
  %v1769 = vpop.f32.mrb[0].mxu0
  %1770 = vmatprep.mubr.f32.mxu0 0.0
  %1771 = vmatmul.mubr.f32.gmra.mrb[0].mxu0 %v1691
  %v1772 = vpop.f32.mrb[0].mxu0
  %v1773 = vadd.f32 %v1681, %v1772
  %v1774 = vpop.f32.mrb[0].mxu0
  %1775 = vmatprep.mubr.f32.mxu0 0.0
  %1776 = vmatmul.mubr.f32.gmra.mrb[0].mxu0 %v1694
  %v1777 = vpop.f32.mrb[0].mxu0
  %v1778 = vadd.f32 %v1681, %v1777
  %v1779 = vpop.f32.mrb[0].mxu0
  %1780 = vdwg.mxu0
  %v1781 = vadd.f32 %v1448, %v1763
  %v1782 = vadd.f32 %v1449, %v1768
  %v1783 = vadd.f32 %v1450, %v1773
  %v1784 = vadd.f32 %v1451, %v1778
  %1785 = vst.msk [vmem:[%s18] sm:$0xff] %vm65, %v1781
  %1786 = vst.msk [vmem:[%s18 + $0x8] sm:$0xff] %vm65, %v1782
  %1787 = vst.msk [vmem:[%s18 + $0x10] sm:$0xff] %vm65, %v1783
  %1788 = vst.msk [vmem:[%s18 + $0x18] sm:$0xff] %vm65, %v1784
  // Predicated region
  $region74: #{_lambda_.8} parent=0 // pred_check
    _
  $region75: #{_lambda_.8} parent=0 // pred_check_branch
    %1790 = sbr.rel (0) target = $region77
  $region76: #{_lambda_.8} parent=0 // pred_region
    _
  $region77: #{_lambda_.8} parent=0 // pred_fallthru
    _
  // Predicated region
  $region78: #{_lambda_.8} parent=0 // pred_check
    _
  $region79: #{_lambda_.8} parent=0 // pred_check_branch
    %1792 = sbr.rel (0) target = $region81
  $region80: #{_lambda_.8} parent=0 // pred_region
    _
  $region81: #{_lambda_.8} parent=0 // pred_fallthru
    _

// kernel: _lambda_.13
$region0: #{_lambda_.13}
  #allocation0 [shape = 'u32[]', space=smem, size = 0x4, offset = 0x4, fixed_abs, tag = 'smem constant byte address 0x4 - core index']
  #allocation1 [shape = 'u32[144,128]{1,0:T(1,128)}', space=vmem, size = 0x12000, scoped, tag = 'internal scratch']
  %s0 = inlined_call_operand.vmem [shape: f32[8,32], index: 0, kind: input, shape index: {}]
  %s1 = inlined_call_operand.vmem [shape: f32[1,32], index: 1, kind: input, shape index: {}]
  %s2 = inlined_call_operand.vmem [shape: f32[1,32], index: 2, kind: input, shape index: {}]
  %s3 = inlined_call_operand.vmem [shape: f32[2,8], index: 3, kind: input, shape index: {}]
  %s4 = inlined_call_operand.vmem [shape: f32[32,10], index: 4, kind: input, shape index: {}]
  %s5 = inlined_call_operand.vmem [shape: f32[1,10], index: 5, kind: input, shape index: {}]
  %s6 = inlined_call_operand.hbm [shape: f32[2,10], index: 6, kind: output, shape index: {}]
  %s7 = sld [smem:[#allocation0]]
  $region34: #{_lambda_.13} parent=0
    _
  %s9 = ssub.s32 1, %s7
  %s10 = scalar_select 0, %s9, %s7
  $region1: #{_lambda_.13} parent=0
    #allocation2 [shape = 'u8[1024]{0}', space=vmem, size = 0x400, scoped, tag = 'output window, operand 0, single buffered']
    #allocation3 [shape = 's32[1]{0}', space=sflag, size = 0x4, scoped, tag = 'scoped memory for _lambda_.13']
    %11 = vsyncpa [#allocation3], 0
    // Predicated region
    $region2: #{_lambda_.13} parent=1 // pred_check
      _
    $region3: #{_lambda_.13} parent=1 // pred_check_branch
      %13 = sbr.rel (0) target = $region5
    $region4: #{_lambda_.13} parent=1 // pred_region
      _
    $region5: #{_lambda_.13} parent=1 // pred_fallthru
      _
    // Predicated region
    $region6: #{_lambda_.13} parent=1 // pred_check
      _
    $region7: #{_lambda_.13} parent=1 // pred_check_branch
      %15 = sbr.rel (0) target = $region9
    $region8: #{_lambda_.13} parent=1 // pred_region
      _
    $region9: #{_lambda_.13} parent=1 // pred_fallthru
      _
    // Predicated region
    $region10: #{_lambda_.13} parent=1 // pred_check
      _
    $region11: #{_lambda_.13} parent=1 // pred_check_branch
      %17 = sbr.rel (0) target = $region13
    $region12: #{_lambda_.13} parent=1 // pred_region
      _
    $region13: #{_lambda_.13} parent=1 // pred_fallthru
      _
    // Predicated region
    $region14: #{_lambda_.13} parent=1 // pred_check
      _
    $region15: #{_lambda_.13} parent=1 // pred_check_branch
      %19 = sbr.rel (0) target = $region17
    $region16: #{_lambda_.13} parent=1 // pred_region
      _
    $region17: #{_lambda_.13} parent=1 // pred_fallthru
      _
    // Predicated region
    $region18: #{_lambda_.13} parent=1 // pred_check
      _
    $region19: #{_lambda_.13} parent=1 // pred_check_branch
      %21 = sbr.rel (0) target = $region21
    $region20: #{_lambda_.13} parent=1 // pred_region
      _
    $region21: #{_lambda_.13} parent=1 // pred_fallthru
      _
    // Predicated region
    $region22: #{_lambda_.13} parent=1 // pred_check
      _
    $region23: #{_lambda_.13} parent=1 // pred_check_branch
      %23 = sbr.rel (0) target = $region25
    $region24: #{_lambda_.13} parent=1 // pred_region
      _
    $region25: #{_lambda_.13} parent=1 // pred_fallthru
      _
    %v24 = vld [vmem:[%s0] sm:$0xff]
    %v25 = vld [vmem:[%s1] sm:$0x1]
    %v26 = vld [vmem:[%s2] sm:$0x1]
    %vm27 = vcmask 261120
    %v28 = vsel %vm27, %v24, 0.0
    %29 = vadd.xlane.f32.xlu0 %v28
    %v30 = vpop.xlane.xlu0 %29
    %v31 = vrcp.pop 32.0
    %v32 = vmul.f32 %v30, %v31
    %v33 = vsub.f32 %v24, %v32
    %v34 = vmul.f32 %v33, %v33
    %v35 = vsel %vm27, %v34, 0.0
    %36 = vadd.xlane.f32.xlu0 %v35
    %v37 = vpop.xlane.xlu0 %36
    %v38 = vmul.f32 %v37, %v31
    %v39 = vadd.f32 %v38, 1e-05
    %v40 = vrsqrt.pop %v39
    %v41 = vmul.f32 %v33, %v40
    %v43 = vlaneseq
    %v44 = vshrl.u32 %v43, 7
    %v45 = vsub.s32 0, %v44
    %v46 = vrot.slane %v25, %v45
    %v48 = vmul.f32 %v41, %v46
    %v50 = vlaneseq
    %v51 = vshrl.u32 %v50, 7
    %v52 = vsub.s32 0, %v51
    %v53 = vrot.slane %v26, %v52
    %v55 = vadd.f32 %v48, %v53
    %v56 = vld [vmem:[%s3] sm:$0x3]
    %vm57 = vcmask 64512
    %v59 = vsel %vm57, %v56, 0
    %61 = vmatprep.subr.mxu0 0.0
    %62 = vmatpush1.msra.mxu0 %v55
    %63 = vmatprep.subr.mxu0 0.0
    %64 = vmatpush1.msra.mxu0 0.0
    %65 = vmatprep.subr.mxu0 0.0
    %66 = vmatpush1.msra.mxu0 0.0
    %67 = vmatprep.subr.mxu0 0.0
    %68 = vmatpush1.msra.mxu0 0.0
    %69 = vmatprep.subr.mxu0 0.0
    %70 = vmatpush1.msra.mxu0 0.0
    %71 = vmatprep.subr.mxu0 0.0
    %72 = vmatpush1.msra.mxu0 0.0
    %73 = vmatprep.subr.mxu0 0.0
    %74 = vmatpush1.msra.mxu0 0.0
    %75 = vmatprep.subr.mxu0 0.0
    %76 = vmatpush1.msra.mxu0 0.0
    %77 = vmatprep.subr.mxu0 0.0
    %78 = vmatpush1.msra.mxu0 0.0
    %79 = vmatprep.subr.mxu0 0.0
    %80 = vmatpush1.msra.mxu0 0.0
    %81 = vmatprep.subr.mxu0 0.0
    %82 = vmatpush1.msra.mxu0 0.0
    %83 = vmatprep.subr.mxu0 0.0
    %84 = vmatpush1.msra.mxu0 0.0
    %85 = vmatprep.subr.mxu0 0.0
    %86 = vmatpush1.msra.mxu0 0.0
    %87 = vmatprep.subr.mxu0 0.0
    %88 = vmatpush1.msra.mxu0 0.0
    %89 = vmatprep.subr.mxu0 0.0
    %90 = vmatpush1.msra.mxu0 0.0
    %91 = vmatprep.subr.mxu0 0.0
    %92 = vmatpush1.msra.mxu0 0.0
    %93 = vmatprep.subr.mxu0 0.0
    %94 = vmatpush1.msra.mxu0 0.0
    %95 = vmatprep.subr.mxu0 0.0
    %96 = vmatpush1.msra.mxu0 0.0
    %97 = vmatprep.subr.mxu0 0.0
    %98 = vmatpush1.msra.mxu0 0.0
    %99 = vmatprep.subr.mxu0 0.0
    %100 = vmatpush1.msra.mxu0 0.0
    %101 = vmatprep.subr.mxu0 0.0
    %102 = vmatpush1.msra.mxu0 0.0
    %103 = vmatprep.subr.mxu0 0.0
    %104 = vmatpush1.msra.mxu0 0.0
    %105 = vmatprep.subr.mxu0 0.0
    %106 = vmatpush1.msra.mxu0 0.0
    %107 = vmatprep.subr.mxu0 0.0
    %108 = vmatpush1.msra.mxu0 0.0
    %109 = vmatprep.subr.mxu0 0.0
    %110 = vmatpush1.msra.mxu0 0.0
    %111 = vmatprep.subr.mxu0 0.0
    %112 = vmatpush1.msra.mxu0 0.0
    %113 = vmatprep.subr.mxu0 0.0
    %114 = vmatpush1.msra.mxu0 0.0
    %115 = vmatprep.subr.mxu0 0.0
    %116 = vmatpush1.msra.mxu0 0.0
    %117 = vmatprep.subr.mxu0 0.0
    %118 = vmatpush1.msra.mxu0 0.0
    %119 = vmatprep.subr.mxu0 0.0
    %120 = vmatpush1.msra.mxu0 0.0
    %121 = vmatprep.subr.mxu0 0.0
    %122 = vmatpush1.msra.mxu0 0.0
    %123 = vmatprep.subr.mxu0 0.0
    %124 = vmatpush1.msra.mxu0 0.0
    %125 = vmatprep.mubr.f32.mxu0 0.0
    %126 = vmatmul.mubr.f32.gmra.mrb[0].mxu0 %v59
    %v127 = vpop.f32.mrb[0].mxu0
    %v128 = vadd.f32 0.0, %v127
    %v129 = vpop.f32.mrb[0].mxu0
    %130 = vdwg.mxu0
    %v131 = vld [vmem:[%s4] sm:$0xff]
    %v132 = vld [vmem:[%s4 + $0x8] sm:$0xff]
    %v133 = vld [vmem:[%s4 + $0x10] sm:$0xff]
    %v134 = vld [vmem:[%s4 + $0x18] sm:$0xff]
    %v135 = vld [vmem:[%s5] sm:$0x1]
    %v137 = vlaneseq
    %v138 = vshrl.u32 %v137, 7
    %v139 = vsub.s32 0, %v138
    %v140 = vrot.slane %v135, %v139
    %v143 = vsel %vm27, %v128, 0
    %145 = vmatprep.subr.mxu0 0.0
    %146 = vmatpush1.msra.mxu0 %v131
    %147 = vmatprep.subr.mxu0 0.0
    %148 = vmatpush1.msra.mxu0 %v132
    %149 = vmatprep.subr.mxu0 0.0
    %150 = vmatpush1.msra.mxu0 %v133
    %151 = vmatprep.subr.mxu0 0.0
    %152 = vmatpush1.msra.mxu0 %v134
    %153 = vmatprep.subr.mxu0 0.0
    %154 = vmatpush1.msra.mxu0 0.0
    %155 = vmatprep.subr.mxu0 0.0
    %156 = vmatpush1.msra.mxu0 0.0
    %157 = vmatprep.subr.mxu0 0.0
    %158 = vmatpush1.msra.mxu0 0.0
    %159 = vmatprep.subr.mxu0 0.0
    %160 = vmatpush1.msra.mxu0 0.0
    %161 = vmatprep.subr.mxu0 0.0
    %162 = vmatpush1.msra.mxu0 0.0
    %163 = vmatprep.subr.mxu0 0.0
    %164 = vmatpush1.msra.mxu0 0.0
    %165 = vmatprep.subr.mxu0 0.0
    %166 = vmatpush1.msra.mxu0 0.0
    %167 = vmatprep.subr.mxu0 0.0
    %168 = vmatpush1.msra.mxu0 0.0
    %169 = vmatprep.subr.mxu0 0.0
    %170 = vmatpush1.msra.mxu0 0.0
    %171 = vmatprep.subr.mxu0 0.0
    %172 = vmatpush1.msra.mxu0 0.0
    %173 = vmatprep.subr.mxu0 0.0
    %174 = vmatpush1.msra.mxu0 0.0
    %175 = vmatprep.subr.mxu0 0.0
    %176 = vmatpush1.msra.mxu0 0.0
    %177 = vmatprep.subr.mxu0 0.0
    %178 = vmatpush1.msra.mxu0 0.0
    %179 = vmatprep.subr.mxu0 0.0
    %180 = vmatpush1.msra.mxu0 0.0
    %181 = vmatprep.subr.mxu0 0.0
    %182 = vmatpush1.msra.mxu0 0.0
    %183 = vmatprep.subr.mxu0 0.0
    %184 = vmatpush1.msra.mxu0 0.0
    %185 = vmatprep.subr.mxu0 0.0
    %186 = vmatpush1.msra.mxu0 0.0
    %187 = vmatprep.subr.mxu0 0.0
    %188 = vmatpush1.msra.mxu0 0.0
    %189 = vmatprep.subr.mxu0 0.0
    %190 = vmatpush1.msra.mxu0 0.0
    %191 = vmatprep.subr.mxu0 0.0
    %192 = vmatpush1.msra.mxu0 0.0
    %193 = vmatprep.subr.mxu0 0.0
    %194 = vmatpush1.msra.mxu0 0.0
    %195 = vmatprep.subr.mxu0 0.0
    %196 = vmatpush1.msra.mxu0 0.0
    %197 = vmatprep.subr.mxu0 0.0
    %198 = vmatpush1.msra.mxu0 0.0
    %199 = vmatprep.subr.mxu0 0.0
    %200 = vmatpush1.msra.mxu0 0.0
    %201 = vmatprep.subr.mxu0 0.0
    %202 = vmatpush1.msra.mxu0 0.0
    %203 = vmatprep.subr.mxu0 0.0
    %204 = vmatpush1.msra.mxu0 0.0
    %205 = vmatprep.subr.mxu0 0.0
    %206 = vmatpush1.msra.mxu0 0.0
    %207 = vmatprep.subr.mxu0 0.0
    %208 = vmatpush1.msra.mxu0 0.0
    %209 = vmatprep.mubr.f32.mxu0 0.0
    %210 = vmatmul.mubr.f32.gmra.mrb[0].mxu0 %v143
    %v211 = vpop.f32.mrb[0].mxu0
    %v212 = vadd.f32 %v140, %v211
    %v213 = vpop.f32.mrb[0].mxu0
    %214 = vdwg.mxu0
    %vm215 = vcmask 74752
    %216 = vst.msk [vmem:[#allocation2] sm:$0x3] %vm215, %v212
    // Predicated region
    $region26: #{_lambda_.13} parent=1 // pred_check
      _
    $region27: #{_lambda_.13} parent=1 // pred_check_branch
      %218 = sbr.rel (0) target = $region29
    $region28: #{_lambda_.13} parent=1 // pred_region
      %s220 = ssub.s32 32, 32
      %221 = vsyncadd [#allocation3], %s220
      %s223 = sshll.u32 [#allocation2], 4
      %s224 = int_to_ptr.vmem [resolvable:$true] %s223
      %226 = dma.vmem_to_hbm [thread:$0]  %s224, 32, %s6, [#allocation3]
    $region29: #{_lambda_.13} parent=1 // pred_fallthru
      _
    // Predicated region
    $region30: #{_lambda_.13} parent=1 // pred_check
      _
    $region31: #{_lambda_.13} parent=1 // pred_check_branch
      %228 = sbr.rel (0) target = $region33
    $region32: #{_lambda_.13} parent=1 // pred_region
      %229 = dma.done [#allocation3], 32
    $region33: #{_lambda_.13} parent=1 // pred_fallthru
      _
    %230 = vsyncpa [#allocation3], 1

// kernel: _lambda_.11
$region0: #{_lambda_.11}
  #allocation0 [shape = 'u32[]', space=smem, size = 0x4, offset = 0x4, fixed_abs, tag = 'smem constant byte address 0x4 - core index']
  #allocation1 [shape = 'u32[144,128]{1,0:T(1,128)}', space=vmem, size = 0x12000, scoped, tag = 'internal scratch']
  %s0 = inlined_call_operand.vmem [shape: f32[8,32], index: 0, kind: input, shape index: {}]
  %s1 = inlined_call_operand.vmem [shape: f32[1,32], index: 1, kind: input, shape index: {}, may-alias: {1,12}]
  %s2 = inlined_call_operand.vmem [shape: f32[1,32], index: 2, kind: input, shape index: {}, may-alias: {2,11,13,17}]
  %s3 = inlined_call_operand.vmem [shape: f32[4,32,8], index: 3, kind: input, shape index: {}]
  %s4 = inlined_call_operand.vmem [shape: f32[4,32,8], index: 4, kind: input, shape index: {}]
  %s5 = inlined_call_operand.vmem [shape: f32[4,32,8], index: 5, kind: input, shape index: {}]
  %s6 = inlined_call_operand.vmem [shape: f32[4,1,8], index: 6, kind: input, shape index: {}, may-alias: {6,7,8}]
  %s7 = inlined_call_operand.vmem [shape: f32[4,1,8], index: 7, kind: input, shape index: {}, may-alias: {6,7,8}]
  %s8 = inlined_call_operand.vmem [shape: f32[4,1,8], index: 8, kind: input, shape index: {}, may-alias: {6,7,8}]
  %s9 = inlined_call_operand.vmem [shape: f32[4,8,8], index: 9, kind: input, shape index: {}]
  %s10 = inlined_call_operand.vmem [shape: f32[4,8,32], index: 10, kind: input, shape index: {}]
  %s11 = inlined_call_operand.vmem [shape: f32[1,32], index: 11, kind: input, shape index: {}, may-alias: {2,11,13,17}]
  %s12 = inlined_call_operand.vmem [shape: f32[1,32], index: 12, kind: input, shape index: {}, may-alias: {1,12}]
  %s13 = inlined_call_operand.vmem [shape: f32[1,32], index: 13, kind: input, shape index: {}, may-alias: {2,11,13,17}]
  %s14 = inlined_call_operand.vmem [shape: f32[32,128], index: 14, kind: input, shape index: {}]
  %s15 = inlined_call_operand.vmem [shape: f32[1,128], index: 15, kind: input, shape index: {}]
  %s16 = inlined_call_operand.vmem [shape: f32[128,32], index: 16, kind: input, shape index: {}]
  %s17 = inlined_call_operand.vmem [shape: f32[1,32], index: 17, kind: input, shape index: {}, may-alias: {2,11,13,17}]
  %s18 = inlined_call_operand.vmem [shape: f32[8,32], index: 18, kind: output, shape index: {}]
  %s19 = sld [smem:[#allocation0]]
  $region82: #{_lambda_.11} parent=0
    _
  %s21 = ssub.s32 1, %s19
  %s22 = scalar_select 0, %s21, %s19
  // Predicated region
  $region2: #{_lambda_.11} parent=0 // pred_check
    _
  $region3: #{_lambda_.11} parent=0 // pred_check_branch
    %24 = sbr.rel (0) target = $region5
  $region4: #{_lambda_.11} parent=0 // pred_region
    _
  $region5: #{_lambda_.11} parent=0 // pred_fallthru
    _
  // Predicated region
  $region6: #{_lambda_.11} parent=0 // pred_check
    _
  $region7: #{_lambda_.11} parent=0 // pred_check_branch
    %26 = sbr.rel (0) target = $region9
  $region8: #{_lambda_.11} parent=0 // pred_region
    _
  $region9: #{_lambda_.11} parent=0 // pred_fallthru
    _
  // Predicated region
  $region10: #{_lambda_.11} parent=0 // pred_check
    _
  $region11: #{_lambda_.11} parent=0 // pred_check_branch
    %28 = sbr.rel (0) target = $region13
  $region12: #{_lambda_.11} parent=0 // pred_region
    _
  $region13: #{_lambda_.11} parent=0 // pred_fallthru
    _
  // Predicated region
  $region14: #{_lambda_.11} parent=0 // pred_check
    _
  $region15: #{_lambda_.11} parent=0 // pred_check_branch
    %30 = sbr.rel (0) target = $region17
  $region16: #{_lambda_.11} parent=0 // pred_region
    _
  $region17: #{_lambda_.11} parent=0 // pred_fallthru
    _
  // Predicated region
  $region18: #{_lambda_.11} parent=0 // pred_check
    _
  $region19: #{_lambda_.11} parent=0 // pred_check_branch
    %32 = sbr.rel (0) target = $region21
  $region20: #{_lambda_.11} parent=0 // pred_region
    _
  $region21: #{_lambda_.11} parent=0 // pred_fallthru
    _
  // Predicated region
  $region22: #{_lambda_.11} parent=0 // pred_check
    _
  $region23: #{_lambda_.11} parent=0 // pred_check_branch
    %34 = sbr.rel (0) target = $region25
  $region24: #{_lambda_.11} parent=0 // pred_region
    _
  $region25: #{_lambda_.11} parent=0 // pred_fallthru
    _
  // Predicated region
  $region26: #{_lambda_.11} parent=0 // pred_check
    _
  $region27: #{_lambda_.11} parent=0 // pred_check_branch
    %36 = sbr.rel (0) target = $region29
  $region28: #{_lambda_.11} parent=0 // pred_region
    _
  $region29: #{_lambda_.11} parent=0 // pred_fallthru
    _
  // Predicated region
  $region30: #{_lambda_.11} parent=0 // pred_check
    _
  $region31: #{_lambda_.11} parent=0 // pred_check_branch
    %38 = sbr.rel (0) target = $region33
  $region32: #{_lambda_.11} parent=0 // pred_region
    _
  $region33: #{_lambda_.11} parent=0 // pred_fallthru
    _
  // Predicated region
  $region34: #{_lambda_.11} parent=0 // pred_check
    _
  $region35: #{_lambda_.11} parent=0 // pred_check_branch
    %40 = sbr.rel (0) target = $region37
  $region36: #{_lambda_.11} parent=0 // pred_region
    _
  $region37: #{_lambda_.11} parent=0 // pred_fallthru
    _
  // Predicated region
  $region38: #{_lambda_.11} parent=0 // pred_check
    _
  $region39: #{_lambda_.11} parent=0 // pred_check_branch
    %42 = sbr.rel (0) target = $region41
  $region40: #{_lambda_.11} parent=0 // pred_region
    _
  $region41: #{_lambda_.11} parent=0 // pred_fallthru
    _
  // Predicated region
  $region42: #{_lambda_.11} parent=0 // pred_check
    _
  $region43: #{_lambda_.11} parent=0 // pred_check_branch
    %44 = sbr.rel (0) target = $region45
  $region44: #{_lambda_.11} parent=0 // pred_region
    _
  $region45: #{_lambda_.11} parent=0 // pred_fallthru
    _
  // Predicated region
  $region46: #{_lambda_.11} parent=0 // pred_check
    _
  $region47: #{_lambda_.11} parent=0 // pred_check_branch
    %46 = sbr.rel (0) target = $region49
  $region48: #{_lambda_.11} parent=0 // pred_region
    _
  $region49: #{_lambda_.11} parent=0 // pred_fallthru
    _
  // Predicated region
  $region50: #{_lambda_.11} parent=0 // pred_check
    _
  $region51: #{_lambda_.11} parent=0 // pred_check_branch
    %48 = sbr.rel (0) target = $region53
  $region52: #{_lambda_.11} parent=0 // pred_region
    _
  $region53: #{_lambda_.11} parent=0 // pred_fallthru
    _
  // Predicated region
  $region54: #{_lambda_.11} parent=0 // pred_check
    _
  $region55: #{_lambda_.11} parent=0 // pred_check_branch
    %50 = sbr.rel (0) target = $region57
  $region56: #{_lambda_.11} parent=0 // pred_region
    _
  $region57: #{_lambda_.11} parent=0 // pred_fallthru
    _
  // Predicated region
  $region58: #{_lambda_.11} parent=0 // pred_check
    _
  $region59: #{_lambda_.11} parent=0 // pred_check_branch
    %52 = sbr.rel (0) target = $region61
  $region60: #{_lambda_.11} parent=0 // pred_region
    _
  $region61: #{_lambda_.11} parent=0 // pred_fallthru
    _
  // Predicated region
  $region62: #{_lambda_.11} parent=0 // pred_check
    _
  $region63: #{_lambda_.11} parent=0 // pred_check_branch
    %54 = sbr.rel (0) target = $region65
  $region64: #{_lambda_.11} parent=0 // pred_region
    _
  $region65: #{_lambda_.11} parent=0 // pred_fallthru
    _
  // Predicated region
  $region66: #{_lambda_.11} parent=0 // pred_check
    _
  $region67: #{_lambda_.11} parent=0 // pred_check_branch
    %56 = sbr.rel (0) target = $region69
  $region68: #{_lambda_.11} parent=0 // pred_region
    _
  $region69: #{_lambda_.11} parent=0 // pred_fallthru
    _
  // Predicated region
  $region70: #{_lambda_.11} parent=0 // pred_check
    _
  $region71: #{_lambda_.11} parent=0 // pred_check_branch
    %58 = sbr.rel (0) target = $region73
  $region72: #{_lambda_.11} parent=0 // pred_region
    _
  $region73: #{_lambda_.11} parent=0 // pred_fallthru
    _
  %v59 = vld [vmem:[%s0] sm:$0xff]
  %v60 = vld [vmem:[%s1] sm:$0x1]
  %v61 = vld [vmem:[%s2] sm:$0x1]
  %vm62 = vcmask 261120
  %v63 = vsel %vm62, %v59, 0.0
  %64 = vadd.xlane.f32.xlu0 %v63
  %v65 = vpop.xlane.xlu0 %64
  %v66 = vrcp.pop 32.0
  %v67 = vmul.f32 %v65, %v66
  %v68 = vsub.f32 %v59, %v67
  %v69 = vmul.f32 %v68, %v68
  %v70 = vsel %vm62, %v69, 0.0
  %71 = vadd.xlane.f32.xlu0 %v70
  %v72 = vpop.xlane.xlu0 %71
  %v73 = vmul.f32 %v72, %v66
  %v74 = vadd.f32 %v73, 1e-05
  %v75 = vrsqrt.pop %v74
  %v76 = vmul.f32 %v68, %v75
  %v78 = vlaneseq
  %v79 = vshrl.u32 %v78, 7
  %v80 = vsub.s32 0, %v79
  %v81 = vrot.slane %v60, %v80
  %v83 = vmul.f32 %v76, %v81
  %v85 = vlaneseq
  %v86 = vshrl.u32 %v85, 7
  %v87 = vsub.s32 0, %v86
  %v88 = vrot.slane %v61, %v87
  %v90 = vadd.f32 %v83, %v88
  %v91 = vld [vmem:[%s3] sm:$0xff]
  %v92 = vld [vmem:[%s3 + $0x8] sm:$0xff]
  %v93 = vld [vmem:[%s3 + $0x10] sm:$0xff]
  %v94 = vld [vmem:[%s3 + $0x18] sm:$0xff]
  %v95 = vld [vmem:[%s6] sm:$0x1]
  %v97 = vlaneseq
  %v98 = vshrl.u32 %v97, 7
  %v99 = vsub.s32 0, %v98
  %v100 = vrot.slane %v95, %v99
  %v103 = vsel %vm62, %v90, 0
  %105 = vmatprep.subr.mxu0 0.0
  %106 = vmatpush1.msra.mxu0 %v91
  %107 = vmatprep.subr.mxu0 0.0
  %108 = vmatpush1.msra.mxu0 %v92
  %109 = vmatprep.subr.mxu0 0.0
  %110 = vmatpush1.msra.mxu0 %v93
  %111 = vmatprep.subr.mxu0 0.0
  %112 = vmatpush1.msra.mxu0 %v94
  %113 = vmatprep.subr.mxu0 0.0
  %114 = vmatpush1.msra.mxu0 0.0
  %115 = vmatprep.subr.mxu0 0.0
  %116 = vmatpush1.msra.mxu0 0.0
  %117 = vmatprep.subr.mxu0 0.0
  %118 = vmatpush1.msra.mxu0 0.0
  %119 = vmatprep.subr.mxu0 0.0
  %120 = vmatpush1.msra.mxu0 0.0
  %121 = vmatprep.subr.mxu0 0.0
  %122 = vmatpush1.msra.mxu0 0.0
  %123 = vmatprep.subr.mxu0 0.0
  %124 = vmatpush1.msra.mxu0 0.0
  %125 = vmatprep.subr.mxu0 0.0
  %126 = vmatpush1.msra.mxu0 0.0
  %127 = vmatprep.subr.mxu0 0.0
  %128 = vmatpush1.msra.mxu0 0.0
  %129 = vmatprep.subr.mxu0 0.0
  %130 = vmatpush1.msra.mxu0 0.0
  %131 = vmatprep.subr.mxu0 0.0
  %132 = vmatpush1.msra.mxu0 0.0
  %133 = vmatprep.subr.mxu0 0.0
  %134 = vmatpush1.msra.mxu0 0.0
  %135 = vmatprep.subr.mxu0 0.0
  %136 = vmatpush1.msra.mxu0 0.0
  %137 = vmatprep.subr.mxu0 0.0
  %138 = vmatpush1.msra.mxu0 0.0
  %139 = vmatprep.subr.mxu0 0.0
  %140 = vmatpush1.msra.mxu0 0.0
  %141 = vmatprep.subr.mxu0 0.0
  %142 = vmatpush1.msra.mxu0 0.0
  %143 = vmatprep.subr.mxu0 0.0
  %144 = vmatpush1.msra.mxu0 0.0
  %145 = vmatprep.subr.mxu0 0.0
  %146 = vmatpush1.msra.mxu0 0.0
  %147 = vmatprep.subr.mxu0 0.0
  %148 = vmatpush1.msra.mxu0 0.0
  %149 = vmatprep.subr.mxu0 0.0
  %150 = vmatpush1.msra.mxu0 0.0
  %151 = vmatprep.subr.mxu0 0.0
  %152 = vmatpush1.msra.mxu0 0.0
  %153 = vmatprep.subr.mxu0 0.0
  %154 = vmatpush1.msra.mxu0 0.0
  %155 = vmatprep.subr.mxu0 0.0
  %156 = vmatpush1.msra.mxu0 0.0
  %157 = vmatprep.subr.mxu0 0.0
  %158 = vmatpush1.msra.mxu0 0.0
  %159 = vmatprep.subr.mxu0 0.0
  %160 = vmatpush1.msra.mxu0 0.0
  %161 = vmatprep.subr.mxu0 0.0
  %162 = vmatpush1.msra.mxu0 0.0
  %163 = vmatprep.subr.mxu0 0.0
  %164 = vmatpush1.msra.mxu0 0.0
  %165 = vmatprep.subr.mxu0 0.0
  %166 = vmatpush1.msra.mxu0 0.0
  %167 = vmatprep.subr.mxu0 0.0
  %168 = vmatpush1.msra.mxu0 0.0
  %169 = vmatprep.mubr.f32.mxu0 0.0
  %170 = vmatmul.mubr.f32.gmra.mrb[0].mxu0 %v103
  %v171 = vpop.f32.mrb[0].mxu0
  %v172 = vadd.f32 %v100, %v171
  %v173 = vpop.f32.mrb[0].mxu0
  %174 = vdwg.mxu0
  %v175 = vmul.f32 %v172, 0.35355338
  %v176 = vld [vmem:[%s4] sm:$0xff]
  %v177 = vld [vmem:[%s4 + $0x8] sm:$0xff]
  %v178 = vld [vmem:[%s4 + $0x10] sm:$0xff]
  %v179 = vld [vmem:[%s4 + $0x18] sm:$0xff]
  %v180 = vld [vmem:[%s7] sm:$0x1]
  %v182 = vlaneseq
  %v183 = vshrl.u32 %v182, 7
  %v184 = vsub.s32 0, %v183
  %v185 = vrot.slane %v180, %v184
  %187 = vmatprep.subr.mxu0 0.0
  %188 = vmatpush1.msra.mxu0 %v176
  %189 = vmatprep.subr.mxu0 0.0
  %190 = vmatpush1.msra.mxu0 %v177
  %191 = vmatprep.subr.mxu0 0.0
  %192 = vmatpush1.msra.mxu0 %v178
  %193 = vmatprep.subr.mxu0 0.0
  %194 = vmatpush1.msra.mxu0 %v179
  %195 = vmatprep.subr.mxu0 0.0
  %196 = vmatpush1.msra.mxu0 0.0
  %197 = vmatprep.subr.mxu0 0.0
  %198 = vmatpush1.msra.mxu0 0.0
  %199 = vmatprep.subr.mxu0 0.0
  %200 = vmatpush1.msra.mxu0 0.0
  %201 = vmatprep.subr.mxu0 0.0
  %202 = vmatpush1.msra.mxu0 0.0
  %203 = vmatprep.subr.mxu0 0.0
  %204 = vmatpush1.msra.mxu0 0.0
  %205 = vmatprep.subr.mxu0 0.0
  %206 = vmatpush1.msra.mxu0 0.0
  %207 = vmatprep.subr.mxu0 0.0
  %208 = vmatpush1.msra.mxu0 0.0
  %209 = vmatprep.subr.mxu0 0.0
  %210 = vmatpush1.msra.mxu0 0.0
  %211 = vmatprep.subr.mxu0 0.0
  %212 = vmatpush1.msra.mxu0 0.0
  %213 = vmatprep.subr.mxu0 0.0
  %214 = vmatpush1.msra.mxu0 0.0
  %215 = vmatprep.subr.mxu0 0.0
  %216 = vmatpush1.msra.mxu0 0.0
  %217 = vmatprep.subr.mxu0 0.0
  %218 = vmatpush1.msra.mxu0 0.0
  %219 = vmatprep.subr.mxu0 0.0
  %220 = vmatpush1.msra.mxu0 0.0
  %221 = vmatprep.subr.mxu0 0.0
  %222 = vmatpush1.msra.mxu0 0.0
  %223 = vmatprep.subr.mxu0 0.0
  %224 = vmatpush1.msra.mxu0 0.0
  %225 = vmatprep.subr.mxu0 0.0
  %226 = vmatpush1.msra.mxu0 0.0
  %227 = vmatprep.subr.mxu0 0.0
  %228 = vmatpush1.msra.mxu0 0.0
  %229 = vmatprep.subr.mxu0 0.0
  %230 = vmatpush1.msra.mxu0 0.0
  %231 = vmatprep.subr.mxu0 0.0
  %232 = vmatpush1.msra.mxu0 0.0
  %233 = vmatprep.subr.mxu0 0.0
  %234 = vmatpush1.msra.mxu0 0.0
  %235 = vmatprep.subr.mxu0 0.0
  %236 = vmatpush1.msra.mxu0 0.0
  %237 = vmatprep.subr.mxu0 0.0
  %238 = vmatpush1.msra.mxu0 0.0
  %239 = vmatprep.subr.mxu0 0.0
  %240 = vmatpush1.msra.mxu0 0.0
  %241 = vmatprep.subr.mxu0 0.0
  %242 = vmatpush1.msra.mxu0 0.0
  %243 = vmatprep.subr.mxu0 0.0
  %244 = vmatpush1.msra.mxu0 0.0
  %245 = vmatprep.subr.mxu0 0.0
  %246 = vmatpush1.msra.mxu0 0.0
  %247 = vmatprep.subr.mxu0 0.0
  %248 = vmatpush1.msra.mxu0 0.0
  %249 = vmatprep.subr.mxu0 0.0
  %250 = vmatpush1.msra.mxu0 0.0
  %251 = vmatprep.mubr.f32.mxu0 0.0
  %252 = vmatmul.mubr.f32.gmra.mrb[0].mxu0 %v103
  %v253 = vpop.f32.mrb[0].mxu0
  %v254 = vadd.f32 %v185, %v253
  %v255 = vpop.f32.mrb[0].mxu0
  %256 = vdwg.mxu0
  %v257 = vld [vmem:[%s5] sm:$0xff]
  %v258 = vld [vmem:[%s5 + $0x8] sm:$0xff]
  %v259 = vld [vmem:[%s5 + $0x10] sm:$0xff]
  %v260 = vld [vmem:[%s5 + $0x18] sm:$0xff]
  %v261 = vld [vmem:[%s8] sm:$0x1]
  %v263 = vlaneseq
  %v264 = vshrl.u32 %v263, 7
  %v265 = vsub.s32 0, %v264
  %v266 = vrot.slane %v261, %v265
  %268 = vmatprep.subr.mxu0 0.0
  %269 = vmatpush1.msra.mxu0 %v257
  %270 = vmatprep.subr.mxu0 0.0
  %271 = vmatpush1.msra.mxu0 %v258
  %272 = vmatprep.subr.mxu0 0.0
  %273 = vmatpush1.msra.mxu0 %v259
  %274 = vmatprep.subr.mxu0 0.0
  %275 = vmatpush1.msra.mxu0 %v260
  %276 = vmatprep.subr.mxu0 0.0
  %277 = vmatpush1.msra.mxu0 0.0
  %278 = vmatprep.subr.mxu0 0.0
  %279 = vmatpush1.msra.mxu0 0.0
  %280 = vmatprep.subr.mxu0 0.0
  %281 = vmatpush1.msra.mxu0 0.0
  %282 = vmatprep.subr.mxu0 0.0
  %283 = vmatpush1.msra.mxu0 0.0
  %284 = vmatprep.subr.mxu0 0.0
  %285 = vmatpush1.msra.mxu0 0.0
  %286 = vmatprep.subr.mxu0 0.0
  %287 = vmatpush1.msra.mxu0 0.0
  %288 = vmatprep.subr.mxu0 0.0
  %289 = vmatpush1.msra.mxu0 0.0
  %290 = vmatprep.subr.mxu0 0.0
  %291 = vmatpush1.msra.mxu0 0.0
  %292 = vmatprep.subr.mxu0 0.0
  %293 = vmatpush1.msra.mxu0 0.0
  %294 = vmatprep.subr.mxu0 0.0
  %295 = vmatpush1.msra.mxu0 0.0
  %296 = vmatprep.subr.mxu0 0.0
  %297 = vmatpush1.msra.mxu0 0.0
  %298 = vmatprep.subr.mxu0 0.0
  %299 = vmatpush1.msra.mxu0 0.0
  %300 = vmatprep.subr.mxu0 0.0
  %301 = vmatpush1.msra.mxu0 0.0
  %302 = vmatprep.subr.mxu0 0.0
  %303 = vmatpush1.msra.mxu0 0.0
  %304 = vmatprep.subr.mxu0 0.0
  %305 = vmatpush1.msra.mxu0 0.0
  %306 = vmatprep.subr.mxu0 0.0
  %307 = vmatpush1.msra.mxu0 0.0
  %308 = vmatprep.subr.mxu0 0.0
  %309 = vmatpush1.msra.mxu0 0.0
  %310 = vmatprep.subr.mxu0 0.0
  %311 = vmatpush1.msra.mxu0 0.0
  %312 = vmatprep.subr.mxu0 0.0
  %313 = vmatpush1.msra.mxu0 0.0
  %314 = vmatprep.subr.mxu0 0.0
  %315 = vmatpush1.msra.mxu0 0.0
  %316 = vmatprep.subr.mxu0 0.0
  %317 = vmatpush1.msra.mxu0 0.0
  %318 = vmatprep.subr.mxu0 0.0
  %319 = vmatpush1.msra.mxu0 0.0
  %320 = vmatprep.subr.mxu0 0.0
  %321 = vmatpush1.msra.mxu0 0.0
  %322 = vmatprep.subr.mxu0 0.0
  %323 = vmatpush1.msra.mxu0 0.0
  %324 = vmatprep.subr.mxu0 0.0
  %325 = vmatpush1.msra.mxu0 0.0
  %326 = vmatprep.subr.mxu0 0.0
  %327 = vmatpush1.msra.mxu0 0.0
  %328 = vmatprep.subr.mxu0 0.0
  %329 = vmatpush1.msra.mxu0 0.0
  %330 = vmatprep.subr.mxu0 0.0
  %331 = vmatpush1.msra.mxu0 0.0
  %332 = vmatprep.mubr.f32.mxu0 0.0
  %333 = vmatmul.mubr.f32.gmra.mrb[0].mxu0 %v103
  %v334 = vpop.f32.mrb[0].mxu0
  %v335 = vadd.f32 %v266, %v334
  %v336 = vpop.f32.mrb[0].mxu0
  %337 = vdwg.mxu0
  %v338 = vld [vmem:[%s9] sm:$0xff]
  %vm339 = vcmask 64512
  %v341 = vsel %vm339, %v175, 0
  %v344 = vsel %vm339, %v254, 0
  %346 = vmatprep.subr.mxu0 0.0
  %347 = vmatpush1.xpose.msra.mxu0 %v344
  %348 = vmatprep.subr.mxu0 0.0
  %349 = vmatpush1.xpose.msra.mxu0 0.0
  %350 = vmatprep.subr.mxu0 0.0
  %351 = vmatpush1.xpose.msra.mxu0 0.0
  %352 = vmatprep.subr.mxu0 0.0
  %353 = vmatpush1.xpose.msra.mxu0 0.0
  %354 = vmatprep.subr.mxu0 0.0
  %355 = vmatpush1.xpose.msra.mxu0 0.0
  %356 = vmatprep.subr.mxu0 0.0
  %357 = vmatpush1.xpose.msra.mxu0 0.0
  %358 = vmatprep.subr.mxu0 0.0
  %359 = vmatpush1.xpose.msra.mxu0 0.0
  %360 = vmatprep.subr.mxu0 0.0
  %361 = vmatpush1.xpose.msra.mxu0 0.0
  %362 = vmatprep.subr.mxu0 0.0
  %363 = vmatpush1.xpose.msra.mxu0 0.0
  %364 = vmatprep.subr.mxu0 0.0
  %365 = vmatpush1.xpose.msra.mxu0 0.0
  %366 = vmatprep.subr.mxu0 0.0
  %367 = vmatpush1.xpose.msra.mxu0 0.0
  %368 = vmatprep.subr.mxu0 0.0
  %369 = vmatpush1.xpose.msra.mxu0 0.0
  %370 = vmatprep.subr.mxu0 0.0
  %371 = vmatpush1.xpose.msra.mxu0 0.0
  %372 = vmatprep.subr.mxu0 0.0
  %373 = vmatpush1.xpose.msra.mxu0 0.0
  %374 = vmatprep.subr.mxu0 0.0
  %375 = vmatpush1.xpose.msra.mxu0 0.0
  %376 = vmatprep.subr.mxu0 0.0
  %377 = vmatpush1.xpose.msra.mxu0 0.0
  %378 = vmatprep.subr.mxu0 0.0
  %379 = vmatpush1.xpose.msra.mxu0 0.0
  %380 = vmatprep.subr.mxu0 0.0
  %381 = vmatpush1.xpose.msra.mxu0 0.0
  %382 = vmatprep.subr.mxu0 0.0
  %383 = vmatpush1.xpose.msra.mxu0 0.0
  %384 = vmatprep.subr.mxu0 0.0
  %385 = vmatpush1.xpose.msra.mxu0 0.0
  %386 = vmatprep.subr.mxu0 0.0
  %387 = vmatpush1.xpose.msra.mxu0 0.0
  %388 = vmatprep.subr.mxu0 0.0
  %389 = vmatpush1.xpose.msra.mxu0 0.0
  %390 = vmatprep.subr.mxu0 0.0
  %391 = vmatpush1.xpose.msra.mxu0 0.0
  %392 = vmatprep.subr.mxu0 0.0
  %393 = vmatpush1.xpose.msra.mxu0 0.0
  %394 = vmatprep.subr.mxu0 0.0
  %395 = vmatpush1.xpose.msra.mxu0 0.0
  %396 = vmatprep.subr.mxu0 0.0
  %397 = vmatpush1.xpose.msra.mxu0 0.0
  %398 = vmatprep.subr.mxu0 0.0
  %399 = vmatpush1.xpose.msra.mxu0 0.0
  %400 = vmatprep.subr.mxu0 0.0
  %401 = vmatpush1.xpose.msra.mxu0 0.0
  %402 = vmatprep.subr.mxu0 0.0
  %403 = vmatpush1.xpose.msra.mxu0 0.0
  %404 = vmatprep.subr.mxu0 0.0
  %405 = vmatpush1.xpose.msra.mxu0 0.0
  %406 = vmatprep.subr.mxu0 0.0
  %407 = vmatpush1.xpose.msra.mxu0 0.0
  %408 = vmatprep.subr.mxu0 0.0
  %409 = vmatpush1.xpose.msra.mxu0 0.0
  %410 = vmatprep.mubr.f32.mxu0 0.0
  %411 = vmatmul.mubr.f32.gmra.mrb[0].mxu0 %v341
  %v412 = vpop.f32.mrb[0].mxu0
  %v413 = vadd.f32 %v338, %v412
  %v414 = vpop.f32.mrb[0].mxu0
  %415 = vdwg.mxu0
  %v416 = vsel %vm339, %v413, -inf
  %417 = vmax.xlane.f32.xlu0 %v416
  %v418 = vpop.xlane.xlu0 %417
  %v419 = vsub.f32 %v413, %v418
  %v420 = vmul.f32 %v419, 1.442695
  %v421 = vpow.pop %v420
  %v422 = vsel %vm339, %v421, 0.0
  %423 = vadd.xlane.f32.xlu0 %v422
  %v424 = vpop.xlane.xlu0 %423
  %v425 = vrcp.pop %v424
  %v426 = vmul.f32 %v421, %v425
  %v428 = vsel %vm339, %v426, 0
  %430 = vmatprep.subr.mxu0 0.0
  %431 = vmatpush1.msra.mxu0 %v335
  %432 = vmatprep.subr.mxu0 0.0
  %433 = vmatpush1.msra.mxu0 0.0
  %434 = vmatprep.subr.mxu0 0.0
  %435 = vmatpush1.msra.mxu0 0.0
  %436 = vmatprep.subr.mxu0 0.0
  %437 = vmatpush1.msra.mxu0 0.0
  %438 = vmatprep.subr.mxu0 0.0
  %439 = vmatpush1.msra.mxu0 0.0
  %440 = vmatprep.subr.mxu0 0.0
  %441 = vmatpush1.msra.mxu0 0.0
  %442 = vmatprep.subr.mxu0 0.0
  %443 = vmatpush1.msra.mxu0 0.0
  %444 = vmatprep.subr.mxu0 0.0
  %445 = vmatpush1.msra.mxu0 0.0
  %446 = vmatprep.subr.mxu0 0.0
  %447 = vmatpush1.msra.mxu0 0.0
  %448 = vmatprep.subr.mxu0 0.0
  %449 = vmatpush1.msra.mxu0 0.0
  %450 = vmatprep.subr.mxu0 0.0
  %451 = vmatpush1.msra.mxu0 0.0
  %452 = vmatprep.subr.mxu0 0.0
  %453 = vmatpush1.msra.mxu0 0.0
  %454 = vmatprep.subr.mxu0 0.0
  %455 = vmatpush1.msra.mxu0 0.0
  %456 = vmatprep.subr.mxu0 0.0
  %457 = vmatpush1.msra.mxu0 0.0
  %458 = vmatprep.subr.mxu0 0.0
  %459 = vmatpush1.msra.mxu0 0.0
  %460 = vmatprep.subr.mxu0 0.0
  %461 = vmatpush1.msra.mxu0 0.0
  %462 = vmatprep.subr.mxu0 0.0
  %463 = vmatpush1.msra.mxu0 0.0
  %464 = vmatprep.subr.mxu0 0.0
  %465 = vmatpush1.msra.mxu0 0.0
  %466 = vmatprep.subr.mxu0 0.0
  %467 = vmatpush1.msra.mxu0 0.0
  %468 = vmatprep.subr.mxu0 0.0
  %469 = vmatpush1.msra.mxu0 0.0
  %470 = vmatprep.subr.mxu0 0.0
  %471 = vmatpush1.msra.mxu0 0.0
  %472 = vmatprep.subr.mxu0 0.0
  %473 = vmatpush1.msra.mxu0 0.0
  %474 = vmatprep.subr.mxu0 0.0
  %475 = vmatpush1.msra.mxu0 0.0
  %476 = vmatprep.subr.mxu0 0.0
  %477 = vmatpush1.msra.mxu0 0.0
  %478 = vmatprep.subr.mxu0 0.0
  %479 = vmatpush1.msra.mxu0 0.0
  %480 = vmatprep.subr.mxu0 0.0
  %481 = vmatpush1.msra.mxu0 0.0
  %482 = vmatprep.subr.mxu0 0.0
  %483 = vmatpush1.msra.mxu0 0.0
  %484 = vmatprep.subr.mxu0 0.0
  %485 = vmatpush1.msra.mxu0 0.0
  %486 = vmatprep.subr.mxu0 0.0
  %487 = vmatpush1.msra.mxu0 0.0
  %488 = vmatprep.subr.mxu0 0.0
  %489 = vmatpush1.msra.mxu0 0.0
  %490 = vmatprep.subr.mxu0 0.0
  %491 = vmatpush1.msra.mxu0 0.0
  %492 = vmatprep.subr.mxu0 0.0
  %493 = vmatpush1.msra.mxu0 0.0
  %494 = vmatprep.mubr.f32.mxu0 0.0
  %495 = vmatmul.mubr.f32.gmra.mrb[0].mxu0 %v428
  %v496 = vpop.f32.mrb[0].mxu0
  %v497 = vadd.f32 0.0, %v496
  %v498 = vpop.f32.mrb[0].mxu0
  %499 = vdwg.mxu0
  %v500 = vld [vmem:[%s10] sm:$0xff]
  %s501 = scalar_lea.vmem %s3, 32
  %v502 = vld [vmem:[%s501] sm:$0xff]
  %v503 = vld [vmem:[%s501 + $0x8] sm:$0xff]
  %v504 = vld [vmem:[%s501 + $0x10] sm:$0xff]
  %v505 = vld [vmem:[%s501 + $0x18] sm:$0xff]
  %s506 = scalar_lea.vmem %s6, 1
  %v507 = vld [vmem:[%s506] sm:$0x1]
  %v509 = vlaneseq
  %v510 = vshrl.u32 %v509, 7
  %v511 = vsub.s32 0, %v510
  %v512 = vrot.slane %v507, %v511
  %514 = vmatprep.subr.mxu0 0.0
  %515 = vmatpush1.msra.mxu0 %v502
  %516 = vmatprep.subr.mxu0 0.0
  %517 = vmatpush1.msra.mxu0 %v503
  %518 = vmatprep.subr.mxu0 0.0
  %519 = vmatpush1.msra.mxu0 %v504
  %520 = vmatprep.subr.mxu0 0.0
  %521 = vmatpush1.msra.mxu0 %v505
  %522 = vmatprep.subr.mxu0 0.0
  %523 = vmatpush1.msra.mxu0 0.0
  %524 = vmatprep.subr.mxu0 0.0
  %525 = vmatpush1.msra.mxu0 0.0
  %526 = vmatprep.subr.mxu0 0.0
  %527 = vmatpush1.msra.mxu0 0.0
  %528 = vmatprep.subr.mxu0 0.0
  %529 = vmatpush1.msra.mxu0 0.0
  %530 = vmatprep.subr.mxu0 0.0
  %531 = vmatpush1.msra.mxu0 0.0
  %532 = vmatprep.subr.mxu0 0.0
  %533 = vmatpush1.msra.mxu0 0.0
  %534 = vmatprep.subr.mxu0 0.0
  %535 = vmatpush1.msra.mxu0 0.0
  %536 = vmatprep.subr.mxu0 0.0
  %537 = vmatpush1.msra.mxu0 0.0
  %538 = vmatprep.subr.mxu0 0.0
  %539 = vmatpush1.msra.mxu0 0.0
  %540 = vmatprep.subr.mxu0 0.0
  %541 = vmatpush1.msra.mxu0 0.0
  %542 = vmatprep.subr.mxu0 0.0
  %543 = vmatpush1.msra.mxu0 0.0
  %544 = vmatprep.subr.mxu0 0.0
  %545 = vmatpush1.msra.mxu0 0.0
  %546 = vmatprep.subr.mxu0 0.0
  %547 = vmatpush1.msra.mxu0 0.0
  %548 = vmatprep.subr.mxu0 0.0
  %549 = vmatpush1.msra.mxu0 0.0
  %550 = vmatprep.subr.mxu0 0.0
  %551 = vmatpush1.msra.mxu0 0.0
  %552 = vmatprep.subr.mxu0 0.0
  %553 = vmatpush1.msra.mxu0 0.0
  %554 = vmatprep.subr.mxu0 0.0
  %555 = vmatpush1.msra.mxu0 0.0
  %556 = vmatprep.subr.mxu0 0.0
  %557 = vmatpush1.msra.mxu0 0.0
  %558 = vmatprep.subr.mxu0 0.0
  %559 = vmatpush1.msra.mxu0 0.0
  %560 = vmatprep.subr.mxu0 0.0
  %561 = vmatpush1.msra.mxu0 0.0
  %562 = vmatprep.subr.mxu0 0.0
  %563 = vmatpush1.msra.mxu0 0.0
  %564 = vmatprep.subr.mxu0 0.0
  %565 = vmatpush1.msra.mxu0 0.0
  %566 = vmatprep.subr.mxu0 0.0
  %567 = vmatpush1.msra.mxu0 0.0
  %568 = vmatprep.subr.mxu0 0.0
  %569 = vmatpush1.msra.mxu0 0.0
  %570 = vmatprep.subr.mxu0 0.0
  %571 = vmatpush1.msra.mxu0 0.0
  %572 = vmatprep.subr.mxu0 0.0
  %573 = vmatpush1.msra.mxu0 0.0
  %574 = vmatprep.subr.mxu0 0.0
  %575 = vmatpush1.msra.mxu0 0.0
  %576 = vmatprep.subr.mxu0 0.0
  %577 = vmatpush1.msra.mxu0 0.0
  %578 = vmatprep.mubr.f32.mxu0 0.0
  %579 = vmatmul.mubr.f32.gmra.mrb[0].mxu0 %v103
  %v580 = vpop.f32.mrb[0].mxu0
  %v581 = vadd.f32 %v512, %v580
  %v582 = vpop.f32.mrb[0].mxu0
  %583 = vdwg.mxu0
  %v584 = vmul.f32 %v581, 0.35355338
  %s585 = scalar_lea.vmem %s4, 32
  %v586 = vld [vmem:[%s585] sm:$0xff]
  %v587 = vld [vmem:[%s585 + $0x8] sm:$0xff]
  %v588 = vld [vmem:[%s585 + $0x10] sm:$0xff]
  %v589 = vld [vmem:[%s585 + $0x18] sm:$0xff]
  %s590 = scalar_lea.vmem %s7, 1
  %v591 = vld [vmem:[%s590] sm:$0x1]
  %v593 = vlaneseq
  %v594 = vshrl.u32 %v593, 7
  %v595 = vsub.s32 0, %v594
  %v596 = vrot.slane %v591, %v595
  %598 = vmatprep.subr.mxu0 0.0
  %599 = vmatpush1.msra.mxu0 %v586
  %600 = vmatprep.subr.mxu0 0.0
  %601 = vmatpush1.msra.mxu0 %v587
  %602 = vmatprep.subr.mxu0 0.0
  %603 = vmatpush1.msra.mxu0 %v588
  %604 = vmatprep.subr.mxu0 0.0
  %605 = vmatpush1.msra.mxu0 %v589
  %606 = vmatprep.subr.mxu0 0.0
  %607 = vmatpush1.msra.mxu0 0.0
  %608 = vmatprep.subr.mxu0 0.0
  %609 = vmatpush1.msra.mxu0 0.0
  %610 = vmatprep.subr.mxu0 0.0
  %611 = vmatpush1.msra.mxu0 0.0
  %612 = vmatprep.subr.mxu0 0.0
  %613 = vmatpush1.msra.mxu0 0.0
  %614 = vmatprep.subr.mxu0 0.0
  %615 = vmatpush1.msra.mxu0 0.0
  %616 = vmatprep.subr.mxu0 0.0
  %617 = vmatpush1.msra.mxu0 0.0
  %618 = vmatprep.subr.mxu0 0.0
  %619 = vmatpush1.msra.mxu0 0.0
  %620 = vmatprep.subr.mxu0 0.0
  %621 = vmatpush1.msra.mxu0 0.0
  %622 = vmatprep.subr.mxu0 0.0
  %623 = vmatpush1.msra.mxu0 0.0
  %624 = vmatprep.subr.mxu0 0.0
  %625 = vmatpush1.msra.mxu0 0.0
  %626 = vmatprep.subr.mxu0 0.0
  %627 = vmatpush1.msra.mxu0 0.0
  %628 = vmatprep.subr.mxu0 0.0
  %629 = vmatpush1.msra.mxu0 0.0
  %630 = vmatprep.subr.mxu0 0.0
  %631 = vmatpush1.msra.mxu0 0.0
  %632 = vmatprep.subr.mxu0 0.0
  %633 = vmatpush1.msra.mxu0 0.0
  %634 = vmatprep.subr.mxu0 0.0
  %635 = vmatpush1.msra.mxu0 0.0
  %636 = vmatprep.subr.mxu0 0.0
  %637 = vmatpush1.msra.mxu0 0.0
  %638 = vmatprep.subr.mxu0 0.0
  %639 = vmatpush1.msra.mxu0 0.0
  %640 = vmatprep.subr.mxu0 0.0
  %641 = vmatpush1.msra.mxu0 0.0
  %642 = vmatprep.subr.mxu0 0.0
  %643 = vmatpush1.msra.mxu0 0.0
  %644 = vmatprep.subr.mxu0 0.0
  %645 = vmatpush1.msra.mxu0 0.0
  %646 = vmatprep.subr.mxu0 0.0
  %647 = vmatpush1.msra.mxu0 0.0
  %648 = vmatprep.subr.mxu0 0.0
  %649 = vmatpush1.msra.mxu0 0.0
  %650 = vmatprep.subr.mxu0 0.0
  %651 = vmatpush1.msra.mxu0 0.0
  %652 = vmatprep.subr.mxu0 0.0
  %653 = vmatpush1.msra.mxu0 0.0
  %654 = vmatprep.subr.mxu0 0.0
  %655 = vmatpush1.msra.mxu0 0.0
  %656 = vmatprep.subr.mxu0 0.0
  %657 = vmatpush1.msra.mxu0 0.0
  %658 = vmatprep.subr.mxu0 0.0
  %659 = vmatpush1.msra.mxu0 0.0
  %660 = vmatprep.subr.mxu0 0.0
  %661 = vmatpush1.msra.mxu0 0.0
  %662 = vmatprep.mubr.f32.mxu0 0.0
  %663 = vmatmul.mubr.f32.gmra.mrb[0].mxu0 %v103
  %v664 = vpop.f32.mrb[0].mxu0
  %v665 = vadd.f32 %v596, %v664
  %v666 = vpop.f32.mrb[0].mxu0
  %667 = vdwg.mxu0
  %s668 = scalar_lea.vmem %s5, 32
  %v669 = vld [vmem:[%s668] sm:$0xff]
  %v670 = vld [vmem:[%s668 + $0x8] sm:$0xff]
  %v671 = vld [vmem:[%s668 + $0x10] sm:$0xff]
  %v672 = vld [vmem:[%s668 + $0x18] sm:$0xff]
  %s673 = scalar_lea.vmem %s8, 1
  %v674 = vld [vmem:[%s673] sm:$0x1]
  %v676 = vlaneseq
  %v677 = vshrl.u32 %v676, 7
  %v678 = vsub.s32 0, %v677
  %v679 = vrot.slane %v674, %v678
  %681 = vmatprep.subr.mxu0 0.0
  %682 = vmatpush1.msra.mxu0 %v669
  %683 = vmatprep.subr.mxu0 0.0
  %684 = vmatpush1.msra.mxu0 %v670
  %685 = vmatprep.subr.mxu0 0.0
  %686 = vmatpush1.msra.mxu0 %v671
  %687 = vmatprep.subr.mxu0 0.0
  %688 = vmatpush1.msra.mxu0 %v672
  %689 = vmatprep.subr.mxu0 0.0
  %690 = vmatpush1.msra.mxu0 0.0
  %691 = vmatprep.subr.mxu0 0.0
  %692 = vmatpush1.msra.mxu0 0.0
  %693 = vmatprep.subr.mxu0 0.0
  %694 = vmatpush1.msra.mxu0 0.0
  %695 = vmatprep.subr.mxu0 0.0
  %696 = vmatpush1.msra.mxu0 0.0
  %697 = vmatprep.subr.mxu0 0.0
  %698 = vmatpush1.msra.mxu0 0.0
  %699 = vmatprep.subr.mxu0 0.0
  %700 = vmatpush1.msra.mxu0 0.0
  %701 = vmatprep.subr.mxu0 0.0
  %702 = vmatpush1.msra.mxu0 0.0
  %703 = vmatprep.subr.mxu0 0.0
  %704 = vmatpush1.msra.mxu0 0.0
  %705 = vmatprep.subr.mxu0 0.0
  %706 = vmatpush1.msra.mxu0 0.0
  %707 = vmatprep.subr.mxu0 0.0
  %708 = vmatpush1.msra.mxu0 0.0
  %709 = vmatprep.subr.mxu0 0.0
  %710 = vmatpush1.msra.mxu0 0.0
  %711 = vmatprep.subr.mxu0 0.0
  %712 = vmatpush1.msra.mxu0 0.0
  %713 = vmatprep.subr.mxu0 0.0
  %714 = vmatpush1.msra.mxu0 0.0
  %715 = vmatprep.subr.mxu0 0.0
  %716 = vmatpush1.msra.mxu0 0.0
  %717 = vmatprep.subr.mxu0 0.0
  %718 = vmatpush1.msra.mxu0 0.0
  %719 = vmatprep.subr.mxu0 0.0
  %720 = vmatpush1.msra.mxu0 0.0
  %721 = vmatprep.subr.mxu0 0.0
  %722 = vmatpush1.msra.mxu0 0.0
  %723 = vmatprep.subr.mxu0 0.0
  %724 = vmatpush1.msra.mxu0 0.0
  %725 = vmatprep.subr.mxu0 0.0
  %726 = vmatpush1.msra.mxu0 0.0
  %727 = vmatprep.subr.mxu0 0.0
  %728 = vmatpush1.msra.mxu0 0.0
  %729 = vmatprep.subr.mxu0 0.0
  %730 = vmatpush1.msra.mxu0 0.0
  %731 = vmatprep.subr.mxu0 0.0
  %732 = vmatpush1.msra.mxu0 0.0
  %733 = vmatprep.subr.mxu0 0.0
  %734 = vmatpush1.msra.mxu0 0.0
  %735 = vmatprep.subr.mxu0 0.0
  %736 = vmatpush1.msra.mxu0 0.0
  %737 = vmatprep.subr.mxu0 0.0
  %738 = vmatpush1.msra.mxu0 0.0
  %739 = vmatprep.subr.mxu0 0.0
  %740 = vmatpush1.msra.mxu0 0.0
  %741 = vmatprep.subr.mxu0 0.0
  %742 = vmatpush1.msra.mxu0 0.0
  %743 = vmatprep.subr.mxu0 0.0
  %744 = vmatpush1.msra.mxu0 0.0
  %745 = vmatprep.mubr.f32.mxu0 0.0
  %746 = vmatmul.mubr.f32.gmra.mrb[0].mxu0 %v103
  %v747 = vpop.f32.mrb[0].mxu0
  %v748 = vadd.f32 %v679, %v747
  %v749 = vpop.f32.mrb[0].mxu0
  %750 = vdwg.mxu0
  %s751 = scalar_lea.vmem %s9, 8
  %v752 = vld [vmem:[%s751] sm:$0xff]
  %v754 = vsel %vm339, %v584, 0
  %v757 = vsel %vm339, %v665, 0
  %759 = vmatprep.subr.mxu0 0.0
  %760 = vmatpush1.xpose.msra.mxu0 %v757
  %761 = vmatprep.subr.mxu0 0.0
  %762 = vmatpush1.xpose.msra.mxu0 0.0
  %763 = vmatprep.subr.mxu0 0.0
  %764 = vmatpush1.xpose.msra.mxu0 0.0
  %765 = vmatprep.subr.mxu0 0.0
  %766 = vmatpush1.xpose.msra.mxu0 0.0
  %767 = vmatprep.subr.mxu0 0.0
  %768 = vmatpush1.xpose.msra.mxu0 0.0
  %769 = vmatprep.subr.mxu0 0.0
  %770 = vmatpush1.xpose.msra.mxu0 0.0
  %771 = vmatprep.subr.mxu0 0.0
  %772 = vmatpush1.xpose.msra.mxu0 0.0
  %773 = vmatprep.subr.mxu0 0.0
  %774 = vmatpush1.xpose.msra.mxu0 0.0
  %775 = vmatprep.subr.mxu0 0.0
  %776 = vmatpush1.xpose.msra.mxu0 0.0
  %777 = vmatprep.subr.mxu0 0.0
  %778 = vmatpush1.xpose.msra.mxu0 0.0
  %779 = vmatprep.subr.mxu0 0.0
  %780 = vmatpush1.xpose.msra.mxu0 0.0
  %781 = vmatprep.subr.mxu0 0.0
  %782 = vmatpush1.xpose.msra.mxu0 0.0
  %783 = vmatprep.subr.mxu0 0.0
  %784 = vmatpush1.xpose.msra.mxu0 0.0
  %785 = vmatprep.subr.mxu0 0.0
  %786 = vmatpush1.xpose.msra.mxu0 0.0
  %787 = vmatprep.subr.mxu0 0.0
  %788 = vmatpush1.xpose.msra.mxu0 0.0
  %789 = vmatprep.subr.mxu0 0.0
  %790 = vmatpush1.xpose.msra.mxu0 0.0
  %791 = vmatprep.subr.mxu0 0.0
  %792 = vmatpush1.xpose.msra.mxu0 0.0
  %793 = vmatprep.subr.mxu0 0.0
  %794 = vmatpush1.xpose.msra.mxu0 0.0
  %795 = vmatprep.subr.mxu0 0.0
  %796 = vmatpush1.xpose.msra.mxu0 0.0
  %797 = vmatprep.subr.mxu0 0.0
  %798 = vmatpush1.xpose.msra.mxu0 0.0
  %799 = vmatprep.subr.mxu0 0.0
  %800 = vmatpush1.xpose.msra.mxu0 0.0
  %801 = vmatprep.subr.mxu0 0.0
  %802 = vmatpush1.xpose.msra.mxu0 0.0
  %803 = vmatprep.subr.mxu0 0.0
  %804 = vmatpush1.xpose.msra.mxu0 0.0
  %805 = vmatprep.subr.mxu0 0.0
  %806 = vmatpush1.xpose.msra.mxu0 0.0
  %807 = vmatprep.subr.mxu0 0.0
  %808 = vmatpush1.xpose.msra.mxu0 0.0
  %809 = vmatprep.subr.mxu0 0.0
  %810 = vmatpush1.xpose.msra.mxu0 0.0
  %811 = vmatprep.subr.mxu0 0.0
  %812 = vmatpush1.xpose.msra.mxu0 0.0
  %813 = vmatprep.subr.mxu0 0.0
  %814 = vmatpush1.xpose.msra.mxu0 0.0
  %815 = vmatprep.subr.mxu0 0.0
  %816 = vmatpush1.xpose.msra.mxu0 0.0
  %817 = vmatprep.subr.mxu0 0.0
  %818 = vmatpush1.xpose.msra.mxu0 0.0
  %819 = vmatprep.subr.mxu0 0.0
  %820 = vmatpush1.xpose.msra.mxu0 0.0
  %821 = vmatprep.subr.mxu0 0.0
  %822 = vmatpush1.xpose.msra.mxu0 0.0
  %823 = vmatprep.mubr.f32.mxu0 0.0
  %824 = vmatmul.mubr.f32.gmra.mrb[0].mxu0 %v754
  %v825 = vpop.f32.mrb[0].mxu0
  %v826 = vadd.f32 %v752, %v825
  %v827 = vpop.f32.mrb[0].mxu0
  %828 = vdwg.mxu0
  %v829 = vsel %vm339, %v826, -inf
  %830 = vmax.xlane.f32.xlu0 %v829
  %v831 = vpop.xlane.xlu0 %830
  %v832 = vsub.f32 %v826, %v831
  %v833 = vmul.f32 %v832, 1.442695
  %v834 = vpow.pop %v833
  %v835 = vsel %vm339, %v834, 0.0
  %836 = vadd.xlane.f32.xlu0 %v835
  %v837 = vpop.xlane.xlu0 %836
  %v838 = vrcp.pop %v837
  %v839 = vmul.f32 %v834, %v838
  %v841 = vsel %vm339, %v839, 0
  %843 = vmatprep.subr.mxu0 0.0
  %844 = vmatpush1.msra.mxu0 %v748
  %845 = vmatprep.subr.mxu0 0.0
  %846 = vmatpush1.msra.mxu0 0.0
  %847 = vmatprep.subr.mxu0 0.0
  %848 = vmatpush1.msra.mxu0 0.0
  %849 = vmatprep.subr.mxu0 0.0
  %850 = vmatpush1.msra.mxu0 0.0
  %851 = vmatprep.subr.mxu0 0.0
  %852 = vmatpush1.msra.mxu0 0.0
  %853 = vmatprep.subr.mxu0 0.0
  %854 = vmatpush1.msra.mxu0 0.0
  %855 = vmatprep.subr.mxu0 0.0
  %856 = vmatpush1.msra.mxu0 0.0
  %857 = vmatprep.subr.mxu0 0.0
  %858 = vmatpush1.msra.mxu0 0.0
  %859 = vmatprep.subr.mxu0 0.0
  %860 = vmatpush1.msra.mxu0 0.0
  %861 = vmatprep.subr.mxu0 0.0
  %862 = vmatpush1.msra.mxu0 0.0
  %863 = vmatprep.subr.mxu0 0.0
  %864 = vmatpush1.msra.mxu0 0.0
  %865 = vmatprep.subr.mxu0 0.0
  %866 = vmatpush1.msra.mxu0 0.0
  %867 = vmatprep.subr.mxu0 0.0
  %868 = vmatpush1.msra.mxu0 0.0
  %869 = vmatprep.subr.mxu0 0.0
  %870 = vmatpush1.msra.mxu0 0.0
  %871 = vmatprep.subr.mxu0 0.0
  %872 = vmatpush1.msra.mxu0 0.0
  %873 = vmatprep.subr.mxu0 0.0
  %874 = vmatpush1.msra.mxu0 0.0
  %875 = vmatprep.subr.mxu0 0.0
  %876 = vmatpush1.msra.mxu0 0.0
  %877 = vmatprep.subr.mxu0 0.0
  %878 = vmatpush1.msra.mxu0 0.0
  %879 = vmatprep.subr.mxu0 0.0
  %880 = vmatpush1.msra.mxu0 0.0
  %881 = vmatprep.subr.mxu0 0.0
  %882 = vmatpush1.msra.mxu0 0.0
  %883 = vmatprep.subr.mxu0 0.0
  %884 = vmatpush1.msra.mxu0 0.0
  %885 = vmatprep.subr.mxu0 0.0
  %886 = vmatpush1.msra.mxu0 0.0
  %887 = vmatprep.subr.mxu0 0.0
  %888 = vmatpush1.msra.mxu0 0.0
  %889 = vmatprep.subr.mxu0 0.0
  %890 = vmatpush1.msra.mxu0 0.0
  %891 = vmatprep.subr.mxu0 0.0
  %892 = vmatpush1.msra.mxu0 0.0
  %893 = vmatprep.subr.mxu0 0.0
  %894 = vmatpush1.msra.mxu0 0.0
  %895 = vmatprep.subr.mxu0 0.0
  %896 = vmatpush1.msra.mxu0 0.0
  %897 = vmatprep.subr.mxu0 0.0
  %898 = vmatpush1.msra.mxu0 0.0
  %899 = vmatprep.subr.mxu0 0.0
  %900 = vmatpush1.msra.mxu0 0.0
  %901 = vmatprep.subr.mxu0 0.0
  %902 = vmatpush1.msra.mxu0 0.0
  %903 = vmatprep.subr.mxu0 0.0
  %904 = vmatpush1.msra.mxu0 0.0
  %905 = vmatprep.subr.mxu0 0.0
  %906 = vmatpush1.msra.mxu0 0.0
  %907 = vmatprep.mubr.f32.mxu0 0.0
  %908 = vmatmul.mubr.f32.gmra.mrb[0].mxu0 %v841
  %v909 = vpop.f32.mrb[0].mxu0
  %v910 = vadd.f32 0.0, %v909
  %v911 = vpop.f32.mrb[0].mxu0
  %912 = vdwg.mxu0
  %s913 = scalar_lea.vmem %s10, 8
  %v914 = vld [vmem:[%s913] sm:$0xff]
  %v916 = vsel %vm339, %v910, 0
  %918 = vmatprep.subr.mxu0 0.0
  %919 = vmatpush1.msra.mxu0 %v914
  %920 = vmatprep.subr.mxu0 0.0
  %921 = vmatpush1.msra.mxu0 0.0
  %922 = vmatprep.subr.mxu0 0.0
  %923 = vmatpush1.msra.mxu0 0.0
  %924 = vmatprep.subr.mxu0 0.0
  %925 = vmatpush1.msra.mxu0 0.0
  %926 = vmatprep.subr.mxu0 0.0
  %927 = vmatpush1.msra.mxu0 0.0
  %928 = vmatprep.subr.mxu0 0.0
  %929 = vmatpush1.msra.mxu0 0.0
  %930 = vmatprep.subr.mxu0 0.0
  %931 = vmatpush1.msra.mxu0 0.0
  %932 = vmatprep.subr.mxu0 0.0
  %933 = vmatpush1.msra.mxu0 0.0
  %934 = vmatprep.subr.mxu0 0.0
  %935 = vmatpush1.msra.mxu0 0.0
  %936 = vmatprep.subr.mxu0 0.0
  %937 = vmatpush1.msra.mxu0 0.0
  %938 = vmatprep.subr.mxu0 0.0
  %939 = vmatpush1.msra.mxu0 0.0
  %940 = vmatprep.subr.mxu0 0.0
  %941 = vmatpush1.msra.mxu0 0.0
  %942 = vmatprep.subr.mxu0 0.0
  %943 = vmatpush1.msra.mxu0 0.0
  %944 = vmatprep.subr.mxu0 0.0
  %945 = vmatpush1.msra.mxu0 0.0
  %946 = vmatprep.subr.mxu0 0.0
  %947 = vmatpush1.msra.mxu0 0.0
  %948 = vmatprep.subr.mxu0 0.0
  %949 = vmatpush1.msra.mxu0 0.0
  %950 = vmatprep.subr.mxu0 0.0
  %951 = vmatpush1.msra.mxu0 0.0
  %952 = vmatprep.subr.mxu0 0.0
  %953 = vmatpush1.msra.mxu0 0.0
  %954 = vmatprep.subr.mxu0 0.0
  %955 = vmatpush1.msra.mxu0 0.0
  %956 = vmatprep.subr.mxu0 0.0
  %957 = vmatpush1.msra.mxu0 0.0
  %958 = vmatprep.subr.mxu0 0.0
  %959 = vmatpush1.msra.mxu0 0.0
  %960 = vmatprep.subr.mxu0 0.0
  %961 = vmatpush1.msra.mxu0 0.0
  %962 = vmatprep.subr.mxu0 0.0
  %963 = vmatpush1.msra.mxu0 0.0
  %964 = vmatprep.subr.mxu0 0.0
  %965 = vmatpush1.msra.mxu0 0.0
  %966 = vmatprep.subr.mxu0 0.0
  %967 = vmatpush1.msra.mxu0 0.0
  %968 = vmatprep.subr.mxu0 0.0
  %969 = vmatpush1.msra.mxu0 0.0
  %970 = vmatprep.subr.mxu0 0.0
  %971 = vmatpush1.msra.mxu0 0.0
  %972 = vmatprep.subr.mxu0 0.0
  %973 = vmatpush1.msra.mxu0 0.0
  %974 = vmatprep.subr.mxu0 0.0
  %975 = vmatpush1.msra.mxu0 0.0
  %976 = vmatprep.subr.mxu0 0.0
  %977 = vmatpush1.msra.mxu0 0.0
  %978 = vmatprep.subr.mxu0 0.0
  %979 = vmatpush1.msra.mxu0 0.0
  %980 = vmatprep.subr.mxu0 0.0
  %981 = vmatpush1.msra.mxu0 0.0
  %982 = vmatprep.mubr.f32.mxu0 0.0
  %983 = vmatmul.mubr.f32.gmra.mrb[0].mxu0 %v916
  %v984 = vpop.f32.mrb[0].mxu0
  %v985 = vadd.f32 0.0, %v984
  %v986 = vpop.f32.mrb[0].mxu0
  %987 = vdwg.mxu0
  %v989 = vsel %vm339, %v497, 0
  %991 = vmatprep.subr.mxu0 0.0
  %992 = vmatpush1.msra.mxu0 %v500
  %993 = vmatprep.subr.mxu0 0.0
  %994 = vmatpush1.msra.mxu0 0.0
  %995 = vmatprep.subr.mxu0 0.0
  %996 = vmatpush1.msra.mxu0 0.0
  %997 = vmatprep.subr.mxu0 0.0
  %998 = vmatpush1.msra.mxu0 0.0
  %999 = vmatprep.subr.mxu0 0.0
  %1000 = vmatpush1.msra.mxu0 0.0
  %1001 = vmatprep.subr.mxu0 0.0
  %1002 = vmatpush1.msra.mxu0 0.0
  %1003 = vmatprep.subr.mxu0 0.0
  %1004 = vmatpush1.msra.mxu0 0.0
  %1005 = vmatprep.subr.mxu0 0.0
  %1006 = vmatpush1.msra.mxu0 0.0
  %1007 = vmatprep.subr.mxu0 0.0
  %1008 = vmatpush1.msra.mxu0 0.0
  %1009 = vmatprep.subr.mxu0 0.0
  %1010 = vmatpush1.msra.mxu0 0.0
  %1011 = vmatprep.subr.mxu0 0.0
  %1012 = vmatpush1.msra.mxu0 0.0
  %1013 = vmatprep.subr.mxu0 0.0
  %1014 = vmatpush1.msra.mxu0 0.0
  %1015 = vmatprep.subr.mxu0 0.0
  %1016 = vmatpush1.msra.mxu0 0.0
  %1017 = vmatprep.subr.mxu0 0.0
  %1018 = vmatpush1.msra.mxu0 0.0
  %1019 = vmatprep.subr.mxu0 0.0
  %1020 = vmatpush1.msra.mxu0 0.0
  %1021 = vmatprep.subr.mxu0 0.0
  %1022 = vmatpush1.msra.mxu0 0.0
  %1023 = vmatprep.subr.mxu0 0.0
  %1024 = vmatpush1.msra.mxu0 0.0
  %1025 = vmatprep.subr.mxu0 0.0
  %1026 = vmatpush1.msra.mxu0 0.0
  %1027 = vmatprep.subr.mxu0 0.0
  %1028 = vmatpush1.msra.mxu0 0.0
  %1029 = vmatprep.subr.mxu0 0.0
  %1030 = vmatpush1.msra.mxu0 0.0
  %1031 = vmatprep.subr.mxu0 0.0
  %1032 = vmatpush1.msra.mxu0 0.0
  %1033 = vmatprep.subr.mxu0 0.0
  %1034 = vmatpush1.msra.mxu0 0.0
  %1035 = vmatprep.subr.mxu0 0.0
  %1036 = vmatpush1.msra.mxu0 0.0
  %1037 = vmatprep.subr.mxu0 0.0
  %1038 = vmatpush1.msra.mxu0 0.0
  %1039 = vmatprep.subr.mxu0 0.0
  %1040 = vmatpush1.msra.mxu0 0.0
  %1041 = vmatprep.subr.mxu0 0.0
  %1042 = vmatpush1.msra.mxu0 0.0
  %1043 = vmatprep.subr.mxu0 0.0
  %1044 = vmatpush1.msra.mxu0 0.0
  %1045 = vmatprep.subr.mxu0 0.0
  %1046 = vmatpush1.msra.mxu0 0.0
  %1047 = vmatprep.subr.mxu0 0.0
  %1048 = vmatpush1.msra.mxu0 0.0
  %1049 = vmatprep.subr.mxu0 0.0
  %1050 = vmatpush1.msra.mxu0 0.0
  %1051 = vmatprep.subr.mxu0 0.0
  %1052 = vmatpush1.msra.mxu0 0.0
  %1053 = vmatprep.subr.mxu0 0.0
  %1054 = vmatpush1.msra.mxu0 0.0
  %1055 = vmatprep.mubr.f32.mxu0 0.0
  %1056 = vmatmul.mubr.f32.gmra.mrb[0].mxu0 %v989
  %v1057 = vpop.f32.mrb[0].mxu0
  %v1058 = vadd.f32 %v985, %v1057
  %v1059 = vpop.f32.mrb[0].mxu0
  %1060 = vdwg.mxu0
  %s1061 = scalar_lea.vmem %s3, 64
  %v1062 = vld [vmem:[%s1061] sm:$0xff]
  %v1063 = vld [vmem:[%s1061 + $0x8] sm:$0xff]
  %v1064 = vld [vmem:[%s1061 + $0x10] sm:$0xff]
  %v1065 = vld [vmem:[%s1061 + $0x18] sm:$0xff]
  %s1066 = scalar_lea.vmem %s6, 2
  %v1067 = vld [vmem:[%s1066] sm:$0x1]
  %v1069 = vlaneseq
  %v1070 = vshrl.u32 %v1069, 7
  %v1071 = vsub.s32 0, %v1070
  %v1072 = vrot.slane %v1067, %v1071
  %1074 = vmatprep.subr.mxu0 0.0
  %1075 = vmatpush1.msra.mxu0 %v1062
  %1076 = vmatprep.subr.mxu0 0.0
  %1077 = vmatpush1.msra.mxu0 %v1063
  %1078 = vmatprep.subr.mxu0 0.0
  %1079 = vmatpush1.msra.mxu0 %v1064
  %1080 = vmatprep.subr.mxu0 0.0
  %1081 = vmatpush1.msra.mxu0 %v1065
  %1082 = vmatprep.subr.mxu0 0.0
  %1083 = vmatpush1.msra.mxu0 0.0
  %1084 = vmatprep.subr.mxu0 0.0
  %1085 = vmatpush1.msra.mxu0 0.0
  %1086 = vmatprep.subr.mxu0 0.0
  %1087 = vmatpush1.msra.mxu0 0.0
  %1088 = vmatprep.subr.mxu0 0.0
  %1089 = vmatpush1.msra.mxu0 0.0
  %1090 = vmatprep.subr.mxu0 0.0
  %1091 = vmatpush1.msra.mxu0 0.0
  %1092 = vmatprep.subr.mxu0 0.0
  %1093 = vmatpush1.msra.mxu0 0.0
  %1094 = vmatprep.subr.mxu0 0.0
  %1095 = vmatpush1.msra.mxu0 0.0
  %1096 = vmatprep.subr.mxu0 0.0
  %1097 = vmatpush1.msra.mxu0 0.0
  %1098 = vmatprep.subr.mxu0 0.0
  %1099 = vmatpush1.msra.mxu0 0.0
  %1100 = vmatprep.subr.mxu0 0.0
  %1101 = vmatpush1.msra.mxu0 0.0
  %1102 = vmatprep.subr.mxu0 0.0
  %1103 = vmatpush1.msra.mxu0 0.0
  %1104 = vmatprep.subr.mxu0 0.0
  %1105 = vmatpush1.msra.mxu0 0.0
  %1106 = vmatprep.subr.mxu0 0.0
  %1107 = vmatpush1.msra.mxu0 0.0
  %1108 = vmatprep.subr.mxu0 0.0
  %1109 = vmatpush1.msra.mxu0 0.0
  %1110 = vmatprep.subr.mxu0 0.0
  %1111 = vmatpush1.msra.mxu0 0.0
  %1112 = vmatprep.subr.mxu0 0.0
  %1113 = vmatpush1.msra.mxu0 0.0
  %1114 = vmatprep.subr.mxu0 0.0
  %1115 = vmatpush1.msra.mxu0 0.0
  %1116 = vmatprep.subr.mxu0 0.0
  %1117 = vmatpush1.msra.mxu0 0.0
  %1118 = vmatprep.subr.mxu0 0.0
  %1119 = vmatpush1.msra.mxu0 0.0
  %1120 = vmatprep.subr.mxu0 0.0
  %1121 = vmatpush1.msra.mxu0 0.0
  %1122 = vmatprep.subr.mxu0 0.0
  %1123 = vmatpush1.msra.mxu0 0.0
  %1124 = vmatprep.subr.mxu0 0.0
  %1125 = vmatpush1.msra.mxu0 0.0
  %1126 = vmatprep.subr.mxu0 0.0
  %1127 = vmatpush1.msra.mxu0 0.0
  %1128 = vmatprep.subr.mxu0 0.0
  %1129 = vmatpush1.msra.mxu0 0.0
  %1130 = vmatprep.subr.mxu0 0.0
  %1131 = vmatpush1.msra.mxu0 0.0
  %1132 = vmatprep.subr.mxu0 0.0
  %1133 = vmatpush1.msra.mxu0 0.0
  %1134 = vmatprep.subr.mxu0 0.0
  %1135 = vmatpush1.msra.mxu0 0.0
  %1136 = vmatprep.subr.mxu0 0.0
  %1137 = vmatpush1.msra.mxu0 0.0
  %1138 = vmatprep.mubr.f32.mxu0 0.0
  %1139 = vmatmul.mubr.f32.gmra.mrb[0].mxu0 %v103
  %v1140 = vpop.f32.mrb[0].mxu0
  %v1141 = vadd.f32 %v1072, %v1140
  %v1142 = vpop.f32.mrb[0].mxu0
  %1143 = vdwg.mxu0
  %v1144 = vmul.f32 %v1141, 0.35355338
  %s1145 = scalar_lea.vmem %s4, 64
  %v1146 = vld [vmem:[%s1145] sm:$0xff]
  %v1147 = vld [vmem:[%s1145 + $0x8] sm:$0xff]
  %v1148 = vld [vmem:[%s1145 + $0x10] sm:$0xff]
  %v1149 = vld [vmem:[%s1145 + $0x18] sm:$0xff]
  %s1150 = scalar_lea.vmem %s7, 2
  %v1151 = vld [vmem:[%s1150] sm:$0x1]
  %v1153 = vlaneseq
  %v1154 = vshrl.u32 %v1153, 7
  %v1155 = vsub.s32 0, %v1154
  %v1156 = vrot.slane %v1151, %v1155
  %1158 = vmatprep.subr.mxu0 0.0
  %1159 = vmatpush1.msra.mxu0 %v1146
  %1160 = vmatprep.subr.mxu0 0.0
  %1161 = vmatpush1.msra.mxu0 %v1147
  %1162 = vmatprep.subr.mxu0 0.0
  %1163 = vmatpush1.msra.mxu0 %v1148
  %1164 = vmatprep.subr.mxu0 0.0
  %1165 = vmatpush1.msra.mxu0 %v1149
  %1166 = vmatprep.subr.mxu0 0.0
  %1167 = vmatpush1.msra.mxu0 0.0
  %1168 = vmatprep.subr.mxu0 0.0
  %1169 = vmatpush1.msra.mxu0 0.0
  %1170 = vmatprep.subr.mxu0 0.0
  %1171 = vmatpush1.msra.mxu0 0.0
  %1172 = vmatprep.subr.mxu0 0.0
  %1173 = vmatpush1.msra.mxu0 0.0
  %1174 = vmatprep.subr.mxu0 0.0
  %1175 = vmatpush1.msra.mxu0 0.0
  %1176 = vmatprep.subr.mxu0 0.0
  %1177 = vmatpush1.msra.mxu0 0.0
  %1178 = vmatprep.subr.mxu0 0.0
  %1179 = vmatpush1.msra.mxu0 0.0
  %1180 = vmatprep.subr.mxu0 0.0
  %1181 = vmatpush1.msra.mxu0 0.0
  %1182 = vmatprep.subr.mxu0 0.0
  %1183 = vmatpush1.msra.mxu0 0.0
  %1184 = vmatprep.subr.mxu0 0.0
  %1185 = vmatpush1.msra.mxu0 0.0
  %1186 = vmatprep.subr.mxu0 0.0
  %1187 = vmatpush1.msra.mxu0 0.0
  %1188 = vmatprep.subr.mxu0 0.0
  %1189 = vmatpush1.msra.mxu0 0.0
  %1190 = vmatprep.subr.mxu0 0.0
  %1191 = vmatpush1.msra.mxu0 0.0
  %1192 = vmatprep.subr.mxu0 0.0
  %1193 = vmatpush1.msra.mxu0 0.0
  %1194 = vmatprep.subr.mxu0 0.0
  %1195 = vmatpush1.msra.mxu0 0.0
  %1196 = vmatprep.subr.mxu0 0.0
  %1197 = vmatpush1.msra.mxu0 0.0
  %1198 = vmatprep.subr.mxu0 0.0
  %1199 = vmatpush1.msra.mxu0 0.0
  %1200 = vmatprep.subr.mxu0 0.0
  %1201 = vmatpush1.msra.mxu0 0.0
  %1202 = vmatprep.subr.mxu0 0.0
  %1203 = vmatpush1.msra.mxu0 0.0
  %1204 = vmatprep.subr.mxu0 0.0
  %1205 = vmatpush1.msra.mxu0 0.0
  %1206 = vmatprep.subr.mxu0 0.0
  %1207 = vmatpush1.msra.mxu0 0.0
  %1208 = vmatprep.subr.mxu0 0.0
  %1209 = vmatpush1.msra.mxu0 0.0
  %1210 = vmatprep.subr.mxu0 0.0
  %1211 = vmatpush1.msra.mxu0 0.0
  %1212 = vmatprep.subr.mxu0 0.0
  %1213 = vmatpush1.msra.mxu0 0.0
  %1214 = vmatprep.subr.mxu0 0.0
  %1215 = vmatpush1.msra.mxu0 0.0
  %1216 = vmatprep.subr.mxu0 0.0
  %1217 = vmatpush1.msra.mxu0 0.0
  %1218 = vmatprep.subr.mxu0 0.0
  %1219 = vmatpush1.msra.mxu0 0.0
  %1220 = vmatprep.subr.mxu0 0.0
  %1221 = vmatpush1.msra.mxu0 0.0
  %1222 = vmatprep.mubr.f32.mxu0 0.0
  %1223 = vmatmul.mubr.f32.gmra.mrb[0].mxu0 %v103
  %v1224 = vpop.f32.mrb[0].mxu0
  %v1225 = vadd.f32 %v1156, %v1224
  %v1226 = vpop.f32.mrb[0].mxu0
  %1227 = vdwg.mxu0
  %s1228 = scalar_lea.vmem %s5, 64
  %v1229 = vld [vmem:[%s1228] sm:$0xff]
  %v1230 = vld [vmem:[%s1228 + $0x8] sm:$0xff]
  %v1231 = vld [vmem:[%s1228 + $0x10] sm:$0xff]
  %v1232 = vld [vmem:[%s1228 + $0x18] sm:$0xff]
  %s1233 = scalar_lea.vmem %s8, 2
  %v1234 = vld [vmem:[%s1233] sm:$0x1]
  %v1236 = vlaneseq
  %v1237 = vshrl.u32 %v1236, 7
  %v1238 = vsub.s32 0, %v1237
  %v1239 = vrot.slane %v1234, %v1238
  %1241 = vmatprep.subr.mxu0 0.0
  %1242 = vmatpush1.msra.mxu0 %v1229
  %1243 = vmatprep.subr.mxu0 0.0
  %1244 = vmatpush1.msra.mxu0 %v1230
  %1245 = vmatprep.subr.mxu0 0.0
  %1246 = vmatpush1.msra.mxu0 %v1231
  %1247 = vmatprep.subr.mxu0 0.0
  %1248 = vmatpush1.msra.mxu0 %v1232
  %1249 = vmatprep.subr.mxu0 0.0
  %1250 = vmatpush1.msra.mxu0 0.0
  %1251 = vmatprep.subr.mxu0 0.0
  %1252 = vmatpush1.msra.mxu0 0.0
  %1253 = vmatprep.subr.mxu0 0.0
  %1254 = vmatpush1.msra.mxu0 0.0
  %1255 = vmatprep.subr.mxu0 0.0
  %1256 = vmatpush1.msra.mxu0 0.0
  %1257 = vmatprep.subr.mxu0 0.0
  %1258 = vmatpush1.msra.mxu0 0.0
  %1259 = vmatprep.subr.mxu0 0.0
  %1260 = vmatpush1.msra.mxu0 0.0
  %1261 = vmatprep.subr.mxu0 0.0
  %1262 = vmatpush1.msra.mxu0 0.0
  %1263 = vmatprep.subr.mxu0 0.0
  %1264 = vmatpush1.msra.mxu0 0.0
  %1265 = vmatprep.subr.mxu0 0.0
  %1266 = vmatpush1.msra.mxu0 0.0
  %1267 = vmatprep.subr.mxu0 0.0
  %1268 = vmatpush1.msra.mxu0 0.0
  %1269 = vmatprep.subr.mxu0 0.0
  %1270 = vmatpush1.msra.mxu0 0.0
  %1271 = vmatprep.subr.mxu0 0.0
  %1272 = vmatpush1.msra.mxu0 0.0
  %1273 = vmatprep.subr.mxu0 0.0
  %1274 = vmatpush1.msra.mxu0 0.0
  %1275 = vmatprep.subr.mxu0 0.0
  %1276 = vmatpush1.msra.mxu0 0.0
  %1277 = vmatprep.subr.mxu0 0.0
  %1278 = vmatpush1.msra.mxu0 0.0
  %1279 = vmatprep.subr.mxu0 0.0
  %1280 = vmatpush1.msra.mxu0 0.0
  %1281 = vmatprep.subr.mxu0 0.0
  %1282 = vmatpush1.msra.mxu0 0.0
  %1283 = vmatprep.subr.mxu0 0.0
  %1284 = vmatpush1.msra.mxu0 0.0
  %1285 = vmatprep.subr.mxu0 0.0
  %1286 = vmatpush1.msra.mxu0 0.0
  %1287 = vmatprep.subr.mxu0 0.0
  %1288 = vmatpush1.msra.mxu0 0.0
  %1289 = vmatprep.subr.mxu0 0.0
  %1290 = vmatpush1.msra.mxu0 0.0
  %1291 = vmatprep.subr.mxu0 0.0
  %1292 = vmatpush1.msra.mxu0 0.0
  %1293 = vmatprep.subr.mxu0 0.0
  %1294 = vmatpush1.msra.mxu0 0.0
  %1295 = vmatprep.subr.mxu0 0.0
  %1296 = vmatpush1.msra.mxu0 0.0
  %1297 = vmatprep.subr.mxu0 0.0
  %1298 = vmatpush1.msra.mxu0 0.0
  %1299 = vmatprep.subr.mxu0 0.0
  %1300 = vmatpush1.msra.mxu0 0.0
  %1301 = vmatprep.subr.mxu0 0.0
  %1302 = vmatpush1.msra.mxu0 0.0
  %1303 = vmatprep.subr.mxu0 0.0
  %1304 = vmatpush1.msra.mxu0 0.0
  %1305 = vmatprep.mubr.f32.mxu0 0.0
  %1306 = vmatmul.mubr.f32.gmra.mrb[0].mxu0 %v103
  %v1307 = vpop.f32.mrb[0].mxu0
  %v1308 = vadd.f32 %v1239, %v1307
  %v1309 = vpop.f32.mrb[0].mxu0
  %1310 = vdwg.mxu0
  %s1311 = scalar_lea.vmem %s9, 16
  %v1312 = vld [vmem:[%s1311] sm:$0xff]
  %v1314 = vsel %vm339, %v1144, 0
  %v1317 = vsel %vm339, %v1225, 0
  %1319 = vmatprep.subr.mxu0 0.0
  %1320 = vmatpush1.xpose.msra.mxu0 %v1317
  %1321 = vmatprep.subr.mxu0 0.0
  %1322 = vmatpush1.xpose.msra.mxu0 0.0
  %1323 = vmatprep.subr.mxu0 0.0
  %1324 = vmatpush1.xpose.msra.mxu0 0.0
  %1325 = vmatprep.subr.mxu0 0.0
  %1326 = vmatpush1.xpose.msra.mxu0 0.0
  %1327 = vmatprep.subr.mxu0 0.0
  %1328 = vmatpush1.xpose.msra.mxu0 0.0
  %1329 = vmatprep.subr.mxu0 0.0
  %1330 = vmatpush1.xpose.msra.mxu0 0.0
  %1331 = vmatprep.subr.mxu0 0.0
  %1332 = vmatpush1.xpose.msra.mxu0 0.0
  %1333 = vmatprep.subr.mxu0 0.0
  %1334 = vmatpush1.xpose.msra.mxu0 0.0
  %1335 = vmatprep.subr.mxu0 0.0
  %1336 = vmatpush1.xpose.msra.mxu0 0.0
  %1337 = vmatprep.subr.mxu0 0.0
  %1338 = vmatpush1.xpose.msra.mxu0 0.0
  %1339 = vmatprep.subr.mxu0 0.0
  %1340 = vmatpush1.xpose.msra.mxu0 0.0
  %1341 = vmatprep.subr.mxu0 0.0
  %1342 = vmatpush1.xpose.msra.mxu0 0.0
  %1343 = vmatprep.subr.mxu0 0.0
  %1344 = vmatpush1.xpose.msra.mxu0 0.0
  %1345 = vmatprep.subr.mxu0 0.0
  %1346 = vmatpush1.xpose.msra.mxu0 0.0
  %1347 = vmatprep.subr.mxu0 0.0
  %1348 = vmatpush1.xpose.msra.mxu0 0.0
  %1349 = vmatprep.subr.mxu0 0.0
  %1350 = vmatpush1.xpose.msra.mxu0 0.0
  %1351 = vmatprep.subr.mxu0 0.0
  %1352 = vmatpush1.xpose.msra.mxu0 0.0
  %1353 = vmatprep.subr.mxu0 0.0
  %1354 = vmatpush1.xpose.msra.mxu0 0.0
  %1355 = vmatprep.subr.mxu0 0.0
  %1356 = vmatpush1.xpose.msra.mxu0 0.0
  %1357 = vmatprep.subr.mxu0 0.0
  %1358 = vmatpush1.xpose.msra.mxu0 0.0
  %1359 = vmatprep.subr.mxu0 0.0
  %1360 = vmatpush1.xpose.msra.mxu0 0.0
  %1361 = vmatprep.subr.mxu0 0.0
  %1362 = vmatpush1.xpose.msra.mxu0 0.0
  %1363 = vmatprep.subr.mxu0 0.0
  %1364 = vmatpush1.xpose.msra.mxu0 0.0
  %1365 = vmatprep.subr.mxu0 0.0
  %1366 = vmatpush1.xpose.msra.mxu0 0.0
  %1367 = vmatprep.subr.mxu0 0.0
  %1368 = vmatpush1.xpose.msra.mxu0 0.0
  %1369 = vmatprep.subr.mxu0 0.0
  %1370 = vmatpush1.xpose.msra.mxu0 0.0
  %1371 = vmatprep.subr.mxu0 0.0
  %1372 = vmatpush1.xpose.msra.mxu0 0.0
  %1373 = vmatprep.subr.mxu0 0.0
  %1374 = vmatpush1.xpose.msra.mxu0 0.0
  %1375 = vmatprep.subr.mxu0 0.0
  %1376 = vmatpush1.xpose.msra.mxu0 0.0
  %1377 = vmatprep.subr.mxu0 0.0
  %1378 = vmatpush1.xpose.msra.mxu0 0.0
  %1379 = vmatprep.subr.mxu0 0.0
  %1380 = vmatpush1.xpose.msra.mxu0 0.0
  %1381 = vmatprep.subr.mxu0 0.0
  %1382 = vmatpush1.xpose.msra.mxu0 0.0
  %1383 = vmatprep.mubr.f32.mxu0 0.0
  %1384 = vmatmul.mubr.f32.gmra.mrb[0].mxu0 %v1314
  %v1385 = vpop.f32.mrb[0].mxu0
  %v1386 = vadd.f32 %v1312, %v1385
  %v1387 = vpop.f32.mrb[0].mxu0
  %1388 = vdwg.mxu0
  %v1389 = vsel %vm339, %v1386, -inf
  %1390 = vmax.xlane.f32.xlu0 %v1389
  %v1391 = vpop.xlane.xlu0 %1390
  %v1392 = vsub.f32 %v1386, %v1391
  %v1393 = vmul.f32 %v1392, 1.442695
  %v1394 = vpow.pop %v1393
  %v1395 = vsel %vm339, %v1394, 0.0
  %1396 = vadd.xlane.f32.xlu0 %v1395
  %v1397 = vpop.xlane.xlu0 %1396
  %v1398 = vrcp.pop %v1397
  %v1399 = vmul.f32 %v1394, %v1398
  %v1401 = vsel %vm339, %v1399, 0
  %1403 = vmatprep.subr.mxu0 0.0
  %1404 = vmatpush1.msra.mxu0 %v1308
  %1405 = vmatprep.subr.mxu0 0.0
  %1406 = vmatpush1.msra.mxu0 0.0
  %1407 = vmatprep.subr.mxu0 0.0
  %1408 = vmatpush1.msra.mxu0 0.0
  %1409 = vmatprep.subr.mxu0 0.0
  %1410 = vmatpush1.msra.mxu0 0.0
  %1411 = vmatprep.subr.mxu0 0.0
  %1412 = vmatpush1.msra.mxu0 0.0
  %1413 = vmatprep.subr.mxu0 0.0
  %1414 = vmatpush1.msra.mxu0 0.0
  %1415 = vmatprep.subr.mxu0 0.0
  %1416 = vmatpush1.msra.mxu0 0.0
  %1417 = vmatprep.subr.mxu0 0.0
  %1418 = vmatpush1.msra.mxu0 0.0
  %1419 = vmatprep.subr.mxu0 0.0
  %1420 = vmatpush1.msra.mxu0 0.0
  %1421 = vmatprep.subr.mxu0 0.0
  %1422 = vmatpush1.msra.mxu0 0.0
  %1423 = vmatprep.subr.mxu0 0.0
  %1424 = vmatpush1.msra.mxu0 0.0
  %1425 = vmatprep.subr.mxu0 0.0
  %1426 = vmatpush1.msra.mxu0 0.0
  %1427 = vmatprep.subr.mxu0 0.0
  %1428 = vmatpush1.msra.mxu0 0.0
  %1429 = vmatprep.subr.mxu0 0.0
  %1430 = vmatpush1.msra.mxu0 0.0
  %1431 = vmatprep.subr.mxu0 0.0
  %1432 = vmatpush1.msra.mxu0 0.0
  %1433 = vmatprep.subr.mxu0 0.0
  %1434 = vmatpush1.msra.mxu0 0.0
  %1435 = vmatprep.subr.mxu0 0.0
  %1436 = vmatpush1.msra.mxu0 0.0
  %1437 = vmatprep.subr.mxu0 0.0
  %1438 = vmatpush1.msra.mxu0 0.0
  %1439 = vmatprep.subr.mxu0 0.0
  %1440 = vmatpush1.msra.mxu0 0.0
  %1441 = vmatprep.subr.mxu0 0.0
  %1442 = vmatpush1.msra.mxu0 0.0
  %1443 = vmatprep.subr.mxu0 0.0
  %1444 = vmatpush1.msra.mxu0 0.0
  %1445 = vmatprep.subr.mxu0 0.0
  %1446 = vmatpush1.msra.mxu0 0.0
  %1447 = vmatprep.subr.mxu0 0.0
  %1448 = vmatpush1.msra.mxu0 0.0
  %1449 = vmatprep.subr.mxu0 0.0
  %1450 = vmatpush1.msra.mxu0 0.0
  %1451 = vmatprep.subr.mxu0 0.0
  %1452 = vmatpush1.msra.mxu0 0.0
  %1453 = vmatprep.subr.mxu0 0.0
  %1454 = vmatpush1.msra.mxu0 0.0
  %1455 = vmatprep.subr.mxu0 0.0
  %1456 = vmatpush1.msra.mxu0 0.0
  %1457 = vmatprep.subr.mxu0 0.0
  %1458 = vmatpush1.msra.mxu0 0.0
  %1459 = vmatprep.subr.mxu0 0.0
  %1460 = vmatpush1.msra.mxu0 0.0
  %1461 = vmatprep.subr.mxu0 0.0
  %1462 = vmatpush1.msra.mxu0 0.0
  %1463 = vmatprep.subr.mxu0 0.0
  %1464 = vmatpush1.msra.mxu0 0.0
  %1465 = vmatprep.subr.mxu0 0.0
  %1466 = vmatpush1.msra.mxu0 0.0
  %1467 = vmatprep.mubr.f32.mxu0 0.0
  %1468 = vmatmul.mubr.f32.gmra.mrb[0].mxu0 %v1401
  %v1469 = vpop.f32.mrb[0].mxu0
  %v1470 = vadd.f32 0.0, %v1469
  %v1471 = vpop.f32.mrb[0].mxu0
  %1472 = vdwg.mxu0
  %s1473 = scalar_lea.vmem %s10, 16
  %v1474 = vld [vmem:[%s1473] sm:$0xff]
  %v1476 = vsel %vm339, %v1470, 0
  %1478 = vmatprep.subr.mxu0 0.0
  %1479 = vmatpush1.msra.mxu0 %v1474
  %1480 = vmatprep.subr.mxu0 0.0
  %1481 = vmatpush1.msra.mxu0 0.0
  %1482 = vmatprep.subr.mxu0 0.0
  %1483 = vmatpush1.msra.mxu0 0.0
  %1484 = vmatprep.subr.mxu0 0.0
  %1485 = vmatpush1.msra.mxu0 0.0
  %1486 = vmatprep.subr.mxu0 0.0
  %1487 = vmatpush1.msra.mxu0 0.0
  %1488 = vmatprep.subr.mxu0 0.0
  %1489 = vmatpush1.msra.mxu0 0.0
  %1490 = vmatprep.subr.mxu0 0.0
  %1491 = vmatpush1.msra.mxu0 0.0
  %1492 = vmatprep.subr.mxu0 0.0
  %1493 = vmatpush1.msra.mxu0 0.0
  %1494 = vmatprep.subr.mxu0 0.0
  %1495 = vmatpush1.msra.mxu0 0.0
  %1496 = vmatprep.subr.mxu0 0.0
  %1497 = vmatpush1.msra.mxu0 0.0
  %1498 = vmatprep.subr.mxu0 0.0
  %1499 = vmatpush1.msra.mxu0 0.0
  %1500 = vmatprep.subr.mxu0 0.0
  %1501 = vmatpush1.msra.mxu0 0.0
  %1502 = vmatprep.subr.mxu0 0.0
  %1503 = vmatpush1.msra.mxu0 0.0
  %1504 = vmatprep.subr.mxu0 0.0
  %1505 = vmatpush1.msra.mxu0 0.0
  %1506 = vmatprep.subr.mxu0 0.0
  %1507 = vmatpush1.msra.mxu0 0.0
  %1508 = vmatprep.subr.mxu0 0.0
  %1509 = vmatpush1.msra.mxu0 0.0
  %1510 = vmatprep.subr.mxu0 0.0
  %1511 = vmatpush1.msra.mxu0 0.0
  %1512 = vmatprep.subr.mxu0 0.0
  %1513 = vmatpush1.msra.mxu0 0.0
  %1514 = vmatprep.subr.mxu0 0.0
  %1515 = vmatpush1.msra.mxu0 0.0
  %1516 = vmatprep.subr.mxu0 0.0
  %1517 = vmatpush1.msra.mxu0 0.0
  %1518 = vmatprep.subr.mxu0 0.0
  %1519 = vmatpush1.msra.mxu0 0.0
  %1520 = vmatprep.subr.mxu0 0.0
  %1521 = vmatpush1.msra.mxu0 0.0
  %1522 = vmatprep.subr.mxu0 0.0
  %1523 = vmatpush1.msra.mxu0 0.0
  %1524 = vmatprep.subr.mxu0 0.0
  %1525 = vmatpush1.msra.mxu0 0.0
  %1526 = vmatprep.subr.mxu0 0.0
  %1527 = vmatpush1.msra.mxu0 0.0
  %1528 = vmatprep.subr.mxu0 0.0
  %1529 = vmatpush1.msra.mxu0 0.0
  %1530 = vmatprep.subr.mxu0 0.0
  %1531 = vmatpush1.msra.mxu0 0.0
  %1532 = vmatprep.subr.mxu0 0.0
  %1533 = vmatpush1.msra.mxu0 0.0
  %1534 = vmatprep.subr.mxu0 0.0
  %1535 = vmatpush1.msra.mxu0 0.0
  %1536 = vmatprep.subr.mxu0 0.0
  %1537 = vmatpush1.msra.mxu0 0.0
  %1538 = vmatprep.subr.mxu0 0.0
  %1539 = vmatpush1.msra.mxu0 0.0
  %1540 = vmatprep.subr.mxu0 0.0
  %1541 = vmatpush1.msra.mxu0 0.0
  %1542 = vmatprep.mubr.f32.mxu0 0.0
  %1543 = vmatmul.mubr.f32.gmra.mrb[0].mxu0 %v1476
  %v1544 = vpop.f32.mrb[0].mxu0
  %v1545 = vadd.f32 0.0, %v1544
  %v1546 = vpop.f32.mrb[0].mxu0
  %1547 = vdwg.mxu0
  %v1548 = vadd.f32 %v1058, %v1545
  %s1549 = scalar_lea.vmem %s3, 96
  %v1550 = vld [vmem:[%s1549] sm:$0xff]
  %v1551 = vld [vmem:[%s1549 + $0x8] sm:$0xff]
  %v1552 = vld [vmem:[%s1549 + $0x10] sm:$0xff]
  %v1553 = vld [vmem:[%s1549 + $0x18] sm:$0xff]
  %s1554 = scalar_lea.vmem %s6, 3
  %v1555 = vld [vmem:[%s1554] sm:$0x1]
  %v1557 = vlaneseq
  %v1558 = vshrl.u32 %v1557, 7
  %v1559 = vsub.s32 0, %v1558
  %v1560 = vrot.slane %v1555, %v1559
  %1562 = vmatprep.subr.mxu0 0.0
  %1563 = vmatpush1.msra.mxu0 %v1550
  %1564 = vmatprep.subr.mxu0 0.0
  %1565 = vmatpush1.msra.mxu0 %v1551
  %1566 = vmatprep.subr.mxu0 0.0
  %1567 = vmatpush1.msra.mxu0 %v1552
  %1568 = vmatprep.subr.mxu0 0.0
  %1569 = vmatpush1.msra.mxu0 %v1553
  %1570 = vmatprep.subr.mxu0 0.0
  %1571 = vmatpush1.msra.mxu0 0.0
  %1572 = vmatprep.subr.mxu0 0.0
  %1573 = vmatpush1.msra.mxu0 0.0
  %1574 = vmatprep.subr.mxu0 0.0
  %1575 = vmatpush1.msra.mxu0 0.0
  %1576 = vmatprep.subr.mxu0 0.0
  %1577 = vmatpush1.msra.mxu0 0.0
  %1578 = vmatprep.subr.mxu0 0.0
  %1579 = vmatpush1.msra.mxu0 0.0
  %1580 = vmatprep.subr.mxu0 0.0
  %1581 = vmatpush1.msra.mxu0 0.0
  %1582 = vmatprep.subr.mxu0 0.0
  %1583 = vmatpush1.msra.mxu0 0.0
  %1584 = vmatprep.subr.mxu0 0.0
  %1585 = vmatpush1.msra.mxu0 0.0
  %1586 = vmatprep.subr.mxu0 0.0
  %1587 = vmatpush1.msra.mxu0 0.0
  %1588 = vmatprep.subr.mxu0 0.0
  %1589 = vmatpush1.msra.mxu0 0.0
  %1590 = vmatprep.subr.mxu0 0.0
  %1591 = vmatpush1.msra.mxu0 0.0
  %1592 = vmatprep.subr.mxu0 0.0
  %1593 = vmatpush1.msra.mxu0 0.0
  %1594 = vmatprep.subr.mxu0 0.0
  %1595 = vmatpush1.msra.mxu0 0.0
  %1596 = vmatprep.subr.mxu0 0.0
  %1597 = vmatpush1.msra.mxu0 0.0
  %1598 = vmatprep.subr.mxu0 0.0
  %1599 = vmatpush1.msra.mxu0 0.0
  %1600 = vmatprep.subr.mxu0 0.0
  %1601 = vmatpush1.msra.mxu0 0.0
  %1602 = vmatprep.subr.mxu0 0.0
  %1603 = vmatpush1.msra.mxu0 0.0
  %1604 = vmatprep.subr.mxu0 0.0
  %1605 = vmatpush1.msra.mxu0 0.0
  %1606 = vmatprep.subr.mxu0 0.0
  %1607 = vmatpush1.msra.mxu0 0.0
  %1608 = vmatprep.subr.mxu0 0.0
  %1609 = vmatpush1.msra.mxu0 0.0
  %1610 = vmatprep.subr.mxu0 0.0
  %1611 = vmatpush1.msra.mxu0 0.0
  %1612 = vmatprep.subr.mxu0 0.0
  %1613 = vmatpush1.msra.mxu0 0.0
  %1614 = vmatprep.subr.mxu0 0.0
  %1615 = vmatpush1.msra.mxu0 0.0
  %1616 = vmatprep.subr.mxu0 0.0
  %1617 = vmatpush1.msra.mxu0 0.0
  %1618 = vmatprep.subr.mxu0 0.0
  %1619 = vmatpush1.msra.mxu0 0.0
  %1620 = vmatprep.subr.mxu0 0.0
  %1621 = vmatpush1.msra.mxu0 0.0
  %1622 = vmatprep.subr.mxu0 0.0
  %1623 = vmatpush1.msra.mxu0 0.0
  %1624 = vmatprep.subr.mxu0 0.0
  %1625 = vmatpush1.msra.mxu0 0.0
  %1626 = vmatprep.mubr.f32.mxu0 0.0
  %1627 = vmatmul.mubr.f32.gmra.mrb[0].mxu0 %v103
  %v1628 = vpop.f32.mrb[0].mxu0
  %v1629 = vadd.f32 %v1560, %v1628
  %v1630 = vpop.f32.mrb[0].mxu0
  %1631 = vdwg.mxu0
  %v1632 = vmul.f32 %v1629, 0.35355338
  %s1633 = scalar_lea.vmem %s4, 96
  %v1634 = vld [vmem:[%s1633] sm:$0xff]
  %v1635 = vld [vmem:[%s1633 + $0x8] sm:$0xff]
  %v1636 = vld [vmem:[%s1633 + $0x10] sm:$0xff]
  %v1637 = vld [vmem:[%s1633 + $0x18] sm:$0xff]
  %s1638 = scalar_lea.vmem %s7, 3
  %v1639 = vld [vmem:[%s1638] sm:$0x1]
  %v1641 = vlaneseq
  %v1642 = vshrl.u32 %v1641, 7
  %v1643 = vsub.s32 0, %v1642
  %v1644 = vrot.slane %v1639, %v1643
  %1646 = vmatprep.subr.mxu0 0.0
  %1647 = vmatpush1.msra.mxu0 %v1634
  %1648 = vmatprep.subr.mxu0 0.0
  %1649 = vmatpush1.msra.mxu0 %v1635
  %1650 = vmatprep.subr.mxu0 0.0
  %1651 = vmatpush1.msra.mxu0 %v1636
  %1652 = vmatprep.subr.mxu0 0.0
  %1653 = vmatpush1.msra.mxu0 %v1637
  %1654 = vmatprep.subr.mxu0 0.0
  %1655 = vmatpush1.msra.mxu0 0.0
  %1656 = vmatprep.subr.mxu0 0.0
  %1657 = vmatpush1.msra.mxu0 0.0
  %1658 = vmatprep.subr.mxu0 0.0
  %1659 = vmatpush1.msra.mxu0 0.0
  %1660 = vmatprep.subr.mxu0 0.0
  %1661 = vmatpush1.msra.mxu0 0.0
  %1662 = vmatprep.subr.mxu0 0.0
  %1663 = vmatpush1.msra.mxu0 0.0
  %1664 = vmatprep.subr.mxu0 0.0
  %1665 = vmatpush1.msra.mxu0 0.0
  %1666 = vmatprep.subr.mxu0 0.0
  %1667 = vmatpush1.msra.mxu0 0.0
  %1668 = vmatprep.subr.mxu0 0.0
  %1669 = vmatpush1.msra.mxu0 0.0
  %1670 = vmatprep.subr.mxu0 0.0
  %1671 = vmatpush1.msra.mxu0 0.0
  %1672 = vmatprep.subr.mxu0 0.0
  %1673 = vmatpush1.msra.mxu0 0.0
  %1674 = vmatprep.subr.mxu0 0.0
  %1675 = vmatpush1.msra.mxu0 0.0
  %1676 = vmatprep.subr.mxu0 0.0
  %1677 = vmatpush1.msra.mxu0 0.0
  %1678 = vmatprep.subr.mxu0 0.0
  %1679 = vmatpush1.msra.mxu0 0.0
  %1680 = vmatprep.subr.mxu0 0.0
  %1681 = vmatpush1.msra.mxu0 0.0
  %1682 = vmatprep.subr.mxu0 0.0
  %1683 = vmatpush1.msra.mxu0 0.0
  %1684 = vmatprep.subr.mxu0 0.0
  %1685 = vmatpush1.msra.mxu0 0.0
  %1686 = vmatprep.subr.mxu0 0.0
  %1687 = vmatpush1.msra.mxu0 0.0
  %1688 = vmatprep.subr.mxu0 0.0
  %1689 = vmatpush1.msra.mxu0 0.0
  %1690 = vmatprep.subr.mxu0 0.0
  %1691 = vmatpush1.msra.mxu0 0.0
  %1692 = vmatprep.subr.mxu0 0.0
  %1693 = vmatpush1.msra.mxu0 0.0
  %1694 = vmatprep.subr.mxu0 0.0
  %1695 = vmatpush1.msra.mxu0 0.0
  %1696 = vmatprep.subr.mxu0 0.0
  %1697 = vmatpush1.msra.mxu0 0.0
  %1698 = vmatprep.subr.mxu0 0.0
  %1699 = vmatpush1.msra.mxu0 0.0
  %1700 = vmatprep.subr.mxu0 0.0
  %1701 = vmatpush1.msra.mxu0 0.0
  %1702 = vmatprep.subr.mxu0 0.0
  %1703 = vmatpush1.msra.mxu0 0.0
  %1704 = vmatprep.subr.mxu0 0.0
  %1705 = vmatpush1.msra.mxu0 0.0
  %1706 = vmatprep.subr.mxu0 0.0
  %1707 = vmatpush1.msra.mxu0 0.0
  %1708 = vmatprep.subr.mxu0 0.0
  %1709 = vmatpush1.msra.mxu0 0.0
  %1710 = vmatprep.mubr.f32.mxu0 0.0
  %1711 = vmatmul.mubr.f32.gmra.mrb[0].mxu0 %v103
  %v1712 = vpop.f32.mrb[0].mxu0
  %v1713 = vadd.f32 %v1644, %v1712
  %v1714 = vpop.f32.mrb[0].mxu0
  %1715 = vdwg.mxu0
  %s1716 = scalar_lea.vmem %s5, 96
  %v1717 = vld [vmem:[%s1716] sm:$0xff]
  %v1718 = vld [vmem:[%s1716 + $0x8] sm:$0xff]
  %v1719 = vld [vmem:[%s1716 + $0x10] sm:$0xff]
  %v1720 = vld [vmem:[%s1716 + $0x18] sm:$0xff]
  %s1721 = scalar_lea.vmem %s8, 3
  %v1722 = vld [vmem:[%s1721] sm:$0x1]
  %v1724 = vlaneseq
  %v1725 = vshrl.u32 %v1724, 7
  %v1726 = vsub.s32 0, %v1725
  %v1727 = vrot.slane %v1722, %v1726
  %1729 = vmatprep.subr.mxu0 0.0
  %1730 = vmatpush1.msra.mxu0 %v1717
  %1731 = vmatprep.subr.mxu0 0.0
  %1732 = vmatpush1.msra.mxu0 %v1718
  %1733 = vmatprep.subr.mxu0 0.0
  %1734 = vmatpush1.msra.mxu0 %v1719
  %1735 = vmatprep.subr.mxu0 0.0
  %1736 = vmatpush1.msra.mxu0 %v1720
  %1737 = vmatprep.subr.mxu0 0.0
  %1738 = vmatpush1.msra.mxu0 0.0
  %1739 = vmatprep.subr.mxu0 0.0
  %1740 = vmatpush1.msra.mxu0 0.0
  %1741 = vmatprep.subr.mxu0 0.0
  %1742 = vmatpush1.msra.mxu0 0.0
  %1743 = vmatprep.subr.mxu0 0.0
  %1744 = vmatpush1.msra.mxu0 0.0
  %1745 = vmatprep.subr.mxu0 0.0
  %1746 = vmatpush1.msra.mxu0 0.0
  %1747 = vmatprep.subr.mxu0 0.0
  %1748 = vmatpush1.msra.mxu0 0.0
  %1749 = vmatprep.subr.mxu0 0.0
  %1750 = vmatpush1.msra.mxu0 0.0
  %1751 = vmatprep.subr.mxu0 0.0
  %1752 = vmatpush1.msra.mxu0 0.0
  %1753 = vmatprep.subr.mxu0 0.0
  %1754 = vmatpush1.msra.mxu0 0.0
  %1755 = vmatprep.subr.mxu0 0.0
  %1756 = vmatpush1.msra.mxu0 0.0
  %1757 = vmatprep.subr.mxu0 0.0
  %1758 = vmatpush1.msra.mxu0 0.0
  %1759 = vmatprep.subr.mxu0 0.0
  %1760 = vmatpush1.msra.mxu0 0.0
  %1761 = vmatprep.subr.mxu0 0.0
  %1762 = vmatpush1.msra.mxu0 0.0
  %1763 = vmatprep.subr.mxu0 0.0
  %1764 = vmatpush1.msra.mxu0 0.0
  %1765 = vmatprep.subr.mxu0 0.0
  %1766 = vmatpush1.msra.mxu0 0.0
  %1767 = vmatprep.subr.mxu0 0.0
  %1768 = vmatpush1.msra.mxu0 0.0
  %1769 = vmatprep.subr.mxu0 0.0
  %1770 = vmatpush1.msra.mxu0 0.0
  %1771 = vmatprep.subr.mxu0 0.0
  %1772 = vmatpush1.msra.mxu0 0.0
  %1773 = vmatprep.subr.mxu0 0.0
  %1774 = vmatpush1.msra.mxu0 0.0
  %1775 = vmatprep.subr.mxu0 0.0
  %1776 = vmatpush1.msra.mxu0 0.0
  %1777 = vmatprep.subr.mxu0 0.0
  %1778 = vmatpush1.msra.mxu0 0.0
  %1779 = vmatprep.subr.mxu0 0.0
  %1780 = vmatpush1.msra.mxu0 0.0
  %1781 = vmatprep.subr.mxu0 0.0
  %1782 = vmatpush1.msra.mxu0 0.0
  %1783 = vmatprep.subr.mxu0 0.0
  %1784 = vmatpush1.msra.mxu0 0.0
  %1785 = vmatprep.subr.mxu0 0.0
  %1786 = vmatpush1.msra.mxu0 0.0
  %1787 = vmatprep.subr.mxu0 0.0
  %1788 = vmatpush1.msra.mxu0 0.0
  %1789 = vmatprep.subr.mxu0 0.0
  %1790 = vmatpush1.msra.mxu0 0.0
  %1791 = vmatprep.subr.mxu0 0.0
  %1792 = vmatpush1.msra.mxu0 0.0
  %1793 = vmatprep.mubr.f32.mxu0 0.0
  %1794 = vmatmul.mubr.f32.gmra.mrb[0].mxu0 %v103
  %v1795 = vpop.f32.mrb[0].mxu0
  %v1796 = vadd.f32 %v1727, %v1795
  %v1797 = vpop.f32.mrb[0].mxu0
  %1798 = vdwg.mxu0
  %s1799 = scalar_lea.vmem %s9, 24
  %v1800 = vld [vmem:[%s1799] sm:$0xff]
  %v1802 = vsel %vm339, %v1632, 0
  %v1805 = vsel %vm339, %v1713, 0
  %1807 = vmatprep.subr.mxu0 0.0
  %1808 = vmatpush1.xpose.msra.mxu0 %v1805
  %1809 = vmatprep.subr.mxu0 0.0
  %1810 = vmatpush1.xpose.msra.mxu0 0.0
  %1811 = vmatprep.subr.mxu0 0.0
  %1812 = vmatpush1.xpose.msra.mxu0 0.0
  %1813 = vmatprep.subr.mxu0 0.0
  %1814 = vmatpush1.xpose.msra.mxu0 0.0
  %1815 = vmatprep.subr.mxu0 0.0
  %1816 = vmatpush1.xpose.msra.mxu0 0.0
  %1817 = vmatprep.subr.mxu0 0.0
  %1818 = vmatpush1.xpose.msra.mxu0 0.0
  %1819 = vmatprep.subr.mxu0 0.0
  %1820 = vmatpush1.xpose.msra.mxu0 0.0
  %1821 = vmatprep.subr.mxu0 0.0
  %1822 = vmatpush1.xpose.msra.mxu0 0.0
  %1823 = vmatprep.subr.mxu0 0.0
  %1824 = vmatpush1.xpose.msra.mxu0 0.0
  %1825 = vmatprep.subr.mxu0 0.0
  %1826 = vmatpush1.xpose.msra.mxu0 0.0
  %1827 = vmatprep.subr.mxu0 0.0
  %1828 = vmatpush1.xpose.msra.mxu0 0.0
  %1829 = vmatprep.subr.mxu0 0.0
  %1830 = vmatpush1.xpose.msra.mxu0 0.0
  %1831 = vmatprep.subr.mxu0 0.0
  %1832 = vmatpush1.xpose.msra.mxu0 0.0
  %1833 = vmatprep.subr.mxu0 0.0
  %1834 = vmatpush1.xpose.msra.mxu0 0.0
  %1835 = vmatprep.subr.mxu0 0.0
  %1836 = vmatpush1.xpose.msra.mxu0 0.0
  %1837 = vmatprep.subr.mxu0 0.0
  %1838 = vmatpush1.xpose.msra.mxu0 0.0
  %1839 = vmatprep.subr.mxu0 0.0
  %1840 = vmatpush1.xpose.msra.mxu0 0.0
  %1841 = vmatprep.subr.mxu0 0.0
  %1842 = vmatpush1.xpose.msra.mxu0 0.0
  %1843 = vmatprep.subr.mxu0 0.0
  %1844 = vmatpush1.xpose.msra.mxu0 0.0
  %1845 = vmatprep.subr.mxu0 0.0
  %1846 = vmatpush1.xpose.msra.mxu0 0.0
  %1847 = vmatprep.subr.mxu0 0.0
  %1848 = vmatpush1.xpose.msra.mxu0 0.0
  %1849 = vmatprep.subr.mxu0 0.0
  %1850 = vmatpush1.xpose.msra.mxu0 0.0
  %1851 = vmatprep.subr.mxu0 0.0
  %1852 = vmatpush1.xpose.msra.mxu0 0.0
  %1853 = vmatprep.subr.mxu0 0.0
  %1854 = vmatpush1.xpose.msra.mxu0 0.0
  %1855 = vmatprep.subr.mxu0 0.0
  %1856 = vmatpush1.xpose.msra.mxu0 0.0
  %1857 = vmatprep.subr.mxu0 0.0
  %1858 = vmatpush1.xpose.msra.mxu0 0.0
  %1859 = vmatprep.subr.mxu0 0.0
  %1860 = vmatpush1.xpose.msra.mxu0 0.0
  %1861 = vmatprep.subr.mxu0 0.0
  %1862 = vmatpush1.xpose.msra.mxu0 0.0
  %1863 = vmatprep.subr.mxu0 0.0
  %1864 = vmatpush1.xpose.msra.mxu0 0.0
  %1865 = vmatprep.subr.mxu0 0.0
  %1866 = vmatpush1.xpose.msra.mxu0 0.0
  %1867 = vmatprep.subr.mxu0 0.0
  %1868 = vmatpush1.xpose.msra.mxu0 0.0
  %1869 = vmatprep.subr.mxu0 0.0
  %1870 = vmatpush1.xpose.msra.mxu0 0.0
  %1871 = vmatprep.mubr.f32.mxu0 0.0
  %1872 = vmatmul.mubr.f32.gmra.mrb[0].mxu0 %v1802
  %v1873 = vpop.f32.mrb[0].mxu0
  %v1874 = vadd.f32 %v1800, %v1873
  %v1875 = vpop.f32.mrb[0].mxu0
  %1876 = vdwg.mxu0
  %v1877 = vsel %vm339, %v1874, -inf
  %1878 = vmax.xlane.f32.xlu0 %v1877
  %v1879 = vpop.xlane.xlu0 %1878
  %v1880 = vsub.f32 %v1874, %v1879
  %v1881 = vmul.f32 %v1880, 1.442695
  %v1882 = vpow.pop %v1881
  %v1883 = vsel %vm339, %v1882, 0.0
  %1884 = vadd.xlane.f32.xlu0 %v1883
  %v1885 = vpop.xlane.xlu0 %1884
  %v1886 = vrcp.pop %v1885
  %v1887 = vmul.f32 %v1882, %v1886
  %v1889 = vsel %vm339, %v1887, 0
  %1891 = vmatprep.subr.mxu0 0.0
  %1892 = vmatpush1.msra.mxu0 %v1796
  %1893 = vmatprep.subr.mxu0 0.0
  %1894 = vmatpush1.msra.mxu0 0.0
  %1895 = vmatprep.subr.mxu0 0.0
  %1896 = vmatpush1.msra.mxu0 0.0
  %1897 = vmatprep.subr.mxu0 0.0
  %1898 = vmatpush1.msra.mxu0 0.0
  %1899 = vmatprep.subr.mxu0 0.0
  %1900 = vmatpush1.msra.mxu0 0.0
  %1901 = vmatprep.subr.mxu0 0.0
  %1902 = vmatpush1.msra.mxu0 0.0
  %1903 = vmatprep.subr.mxu0 0.0
  %1904 = vmatpush1.msra.mxu0 0.0
  %1905 = vmatprep.subr.mxu0 0.0
  %1906 = vmatpush1.msra.mxu0 0.0
  %1907 = vmatprep.subr.mxu0 0.0
  %1908 = vmatpush1.msra.mxu0 0.0
  %1909 = vmatprep.subr.mxu0 0.0
  %1910 = vmatpush1.msra.mxu0 0.0
  %1911 = vmatprep.subr.mxu0 0.0
  %1912 = vmatpush1.msra.mxu0 0.0
  %1913 = vmatprep.subr.mxu0 0.0
  %1914 = vmatpush1.msra.mxu0 0.0
  %1915 = vmatprep.subr.mxu0 0.0
  %1916 = vmatpush1.msra.mxu0 0.0
  %1917 = vmatprep.subr.mxu0 0.0
  %1918 = vmatpush1.msra.mxu0 0.0
  %1919 = vmatprep.subr.mxu0 0.0
  %1920 = vmatpush1.msra.mxu0 0.0
  %1921 = vmatprep.subr.mxu0 0.0
  %1922 = vmatpush1.msra.mxu0 0.0
  %1923 = vmatprep.subr.mxu0 0.0
  %1924 = vmatpush1.msra.mxu0 0.0
  %1925 = vmatprep.subr.mxu0 0.0
  %1926 = vmatpush1.msra.mxu0 0.0
  %1927 = vmatprep.subr.mxu0 0.0
  %1928 = vmatpush1.msra.mxu0 0.0
  %1929 = vmatprep.subr.mxu0 0.0
  %1930 = vmatpush1.msra.mxu0 0.0
  %1931 = vmatprep.subr.mxu0 0.0
  %1932 = vmatpush1.msra.mxu0 0.0
  %1933 = vmatprep.subr.mxu0 0.0
  %1934 = vmatpush1.msra.mxu0 0.0
  %1935 = vmatprep.subr.mxu0 0.0
  %1936 = vmatpush1.msra.mxu0 0.0
  %1937 = vmatprep.subr.mxu0 0.0
  %1938 = vmatpush1.msra.mxu0 0.0
  %1939 = vmatprep.subr.mxu0 0.0
  %1940 = vmatpush1.msra.mxu0 0.0
  %1941 = vmatprep.subr.mxu0 0.0
  %1942 = vmatpush1.msra.mxu0 0.0
  %1943 = vmatprep.subr.mxu0 0.0
  %1944 = vmatpush1.msra.mxu0 0.0
  %1945 = vmatprep.subr.mxu0 0.0
  %1946 = vmatpush1.msra.mxu0 0.0
  %1947 = vmatprep.subr.mxu0 0.0
  %1948 = vmatpush1.msra.mxu0 0.0
  %1949 = vmatprep.subr.mxu0 0.0
  %1950 = vmatpush1.msra.mxu0 0.0
  %1951 = vmatprep.subr.mxu0 0.0
  %1952 = vmatpush1.msra.mxu0 0.0
  %1953 = vmatprep.subr.mxu0 0.0
  %1954 = vmatpush1.msra.mxu0 0.0
  %1955 = vmatprep.mubr.f32.mxu0 0.0
  %1956 = vmatmul.mubr.f32.gmra.mrb[0].mxu0 %v1889
  %v1957 = vpop.f32.mrb[0].mxu0
  %v1958 = vadd.f32 0.0, %v1957
  %v1959 = vpop.f32.mrb[0].mxu0
  %1960 = vdwg.mxu0
  %s1961 = scalar_lea.vmem %s10, 24
  %v1962 = vld [vmem:[%s1961] sm:$0xff]
  %v1964 = vsel %vm339, %v1958, 0
  %1966 = vmatprep.subr.mxu0 0.0
  %1967 = vmatpush1.msra.mxu0 %v1962
  %1968 = vmatprep.subr.mxu0 0.0
  %1969 = vmatpush1.msra.mxu0 0.0
  %1970 = vmatprep.subr.mxu0 0.0
  %1971 = vmatpush1.msra.mxu0 0.0
  %1972 = vmatprep.subr.mxu0 0.0
  %1973 = vmatpush1.msra.mxu0 0.0
  %1974 = vmatprep.subr.mxu0 0.0
  %1975 = vmatpush1.msra.mxu0 0.0
  %1976 = vmatprep.subr.mxu0 0.0
  %1977 = vmatpush1.msra.mxu0 0.0
  %1978 = vmatprep.subr.mxu0 0.0
  %1979 = vmatpush1.msra.mxu0 0.0
  %1980 = vmatprep.subr.mxu0 0.0
  %1981 = vmatpush1.msra.mxu0 0.0
  %1982 = vmatprep.subr.mxu0 0.0
  %1983 = vmatpush1.msra.mxu0 0.0
  %1984 = vmatprep.subr.mxu0 0.0
  %1985 = vmatpush1.msra.mxu0 0.0
  %1986 = vmatprep.subr.mxu0 0.0
  %1987 = vmatpush1.msra.mxu0 0.0
  %1988 = vmatprep.subr.mxu0 0.0
  %1989 = vmatpush1.msra.mxu0 0.0
  %1990 = vmatprep.subr.mxu0 0.0
  %1991 = vmatpush1.msra.mxu0 0.0
  %1992 = vmatprep.subr.mxu0 0.0
  %1993 = vmatpush1.msra.mxu0 0.0
  %1994 = vmatprep.subr.mxu0 0.0
  %1995 = vmatpush1.msra.mxu0 0.0
  %1996 = vmatprep.subr.mxu0 0.0
  %1997 = vmatpush1.msra.mxu0 0.0
  %1998 = vmatprep.subr.mxu0 0.0
  %1999 = vmatpush1.msra.mxu0 0.0
  %2000 = vmatprep.subr.mxu0 0.0
  %2001 = vmatpush1.msra.mxu0 0.0
  %2002 = vmatprep.subr.mxu0 0.0
  %2003 = vmatpush1.msra.mxu0 0.0
  %2004 = vmatprep.subr.mxu0 0.0
  %2005 = vmatpush1.msra.mxu0 0.0
  %2006 = vmatprep.subr.mxu0 0.0
  %2007 = vmatpush1.msra.mxu0 0.0
  %2008 = vmatprep.subr.mxu0 0.0
  %2009 = vmatpush1.msra.mxu0 0.0
  %2010 = vmatprep.subr.mxu0 0.0
  %2011 = vmatpush1.msra.mxu0 0.0
  %2012 = vmatprep.subr.mxu0 0.0
  %2013 = vmatpush1.msra.mxu0 0.0
  %2014 = vmatprep.subr.mxu0 0.0
  %2015 = vmatpush1.msra.mxu0 0.0
  %2016 = vmatprep.subr.mxu0 0.0
  %2017 = vmatpush1.msra.mxu0 0.0
  %2018 = vmatprep.subr.mxu0 0.0
  %2019 = vmatpush1.msra.mxu0 0.0
  %2020 = vmatprep.subr.mxu0 0.0
  %2021 = vmatpush1.msra.mxu0 0.0
  %2022 = vmatprep.subr.mxu0 0.0
  %2023 = vmatpush1.msra.mxu0 0.0
  %2024 = vmatprep.subr.mxu0 0.0
  %2025 = vmatpush1.msra.mxu0 0.0
  %2026 = vmatprep.subr.mxu0 0.0
  %2027 = vmatpush1.msra.mxu0 0.0
  %2028 = vmatprep.subr.mxu0 0.0
  %2029 = vmatpush1.msra.mxu0 0.0
  %2030 = vmatprep.mubr.f32.mxu0 0.0
  %2031 = vmatmul.mubr.f32.gmra.mrb[0].mxu0 %v1964
  %v2032 = vpop.f32.mrb[0].mxu0
  %v2033 = vadd.f32 0.0, %v2032
  %v2034 = vpop.f32.mrb[0].mxu0
  %2035 = vdwg.mxu0
  %v2036 = vadd.f32 %v1548, %v2033
  %v2037 = vadd.f32 %v90, %v2036
  %v2038 = vld [vmem:[%s11] sm:$0x1]
  %v2040 = vlaneseq
  %v2041 = vshrl.u32 %v2040, 7
  %v2042 = vsub.s32 0, %v2041
  %v2043 = vrot.slane %v2038, %v2042
  %v2045 = vadd.f32 %v2037, %v2043
  %v2046 = vld [vmem:[%s12] sm:$0x1]
  %v2047 = vld [vmem:[%s13] sm:$0x1]
  %v2048 = vsel %vm62, %v2045, 0.0
  %2049 = vadd.xlane.f32.xlu0 %v2048
  %v2050 = vpop.xlane.xlu0 %2049
  %v2051 = vmul.f32 %v2050, %v66
  %v2052 = vsub.f32 %v2045, %v2051
  %v2053 = vmul.f32 %v2052, %v2052
  %v2054 = vsel %vm62, %v2053, 0.0
  %2055 = vadd.xlane.f32.xlu0 %v2054
  %v2056 = vpop.xlane.xlu0 %2055
  %v2057 = vmul.f32 %v2056, %v66
  %v2058 = vadd.f32 %v2057, 1e-05
  %v2059 = vrsqrt.pop %v2058
  %v2060 = vmul.f32 %v2052, %v2059
  %v2062 = vlaneseq
  %v2063 = vshrl.u32 %v2062, 7
  %v2064 = vsub.s32 0, %v2063
  %v2065 = vrot.slane %v2046, %v2064
  %v2067 = vmul.f32 %v2060, %v2065
  %v2069 = vlaneseq
  %v2070 = vshrl.u32 %v2069, 7
  %v2071 = vsub.s32 0, %v2070
  %v2072 = vrot.slane %v2047, %v2071
  %v2074 = vadd.f32 %v2067, %v2072
  %v2075 = vld [vmem:[%s14] sm:$0xff]
  %v2076 = vld [vmem:[%s14 + $0x8] sm:$0xff]
  %v2077 = vld [vmem:[%s14 + $0x10] sm:$0xff]
  %v2078 = vld [vmem:[%s14 + $0x18] sm:$0xff]
  %v2079 = vld [vmem:[%s15] sm:$0x1]
  %v2081 = vlaneseq
  %v2082 = vshrl.u32 %v2081, 7
  %v2083 = vsub.s32 0, %v2082
  %v2084 = vrot.slane %v2079, %v2083
  %v2087 = vsel %vm62, %v2074, 0
  %2089 = vmatprep.subr.mxu0 0.0
  %2090 = vmatpush1.msra.mxu0 %v2075
  %2091 = vmatprep.subr.mxu0 0.0
  %2092 = vmatpush1.msra.mxu0 %v2076
  %2093 = vmatprep.subr.mxu0 0.0
  %2094 = vmatpush1.msra.mxu0 %v2077
  %2095 = vmatprep.subr.mxu0 0.0
  %2096 = vmatpush1.msra.mxu0 %v2078
  %2097 = vmatprep.subr.mxu0 0.0
  %2098 = vmatpush1.msra.mxu0 0.0
  %2099 = vmatprep.subr.mxu0 0.0
  %2100 = vmatpush1.msra.mxu0 0.0
  %2101 = vmatprep.subr.mxu0 0.0
  %2102 = vmatpush1.msra.mxu0 0.0
  %2103 = vmatprep.subr.mxu0 0.0
  %2104 = vmatpush1.msra.mxu0 0.0
  %2105 = vmatprep.subr.mxu0 0.0
  %2106 = vmatpush1.msra.mxu0 0.0
  %2107 = vmatprep.subr.mxu0 0.0
  %2108 = vmatpush1.msra.mxu0 0.0
  %2109 = vmatprep.subr.mxu0 0.0
  %2110 = vmatpush1.msra.mxu0 0.0
  %2111 = vmatprep.subr.mxu0 0.0
  %2112 = vmatpush1.msra.mxu0 0.0
  %2113 = vmatprep.subr.mxu0 0.0
  %2114 = vmatpush1.msra.mxu0 0.0
  %2115 = vmatprep.subr.mxu0 0.0
  %2116 = vmatpush1.msra.mxu0 0.0
  %2117 = vmatprep.subr.mxu0 0.0
  %2118 = vmatpush1.msra.mxu0 0.0
  %2119 = vmatprep.subr.mxu0 0.0
  %2120 = vmatpush1.msra.mxu0 0.0
  %2121 = vmatprep.subr.mxu0 0.0
  %2122 = vmatpush1.msra.mxu0 0.0
  %2123 = vmatprep.subr.mxu0 0.0
  %2124 = vmatpush1.msra.mxu0 0.0
  %2125 = vmatprep.subr.mxu0 0.0
  %2126 = vmatpush1.msra.mxu0 0.0
  %2127 = vmatprep.subr.mxu0 0.0
  %2128 = vmatpush1.msra.mxu0 0.0
  %2129 = vmatprep.subr.mxu0 0.0
  %2130 = vmatpush1.msra.mxu0 0.0
  %2131 = vmatprep.subr.mxu0 0.0
  %2132 = vmatpush1.msra.mxu0 0.0
  %2133 = vmatprep.subr.mxu0 0.0
  %2134 = vmatpush1.msra.mxu0 0.0
  %2135 = vmatprep.subr.mxu0 0.0
  %2136 = vmatpush1.msra.mxu0 0.0
  %2137 = vmatprep.subr.mxu0 0.0
  %2138 = vmatpush1.msra.mxu0 0.0
  %2139 = vmatprep.subr.mxu0 0.0
  %2140 = vmatpush1.msra.mxu0 0.0
  %2141 = vmatprep.subr.mxu0 0.0
  %2142 = vmatpush1.msra.mxu0 0.0
  %2143 = vmatprep.subr.mxu0 0.0
  %2144 = vmatpush1.msra.mxu0 0.0
  %2145 = vmatprep.subr.mxu0 0.0
  %2146 = vmatpush1.msra.mxu0 0.0
  %2147 = vmatprep.subr.mxu0 0.0
  %2148 = vmatpush1.msra.mxu0 0.0
  %2149 = vmatprep.subr.mxu0 0.0
  %2150 = vmatpush1.msra.mxu0 0.0
  %2151 = vmatprep.subr.mxu0 0.0
  %2152 = vmatpush1.msra.mxu0 0.0
  %2153 = vmatprep.mubr.f32.mxu0 0.0
  %2154 = vmatmul.mubr.f32.gmra.mrb[0].mxu0 %v2087
  %v2155 = vpop.f32.mrb[0].mxu0
  %v2156 = vadd.f32 %v2084, %v2155
  %v2157 = vpop.f32.mrb[0].mxu0
  %2158 = vdwg.mxu0
  %v2159 = vmul.f32 %v2156, 0.5
  %v2160 = vmul.f32 %v2156, 0.044715
  %v2161 = vmul.f32 %v2160, %v2156
  %v2162 = vmul.f32 %v2161, %v2156
  %v2163 = vadd.f32 %v2156, %v2162
  %v2164 = vmul.f32 %v2163, 0.7978846
  %v2165 = vtanh.pop %v2164
  %v2166 = vadd.f32 %v2165, 1.0
  %v2167 = vmul.f32 %v2159, %v2166
  %v2168 = vld [vmem:[%s16] sm:$0xff]
  %v2169 = vld [vmem:[%s16 + $0x8] sm:$0xff]
  %v2170 = vld [vmem:[%s16 + $0x10] sm:$0xff]
  %v2171 = vld [vmem:[%s16 + $0x18] sm:$0xff]
  %v2172 = vld [vmem:[%s16 + $0x20] sm:$0xff]
  %v2173 = vld [vmem:[%s16 + $0x28] sm:$0xff]
  %v2174 = vld [vmem:[%s16 + $0x30] sm:$0xff]
  %v2175 = vld [vmem:[%s16 + $0x38] sm:$0xff]
  %v2176 = vld [vmem:[%s16 + $0x40] sm:$0xff]
  %v2177 = vld [vmem:[%s16 + $0x48] sm:$0xff]
  %v2178 = vld [vmem:[%s16 + $0x50] sm:$0xff]
  %v2179 = vld [vmem:[%s16 + $0x58] sm:$0xff]
  %v2180 = vld [vmem:[%s16 + $0x60] sm:$0xff]
  %v2181 = vld [vmem:[%s16 + $0x68] sm:$0xff]
  %v2182 = vld [vmem:[%s16 + $0x70] sm:$0xff]
  %v2183 = vld [vmem:[%s16 + $0x78] sm:$0xff]
  %v2184 = vld [vmem:[%s17] sm:$0x1]
  %v2186 = vlaneseq
  %v2187 = vshrl.u32 %v2186, 7
  %v2188 = vsub.s32 0, %v2187
  %v2189 = vrot.slane %v2184, %v2188
  %2191 = vmatprep.subr.mxu0 0.0
  %2192 = vmatpush1.msra.mxu0 %v2168
  %2193 = vmatprep.subr.mxu0 0.0
  %2194 = vmatpush1.msra.mxu0 %v2169
  %2195 = vmatprep.subr.mxu0 0.0
  %2196 = vmatpush1.msra.mxu0 %v2170
  %2197 = vmatprep.subr.mxu0 0.0
  %2198 = vmatpush1.msra.mxu0 %v2171
  %2199 = vmatprep.subr.mxu0 0.0
  %2200 = vmatpush1.msra.mxu0 %v2172
  %2201 = vmatprep.subr.mxu0 0.0
  %2202 = vmatpush1.msra.mxu0 %v2173
  %2203 = vmatprep.subr.mxu0 0.0
  %2204 = vmatpush1.msra.mxu0 %v2174
  %2205 = vmatprep.subr.mxu0 0.0
  %2206 = vmatpush1.msra.mxu0 %v2175
  %2207 = vmatprep.subr.mxu0 0.0
  %2208 = vmatpush1.msra.mxu0 %v2176
  %2209 = vmatprep.subr.mxu0 0.0
  %2210 = vmatpush1.msra.mxu0 %v2177
  %2211 = vmatprep.subr.mxu0 0.0
  %2212 = vmatpush1.msra.mxu0 %v2178
  %2213 = vmatprep.subr.mxu0 0.0
  %2214 = vmatpush1.msra.mxu0 %v2179
  %2215 = vmatprep.subr.mxu0 0.0
  %2216 = vmatpush1.msra.mxu0 %v2180
  %2217 = vmatprep.subr.mxu0 0.0
  %2218 = vmatpush1.msra.mxu0 %v2181
  %2219 = vmatprep.subr.mxu0 0.0
  %2220 = vmatpush1.msra.mxu0 %v2182
  %2221 = vmatprep.subr.mxu0 0.0
  %2222 = vmatpush1.msra.mxu0 %v2183
  %2223 = vmatprep.subr.mxu0 0.0
  %2224 = vmatpush1.msra.mxu0 0.0
  %2225 = vmatprep.subr.mxu0 0.0
  %2226 = vmatpush1.msra.mxu0 0.0
  %2227 = vmatprep.subr.mxu0 0.0
  %2228 = vmatpush1.msra.mxu0 0.0
  %2229 = vmatprep.subr.mxu0 0.0
  %2230 = vmatpush1.msra.mxu0 0.0
  %2231 = vmatprep.subr.mxu0 0.0
  %2232 = vmatpush1.msra.mxu0 0.0
  %2233 = vmatprep.subr.mxu0 0.0
  %2234 = vmatpush1.msra.mxu0 0.0
  %2235 = vmatprep.subr.mxu0 0.0
  %2236 = vmatpush1.msra.mxu0 0.0
  %2237 = vmatprep.subr.mxu0 0.0
  %2238 = vmatpush1.msra.mxu0 0.0
  %2239 = vmatprep.subr.mxu0 0.0
  %2240 = vmatpush1.msra.mxu0 0.0
  %2241 = vmatprep.subr.mxu0 0.0
  %2242 = vmatpush1.msra.mxu0 0.0
  %2243 = vmatprep.subr.mxu0 0.0
  %2244 = vmatpush1.msra.mxu0 0.0
  %2245 = vmatprep.subr.mxu0 0.0
  %2246 = vmatpush1.msra.mxu0 0.0
  %2247 = vmatprep.subr.mxu0 0.0
  %2248 = vmatpush1.msra.mxu0 0.0
  %2249 = vmatprep.subr.mxu0 0.0
  %2250 = vmatpush1.msra.mxu0 0.0
  %2251 = vmatprep.subr.mxu0 0.0
  %2252 = vmatpush1.msra.mxu0 0.0
  %2253 = vmatprep.subr.mxu0 0.0
  %2254 = vmatpush1.msra.mxu0 0.0
  %2255 = vmatprep.mubr.f32.mxu0 0.0
  %2256 = vmatmul.mubr.f32.gmra.mrb[0].mxu0 %v2167
  %v2257 = vpop.f32.mrb[0].mxu0
  %v2258 = vadd.f32 %v2189, %v2257
  %v2259 = vpop.f32.mrb[0].mxu0
  %2260 = vdwg.mxu0
  %v2261 = vadd.f32 %v2045, %v2258
  %2262 = vst.msk [vmem:[%s18] sm:$0xff] %vm62, %v2261
  // Predicated region
  $region74: #{_lambda_.11} parent=0 // pred_check
    _
  $region75: #{_lambda_.11} parent=0 // pred_check_branch
    %2264 = sbr.rel (0) target = $region77
  $region76: #{_lambda_.11} parent=0 // pred_region
    _
  $region77: #{_lambda_.11} parent=0 // pred_fallthru
    _
  // Predicated region
  $region78: #{_lambda_.11} parent=0 // pred_check
    _
  $region79: #{_lambda_.11} parent=0 // pred_check_branch
    %2266 = sbr.rel (0) target = $region81
  $region80: #{_lambda_.11} parent=0 // pred_region
    _
  $region81: #{_lambda_.11} parent=0 // pred_fallthru
    _

</llo_original>
